<compile_context>
chip_gen: v7x
topology: tpu7x:2x2x1
jax: 0.10.0
libtpu: 0.0.40
codegen_flags: <defaults>
</compile_context>

<pallas_src>
import functools

import jax
import jax.numpy as jnp
from jax.experimental import pallas as pl
from jax.experimental.pallas import tpu as pltpu


_VMEM_LIMIT_BYTES = 32 * 1024 * 1024  # > v5e's 16 MiB scoped default, safe on v7x.
_LANE = 128


# ---------------------------------------------------------------------------
# Kernels
# ---------------------------------------------------------------------------
def _gcn_layer_kernel(a_ref, h_ref, w_ref, b_ref, out_ref, acc_ref):
    """One GCN layer, one (row-tile i, k-tile) grid step.

    acc += A_hat[i, k] @ H[k]      (bf16 x bf16 -> f32 MXU accumulation)
    last k: out = ReLU(acc @ W + b)
    """
    k = pl.program_id(1)

    @pl.when(k == 0)
    def _():
        acc_ref[...] = jnp.zeros_like(acc_ref)

    acc_ref[...] += jnp.dot(a_ref[...], h_ref[...],
                            preferred_element_type=jnp.float32)

    @pl.when(k == pl.num_programs(1) - 1)
    def _():
        agg = acc_ref[...].astype(w_ref.dtype)                 # bf16 -> MXU
        h = jnp.dot(agg, w_ref[...], preferred_element_type=jnp.float32)
        h = jnp.maximum(h + b_ref[...], 0.0)                   # bias + ReLU (f32)
        out_ref[...] = h.astype(out_ref.dtype)


def _gcn_final_kernel(a_ref, h_ref, w_ref, b_ref,
                      w1_ref, b1_ref, w2_ref, b2_ref, out_ref, acc_ref):
    """Last GCN layer fused with the (row-wise) post_mp MLP."""
    k = pl.program_id(1)

    @pl.when(k == 0)
    def _():
        acc_ref[...] = jnp.zeros_like(acc_ref)

    acc_ref[...] += jnp.dot(a_ref[...], h_ref[...],
                            preferred_element_type=jnp.float32)

    @pl.when(k == pl.num_programs(1) - 1)
    def _():
        agg = acc_ref[...].astype(w_ref.dtype)
        h = jnp.dot(agg, w_ref[...], preferred_element_type=jnp.float32)
        h = jnp.maximum(h + b_ref[...], 0.0)
        # post_mp: Linear -> ReLU -> Dropout(eval: identity) -> Linear -> ReLU
        h = jnp.dot(h.astype(w1_ref.dtype), w1_ref[...],
                    preferred_element_type=jnp.float32)
        h = jnp.maximum(h + b1_ref[...], 0.0)
        h = jnp.dot(h.astype(w2_ref.dtype), w2_ref[...],
                    preferred_element_type=jnp.float32)
        h = jnp.maximum(h + b2_ref[...], 0.0)
        out_ref[...] = h.astype(out_ref.dtype)


# ---------------------------------------------------------------------------
# pallas_call wrappers
# ---------------------------------------------------------------------------
def _gcn_layer_call(a_hat, h, w, b, *, tm, tk, out_dtype):
    n = a_hat.shape[0]
    d = h.shape[1]
    hd = w.shape[1]
    grid = (n // tm, n // tk)
    flops = 2 * n * n * d + 2 * n * d * hd
    bytes_accessed = (a_hat.size * a_hat.dtype.itemsize
                      + h.size * h.dtype.itemsize * (n // tm)
                      + w.size * 2 + b.size * 4
                      + n * hd * jnp.dtype(out_dtype).itemsize)
    return pl.pallas_call(
        _gcn_layer_kernel,
        out_shape=jax.ShapeDtypeStruct((n, hd), out_dtype),
        grid=grid,
        in_specs=[
            pl.BlockSpec((tm, tk), lambda i, k: (i, k)),   # A_hat row/col tile
            pl.BlockSpec((tk, d), lambda i, k: (k, 0)),    # H k-tile
            pl.BlockSpec((d, hd), lambda i, k: (0, 0)),    # W (resident)
            pl.BlockSpec((1, hd), lambda i, k: (0, 0)),    # bias (resident)
        ],
        out_specs=pl.BlockSpec((tm, hd), lambda i, k: (i, 0)),
        scratch_shapes=[pltpu.VMEM((tm, d), jnp.float32)],
        compiler_params=pltpu.CompilerParams(
            dimension_semantics=("parallel", "arbitrary"),
            vmem_limit_bytes=_VMEM_LIMIT_BYTES),
        cost_estimate=pl.CostEstimate(flops=flops, transcendentals=0,
                                      bytes_accessed=bytes_accessed),
    )(a_hat, h, w, b)


def _gcn_final_call(a_hat, h, w, b, w1, b1, w2p, b2p, *, tm, tk):
    n = a_hat.shape[0]
    d = h.shape[1]
    hd = w.shape[1]
    op = w2p.shape[1]
    grid = (n // tm, n // tk)
    flops = 2 * n * n * d + 2 * n * (d * hd + hd * hd + hd * op)
    bytes_accessed = (a_hat.size * a_hat.dtype.itemsize
                      + h.size * h.dtype.itemsize * (n // tm)
                      + (w.size + w1.size + w2p.size) * 2
                      + (b.size + b1.size + b2p.size) * 4
                      + n * op * 4)
    return pl.pallas_call(
        _gcn_final_kernel,
        out_shape=jax.ShapeDtypeStruct((n, op), jnp.float32),
        grid=grid,
        in_specs=[
            pl.BlockSpec((tm, tk), lambda i, k: (i, k)),
            pl.BlockSpec((tk, d), lambda i, k: (k, 0)),
            pl.BlockSpec((d, hd), lambda i, k: (0, 0)),
            pl.BlockSpec((1, hd), lambda i, k: (0, 0)),
            pl.BlockSpec((hd, hd), lambda i, k: (0, 0)),
            pl.BlockSpec((1, hd), lambda i, k: (0, 0)),
            pl.BlockSpec((hd, op), lambda i, k: (0, 0)),
            pl.BlockSpec((1, op), lambda i, k: (0, 0)),
        ],
        out_specs=pl.BlockSpec((tm, op), lambda i, k: (i, 0)),
        scratch_shapes=[pltpu.VMEM((tm, d), jnp.float32)],
        compiler_params=pltpu.CompilerParams(
            dimension_semantics=("parallel", "arbitrary"),
            vmem_limit_bytes=_VMEM_LIMIT_BYTES),
        cost_estimate=pl.CostEstimate(flops=flops, transcendentals=0,
                                      bytes_accessed=bytes_accessed),
    )(a_hat, h, w, b, w1, b1, w2p, b2p)


# ---------------------------------------------------------------------------
# GCN normalization: edge_index -> dense A_hat = D^{-1/2} (A + I) D^{-1/2}.
# Built ONCE per graph (hoisted out of the forward path), directly in bf16.
# ---------------------------------------------------------------------------
def build_norm_adj(edge_index, num_nodes, dtype=jnp.bfloat16):
    # TODO(synk): data-dependent scatter-add (sparse -> dense GCN normalization)
    # has no clean Pallas equivalent; built with jnp scatter ops outside kernels.
    src, dst = edge_index[0], edge_index[1]
    # add_remaining_self_loops semantics: drop existing self-loops, add fresh
    # weight-1 self-loops for every node.
    ew = (src != dst).astype(jnp.float32)
    loops = jnp.arange(num_nodes, dtype=edge_index.dtype)
    src = jnp.concatenate([src, loops])
    dst = jnp.concatenate([dst, loops])
    ew = jnp.concatenate([ew, jnp.ones((num_nodes,), jnp.float32)])
    deg = jnp.zeros((num_nodes,), jnp.float32).at[dst].add(ew)
    dinv = jnp.where(deg > 0, jax.lax.rsqrt(deg), 0.0)
    vals = dinv[src] * ew * dinv[dst]
    a_hat = jnp.zeros((num_nodes, num_nodes), jnp.float32).at[dst, src].add(vals)
    return a_hat.astype(dtype)


# ---------------------------------------------------------------------------
# Parameters
# ---------------------------------------------------------------------------
def build_params(key, input_dim, hidden_dim, output_dim, num_layers):
    keys = jax.random.split(key, 2 * (num_layers + 2))

    def lin(kw, kb, fan_in, fan_out):
        scale = 1.0 / jnp.sqrt(jnp.float32(fan_in))
        w = jax.random.uniform(kw, (fan_in, fan_out), jnp.float32, -scale, scale)
        b = jax.random.uniform(kb, (1, fan_out), jnp.float32, -scale, scale)
        return w, b

    dims = [input_dim] + [hidden_dim] * num_layers
    convs, ki = [], 0
    for l in range(num_layers):
        convs.append(lin(keys[ki], keys[ki + 1], dims[l], dims[l + 1]))
        ki += 2
    post_mp = [lin(keys[ki], keys[ki + 1], hidden_dim, hidden_dim),
               lin(keys[ki + 2], keys[ki + 3], hidden_dim, output_dim)]
    return {"convs": convs, "post_mp": post_mp}


def prepare_kernel_params(params):
    """Cast weights to bf16 (MXU fast path), keep biases f32, zero-pad the final
    projection to a lane-dense (multiple-of-128) width. Done once, off the hot path."""
    convs = [(w.astype(jnp.bfloat16), b.astype(jnp.float32))
             for w, b in params["convs"]]
    (w1, b1), (w2, b2) = params["post_mp"]
    out_dim = w2.shape[1]
    out_pad = ((out_dim + _LANE - 1) // _LANE) * _LANE
    w2p = jnp.zeros((w2.shape[0], out_pad), jnp.float32).at[:, :out_dim].set(w2)
    b2p = jnp.zeros((1, out_pad), jnp.float32).at[:, :out_dim].set(b2)
    mlp = ((w1.astype(jnp.bfloat16), b1.astype(jnp.float32)),
           (w2p.astype(jnp.bfloat16), b2p.astype(jnp.float32)))
    return convs, mlp, out_dim


# ---------------------------------------------------------------------------
# Forward: num_layers x (GCNConv + ReLU [+ eval-dropout]) -> post_mp MLP.
# ---------------------------------------------------------------------------
def gnnstack_forward(x, a_hat, convs, mlp, *, out_dim, tm=256, tk=256):
    n = a_hat.shape[0]
    tm, tk = min(tm, n), min(tk, n)
    assert n % tm == 0 and n % tk == 0, "N must be divisible by tile sizes"

    h = x.astype(jnp.bfloat16)
    # All but the last GCN layer: standalone tiled kernels (bf16 hidden out).
    for w, b in convs[:-1]:
        h = _gcn_layer_call(a_hat, h, w, b, tm=tm, tk=tk, out_dtype=jnp.bfloat16)
    # Last GCN layer fused with the row-wise post_mp MLP, lane-dense f32 out.
    w, b = convs[-1]
    (w1, b1), (w2p, b2p) = mlp
    out_pad = _gcn_final_call(a_hat, h, w, b, w1, b1, w2p, b2p, tm=tm, tk=tk)
    return out_pad[:, :out_dim]


# Pure-JAX f32 reference (module semantics: A_hat @ (X W) + b, ReLU, post_mp).
def gnnstack_forward_ref(x, a_hat_f32, params):
    h = x
    for w, b in params["convs"]:
        h = jax.nn.relu(a_hat_f32 @ (h @ w) + b)
    (w1, b1), (w2, b2) = params["post_mp"]
    h = jax.nn.relu(h @ w1 + b1)
    h = jax.nn.relu(h @ w2 + b2)
    return h


if __name__ == "__main__":
    key = jax.random.PRNGKey(0)
    kx, ke, kp = jax.random.split(key, 3)

    # Small demo shapes (still exercises a 2x2 grid with 256-row tiles).
    num_nodes = 512
    num_edges = 2048
    input_dim, hidden_dim, output_dim, num_layers = 128, 128, 16, 2

    x = jax.random.normal(kx, (num_nodes, input_dim), jnp.float32)
    edge_index = jax.random.randint(ke, (2, num_edges), 0, num_nodes,
                                    dtype=jnp.int32)
    params = build_params(kp, input_dim, hidden_dim, output_dim, num_layers)

    # Amortized per-graph / per-model preprocessing (outside the forward path).
    a_hat = build_norm_adj(edge_index, num_nodes, dtype=jnp.bfloat16)
    convs, mlp, out_dim = prepare_kernel_params(params)

    fwd = jax.jit(functools.partial(gnnstack_forward, out_dim=out_dim,
                                    tm=256, tk=256))
    out = jax.block_until_ready(fwd(x, a_hat, convs, mlp))

    ref = gnnstack_forward_ref(x, a_hat.astype(jnp.float32), params)

    assert out.shape == (num_nodes, output_dim) and out.dtype == jnp.float32
    max_err = float(jnp.max(jnp.abs(out - ref)))
    assert bool(jnp.allclose(out, ref, atol=5e-2, rtol=5e-2)), max_err
    print("KERNEL_OK")
</pallas_src>

<mosaic_0001>
module attributes {stable_mosaic.version = 11 : i64} {
  func.func @_gcn_final_kernel(%arg0: i32, %arg1: i32, %arg2: memref<256x256xbf16, #tpu.memory_space<vmem>>, %arg3: memref<256x128xbf16, #tpu.memory_space<vmem>>, %arg4: memref<128x128xbf16, #tpu.memory_space<vmem>>, %arg5: memref<1x128xf32, #tpu.memory_space<vmem>>, %arg6: memref<128x128xbf16, #tpu.memory_space<vmem>>, %arg7: memref<1x128xf32, #tpu.memory_space<vmem>>, %arg8: memref<128x128xbf16, #tpu.memory_space<vmem>>, %arg9: memref<1x128xf32, #tpu.memory_space<vmem>>, %arg10: memref<256x128xf32, #tpu.memory_space<vmem>>, %arg11: memref<256x128xf32, #tpu.memory_space<vmem>>) attributes {dimension_semantics = [#tpu.dimension_semantics<parallel>, #tpu.dimension_semantics<arbitrary>], iteration_bounds = array<i64: 2, 2>, scalar_prefetch = 0 : i64, scratch_operands = 1 : i64, tpu.core_type = #tpu.core_type<tc>, window_params = [{transform_indices = @transform_0, window_bounds = array<i64: 256, 256>}, {transform_indices = @transform_1, window_bounds = array<i64: 256, 128>}, {pipeline_mode = #tpu.pipeline_mode<synchronous>, transform_indices = @transform_2, window_bounds = array<i64: 128, 128>}, {pipeline_mode = #tpu.pipeline_mode<synchronous>, transform_indices = @transform_3, window_bounds = array<i64: 1, 128>}, {pipeline_mode = #tpu.pipeline_mode<synchronous>, transform_indices = @transform_4, window_bounds = array<i64: 128, 128>}, {pipeline_mode = #tpu.pipeline_mode<synchronous>, transform_indices = @transform_5, window_bounds = array<i64: 1, 128>}, {pipeline_mode = #tpu.pipeline_mode<synchronous>, transform_indices = @transform_6, window_bounds = array<i64: 128, 128>}, {pipeline_mode = #tpu.pipeline_mode<synchronous>, transform_indices = @transform_7, window_bounds = array<i64: 1, 128>}, {transform_indices = @transform_8, window_bounds = array<i64: 256, 128>}]} {
    %c0_i32 = arith.constant 0 : i32
    %0 = arith.cmpi eq, %arg1, %c0_i32 : i32
    %1 = arith.extui %0 : i1 to i32
    %c0_i32_0 = arith.constant 0 : i32
    %2 = arith.cmpi ne, %1, %c0_i32_0 : i32
    scf.if %2 {
      %cst_9 = arith.constant 0.000000e+00 : f32
      %12 = vector.broadcast %cst_9 : f32 to vector<256x128xf32>
      %c0_10 = arith.constant 0 : index
      %c0_11 = arith.constant 0 : index
      %13 = vector.load %arg11[%c0_10, %c0_11] : memref<256x128xf32, #tpu.memory_space<vmem>>, vector<256x128xf32>
      tpu.vector_store %arg11[%c0_10, %c0_11], %12 {strides = array<i32>} : memref<256x128xf32, #tpu.memory_space<vmem>>, vector<256x128xf32>,
    } else {
    }
    %c0 = arith.constant 0 : index
    %c0_1 = arith.constant 0 : index
    %3 = vector.load %arg11[%c0, %c0_1] : memref<256x128xf32, #tpu.memory_space<vmem>>, vector<256x128xf32>
    %c0_2 = arith.constant 0 : index
    %c0_3 = arith.constant 0 : index
    %4 = vector.load %arg2[%c0_2, %c0_3] : memref<256x256xbf16, #tpu.memory_space<vmem>>, vector<256x256xbf16>
    %c0_4 = arith.constant 0 : index
    %c0_5 = arith.constant 0 : index
    %5 = vector.load %arg3[%c0_4, %c0_5] : memref<256x128xbf16, #tpu.memory_space<vmem>>, vector<256x128xbf16>
    %cst = arith.constant dense<0.000000e+00> : vector<256x128xf32>
    %6 = tpu.matmul %4, %5, %cst {dimension_numbers = #tpu.dot_dimension_numbers<[1], [0], [0], [1], [0, 0, 1, 1], [], []>} : vector<256x256xbf16>, vector<256x128xbf16>, vector<256x128xf32> -> vector<256x128xf32>
    %7 = arith.addf %3, %6 : vector<256x128xf32>
    %c0_6 = arith.constant 0 : index
    %c0_7 = arith.constant 0 : index
    %8 = vector.load %arg11[%c0_6, %c0_7] : memref<256x128xf32, #tpu.memory_space<vmem>>, vector<256x128xf32>
    tpu.vector_store %arg11[%c0_6, %c0_7], %7 {strides = array<i32>} : memref<256x128xf32, #tpu.memory_space<vmem>>, vector<256x128xf32>,
    %c1_i32 = arith.constant 1 : i32
    %9 = arith.cmpi eq, %arg1, %c1_i32 : i32
    %10 = arith.extui %9 : i1 to i32
    %c0_i32_8 = arith.constant 0 : i32
    %11 = arith.cmpi ne, %10, %c0_i32_8 : i32
    scf.if %11 {
      %c0_9 = arith.constant 0 : index
      %c0_10 = arith.constant 0 : index
      %12 = vector.load %arg11[%c0_9, %c0_10] : memref<256x128xf32, #tpu.memory_space<vmem>>, vector<256x128xf32>
      %13 = arith.truncf %12 : vector<256x128xf32> to vector<256x128xbf16>
      %c0_11 = arith.constant 0 : index
      %c0_12 = arith.constant 0 : index
      %14 = vector.load %arg4[%c0_11, %c0_12] : memref<128x128xbf16, #tpu.memory_space<vmem>>, vector<128x128xbf16>
      %cst_13 = arith.constant dense<0.000000e+00> : vector<256x128xf32>
      %15 = tpu.matmul %13, %14, %cst_13 {dimension_numbers = #tpu.dot_dimension_numbers<[1], [0], [0], [1], [0, 0, 1, 1], [], []>} : vector<256x128xbf16>, vector<128x128xbf16>, vector<256x128xf32> -> vector<256x128xf32>
      %c0_14 = arith.constant 0 : index
      %c0_15 = arith.constant 0 : index
      %16 = vector.load %arg5[%c0_14, %c0_15] : memref<1x128xf32, #tpu.memory_space<vmem>>, vector<1x128xf32>
      %17 = vector.broadcast %16 : vector<1x128xf32> to vector<256x128xf32>
      %18 = arith.addf %15, %17 : vector<256x128xf32>
      %cst_16 = arith.constant 0.000000e+00 : f32
      %19 = vector.broadcast %cst_16 : f32 to vector<256x128xf32>
      %20 = arith.maximumf %18, %19 : vector<256x128xf32>
      %21 = arith.truncf %20 : vector<256x128xf32> to vector<256x128xbf16>
      %c0_17 = arith.constant 0 : index
      %c0_18 = arith.constant 0 : index
      %22 = vector.load %arg6[%c0_17, %c0_18] : memref<128x128xbf16, #tpu.memory_space<vmem>>, vector<128x128xbf16>
      %cst_19 = arith.constant dense<0.000000e+00> : vector<256x128xf32>
      %23 = tpu.matmul %21, %22, %cst_19 {dimension_numbers = #tpu.dot_dimension_numbers<[1], [0], [0], [1], [0, 0, 1, 1], [], []>} : vector<256x128xbf16>, vector<128x128xbf16>, vector<256x128xf32> -> vector<256x128xf32>
      %c0_20 = arith.constant 0 : index
      %c0_21 = arith.constant 0 : index
      %24 = vector.load %arg7[%c0_20, %c0_21] : memref<1x128xf32, #tpu.memory_space<vmem>>, vector<1x128xf32>
      %25 = vector.broadcast %24 : vector<1x128xf32> to vector<256x128xf32>
      %26 = arith.addf %23, %25 : vector<256x128xf32>
      %cst_22 = arith.constant 0.000000e+00 : f32
      %27 = vector.broadcast %cst_22 : f32 to vector<256x128xf32>
      %28 = arith.maximumf %26, %27 : vector<256x128xf32>
      %29 = arith.truncf %28 : vector<256x128xf32> to vector<256x128xbf16>
      %c0_23 = arith.constant 0 : index
      %c0_24 = arith.constant 0 : index
      %30 = vector.load %arg8[%c0_23, %c0_24] : memref<128x128xbf16, #tpu.memory_space<vmem>>, vector<128x128xbf16>
      %cst_25 = arith.constant dense<0.000000e+00> : vector<256x128xf32>
      %31 = tpu.matmul %29, %30, %cst_25 {dimension_numbers = #tpu.dot_dimension_numbers<[1], [0], [0], [1], [0, 0, 1, 1], [], []>} : vector<256x128xbf16>, vector<128x128xbf16>, vector<256x128xf32> -> vector<256x128xf32>
      %c0_26 = arith.constant 0 : index
      %c0_27 = arith.constant 0 : index
      %32 = vector.load %arg9[%c0_26, %c0_27] : memref<1x128xf32, #tpu.memory_space<vmem>>, vector<1x128xf32>
      %33 = vector.broadcast %32 : vector<1x128xf32> to vector<256x128xf32>
      %34 = arith.addf %31, %33 : vector<256x128xf32>
      %cst_28 = arith.constant 0.000000e+00 : f32
      %35 = vector.broadcast %cst_28 : f32 to vector<256x128xf32>
      %36 = arith.maximumf %34, %35 : vector<256x128xf32>
      %c0_29 = arith.constant 0 : index
      %c0_30 = arith.constant 0 : index
      %37 = vector.load %arg10[%c0_29, %c0_30] : memref<256x128xf32, #tpu.memory_space<vmem>>, vector<256x128xf32>
      tpu.vector_store %arg10[%c0_29, %c0_30], %36 {strides = array<i32>} : memref<256x128xf32, #tpu.memory_space<vmem>>, vector<256x128xf32>,
    } else {
    }
    return
  }
  func.func @transform_0(%arg0: i32, %arg1: i32) -> (i32, i32) {
    %c0_i32 = arith.constant 0 : i32
    return %arg0, %arg1 : i32, i32
  }
  func.func @transform_1(%arg0: i32, %arg1: i32) -> (i32, i32) {
    %c0_i32 = arith.constant 0 : i32
    %c0_i32_0 = arith.constant 0 : i32
    return %arg1, %c0_i32 : i32, i32
  }
  func.func @transform_2(%arg0: i32, %arg1: i32) -> (i32, i32) {
    %c0_i32 = arith.constant 0 : i32
    %c0_i32_0 = arith.constant 0 : i32
    %c0_i32_1 = arith.constant 0 : i32
    return %c0_i32, %c0_i32_0 : i32, i32
  }
  func.func @transform_3(%arg0: i32, %arg1: i32) -> (i32, i32) {
    %c0_i32 = arith.constant 0 : i32
    %c0_i32_0 = arith.constant 0 : i32
    %c0_i32_1 = arith.constant 0 : i32
    return %c0_i32, %c0_i32_0 : i32, i32
  }
  func.func @transform_4(%arg0: i32, %arg1: i32) -> (i32, i32) {
    %c0_i32 = arith.constant 0 : i32
    %c0_i32_0 = arith.constant 0 : i32
    %c0_i32_1 = arith.constant 0 : i32
    return %c0_i32, %c0_i32_0 : i32, i32
  }
  func.func @transform_5(%arg0: i32, %arg1: i32) -> (i32, i32) {
    %c0_i32 = arith.constant 0 : i32
    %c0_i32_0 = arith.constant 0 : i32
    %c0_i32_1 = arith.constant 0 : i32
    return %c0_i32, %c0_i32_0 : i32, i32
  }
  func.func @transform_6(%arg0: i32, %arg1: i32) -> (i32, i32) {
    %c0_i32 = arith.constant 0 : i32
    %c0_i32_0 = arith.constant 0 : i32
    %c0_i32_1 = arith.constant 0 : i32
    return %c0_i32, %c0_i32_0 : i32, i32
  }
  func.func @transform_7(%arg0: i32, %arg1: i32) -> (i32, i32) {
    %c0_i32 = arith.constant 0 : i32
    %c0_i32_0 = arith.constant 0 : i32
    %c0_i32_1 = arith.constant 0 : i32
    return %c0_i32, %c0_i32_0 : i32, i32
  }
  func.func @transform_8(%arg0: i32, %arg1: i32) -> (i32, i32) {
    %c0_i32 = arith.constant 0 : i32
    %c0_i32_0 = arith.constant 0 : i32
    return %arg0, %c0_i32 : i32, i32
  }
}

module attributes {stable_mosaic.version = 11 : i64} {
  func.func @_gcn_layer_kernel(%arg0: i32, %arg1: i32, %arg2: memref<256x256xbf16, #tpu.memory_space<vmem>>, %arg3: memref<256x128xbf16, #tpu.memory_space<vmem>>, %arg4: memref<128x128xbf16, #tpu.memory_space<vmem>>, %arg5: memref<1x128xf32, #tpu.memory_space<vmem>>, %arg6: memref<256x128xbf16, #tpu.memory_space<vmem>>, %arg7: memref<256x128xf32, #tpu.memory_space<vmem>>) attributes {dimension_semantics = [#tpu.dimension_semantics<parallel>, #tpu.dimension_semantics<arbitrary>], iteration_bounds = array<i64: 2, 2>, scalar_prefetch = 0 : i64, scratch_operands = 1 : i64, tpu.core_type = #tpu.core_type<tc>, window_params = [{transform_indices = @transform_0, window_bounds = array<i64: 256, 256>}, {transform_indices = @transform_1, window_bounds = array<i64: 256, 128>}, {pipeline_mode = #tpu.pipeline_mode<synchronous>, transform_indices = @transform_2, window_bounds = array<i64: 128, 128>}, {pipeline_mode = #tpu.pipeline_mode<synchronous>, transform_indices = @transform_3, window_bounds = array<i64: 1, 128>}, {transform_indices = @transform_4, window_bounds = array<i64: 256, 128>}]} {
    %c0_i32 = arith.constant 0 : i32
    %0 = arith.cmpi eq, %arg1, %c0_i32 : i32
    %1 = arith.extui %0 : i1 to i32
    %c0_i32_0 = arith.constant 0 : i32
    %2 = arith.cmpi ne, %1, %c0_i32_0 : i32
    scf.if %2 {
      %cst_9 = arith.constant 0.000000e+00 : f32
      %12 = vector.broadcast %cst_9 : f32 to vector<256x128xf32>
      %c0_10 = arith.constant 0 : index
      %c0_11 = arith.constant 0 : index
      %13 = vector.load %arg7[%c0_10, %c0_11] : memref<256x128xf32, #tpu.memory_space<vmem>>, vector<256x128xf32>
      tpu.vector_store %arg7[%c0_10, %c0_11], %12 {strides = array<i32>} : memref<256x128xf32, #tpu.memory_space<vmem>>, vector<256x128xf32>,
    } else {
    }
    %c0 = arith.constant 0 : index
    %c0_1 = arith.constant 0 : index
    %3 = vector.load %arg7[%c0, %c0_1] : memref<256x128xf32, #tpu.memory_space<vmem>>, vector<256x128xf32>
    %c0_2 = arith.constant 0 : index
    %c0_3 = arith.constant 0 : index
    %4 = vector.load %arg2[%c0_2, %c0_3] : memref<256x256xbf16, #tpu.memory_space<vmem>>, vector<256x256xbf16>
    %c0_4 = arith.constant 0 : index
    %c0_5 = arith.constant 0 : index
    %5 = vector.load %arg3[%c0_4, %c0_5] : memref<256x128xbf16, #tpu.memory_space<vmem>>, vector<256x128xbf16>
    %cst = arith.constant dense<0.000000e+00> : vector<256x128xf32>
    %6 = tpu.matmul %4, %5, %cst {dimension_numbers = #tpu.dot_dimension_numbers<[1], [0], [0], [1], [0, 0, 1, 1], [], []>} : vector<256x256xbf16>, vector<256x128xbf16>, vector<256x128xf32> -> vector<256x128xf32>
    %7 = arith.addf %3, %6 : vector<256x128xf32>
    %c0_6 = arith.constant 0 : index
    %c0_7 = arith.constant 0 : index
    %8 = vector.load %arg7[%c0_6, %c0_7] : memref<256x128xf32, #tpu.memory_space<vmem>>, vector<256x128xf32>
    tpu.vector_store %arg7[%c0_6, %c0_7], %7 {strides = array<i32>} : memref<256x128xf32, #tpu.memory_space<vmem>>, vector<256x128xf32>,
    %c1_i32 = arith.constant 1 : i32
    %9 = arith.cmpi eq, %arg1, %c1_i32 : i32
    %10 = arith.extui %9 : i1 to i32
    %c0_i32_8 = arith.constant 0 : i32
    %11 = arith.cmpi ne, %10, %c0_i32_8 : i32
    scf.if %11 {
      %c0_9 = arith.constant 0 : index
      %c0_10 = arith.constant 0 : index
      %12 = vector.load %arg7[%c0_9, %c0_10] : memref<256x128xf32, #tpu.memory_space<vmem>>, vector<256x128xf32>
      %13 = arith.truncf %12 : vector<256x128xf32> to vector<256x128xbf16>
      %c0_11 = arith.constant 0 : index
      %c0_12 = arith.constant 0 : index
      %14 = vector.load %arg4[%c0_11, %c0_12] : memref<128x128xbf16, #tpu.memory_space<vmem>>, vector<128x128xbf16>
      %cst_13 = arith.constant dense<0.000000e+00> : vector<256x128xf32>
      %15 = tpu.matmul %13, %14, %cst_13 {dimension_numbers = #tpu.dot_dimension_numbers<[1], [0], [0], [1], [0, 0, 1, 1], [], []>} : vector<256x128xbf16>, vector<128x128xbf16>, vector<256x128xf32> -> vector<256x128xf32>
      %c0_14 = arith.constant 0 : index
      %c0_15 = arith.constant 0 : index
      %16 = vector.load %arg5[%c0_14, %c0_15] : memref<1x128xf32, #tpu.memory_space<vmem>>, vector<1x128xf32>
      %17 = vector.broadcast %16 : vector<1x128xf32> to vector<256x128xf32>
      %18 = arith.addf %15, %17 : vector<256x128xf32>
      %cst_16 = arith.constant 0.000000e+00 : f32
      %19 = vector.broadcast %cst_16 : f32 to vector<256x128xf32>
      %20 = arith.maximumf %18, %19 : vector<256x128xf32>
      %21 = arith.truncf %20 : vector<256x128xf32> to vector<256x128xbf16>
      %c0_17 = arith.constant 0 : index
      %c0_18 = arith.constant 0 : index
      %22 = vector.load %arg6[%c0_17, %c0_18] : memref<256x128xbf16, #tpu.memory_space<vmem>>, vector<256x128xbf16>
      tpu.vector_store %arg6[%c0_17, %c0_18], %21 {strides = array<i32>} : memref<256x128xbf16, #tpu.memory_space<vmem>>, vector<256x128xbf16>,
    } else {
    }
    return
  }
  func.func @transform_0(%arg0: i32, %arg1: i32) -> (i32, i32) {
    %c0_i32 = arith.constant 0 : i32
    return %arg0, %arg1 : i32, i32
  }
  func.func @transform_1(%arg0: i32, %arg1: i32) -> (i32, i32) {
    %c0_i32 = arith.constant 0 : i32
    %c0_i32_0 = arith.constant 0 : i32
    return %arg1, %c0_i32 : i32, i32
  }
  func.func @transform_2(%arg0: i32, %arg1: i32) -> (i32, i32) {
    %c0_i32 = arith.constant 0 : i32
    %c0_i32_0 = arith.constant 0 : i32
    %c0_i32_1 = arith.constant 0 : i32
    return %c0_i32, %c0_i32_0 : i32, i32
  }
  func.func @transform_3(%arg0: i32, %arg1: i32) -> (i32, i32) {
    %c0_i32 = arith.constant 0 : i32
    %c0_i32_0 = arith.constant 0 : i32
    %c0_i32_1 = arith.constant 0 : i32
    return %c0_i32, %c0_i32_0 : i32, i32
  }
  func.func @transform_4(%arg0: i32, %arg1: i32) -> (i32, i32) {
    %c0_i32 = arith.constant 0 : i32
    %c0_i32_0 = arith.constant 0 : i32
    return %arg0, %c0_i32 : i32, i32
  }
}

</mosaic_0001>

<llo_original>
// kernel: gnnstack_forward.2
$region0: #{gnnstack_forward.2}
  #allocation0 [shape = 'u32[]', space=smem, size = 0x4, offset = 0x4, fixed_abs, tag = 'smem constant byte address 0x4 - core index']
  #allocation1 [shape = 'u32[144,128]{1,0:T(1,128)}', space=vmem, size = 0x12000, scoped, tag = 'internal scratch']
  #allocation2 [shape = 'f32[256,128]{1,0:T(8,128)}', space=vmem, size = 0x20000, scoped, tag = 'scratch operand']
  %s0 = inlined_call_operand.hbm [shape: bf16[512,512], index: 0, kind: input, shape index: {}]
  %s1 = inlined_call_operand.vmem [shape: bf16[512,128], index: 1, kind: input, shape index: {}]
  %s2 = inlined_call_operand.hbm [shape: bf16[128,128], index: 2, kind: input, shape index: {}]
  %s3 = inlined_call_operand.hbm [shape: f32[1,128], index: 3, kind: input, shape index: {}]
  %s4 = inlined_call_operand.vmem [shape: bf16[512,128], index: 4, kind: output, shape index: {}]
  %s5 = sld [smem:[#allocation0]]
  $region69: #{gnnstack_forward.2} parent=0
    _
  %s7 = ssub.s32 1, %s5
  %s8 = scalar_select 0, %s7, %s5
  $region1: #{gnnstack_forward.2} parent=0
    #allocation3 [shape = 'u8[262144]{0}', space=vmem, size = 0x40000, scoped, tag = 'input window, operand 0']
    #allocation4 [shape = 's32[2]{0}', space=sflag, size = 0x8, scoped, tag = 'scoped memory for gnnstack_forward.2']
    #allocation5 [shape = 'u8[32768]{0}', space=vmem, size = 0x8000, scoped, tag = 'input window, operand 2, single buffered']
    #allocation6 [shape = 's32[1]{0}', space=sflag, size = 0x4, scoped, tag = 'scoped memory for gnnstack_forward.2']
    #allocation7 [shape = 'u8[512]{0}', space=vmem, size = 0x400, scoped, tag = 'input window, operand 3, single buffered']
    %9 = vsyncpa [#allocation4], 0
    %s10 = scalar_lea.sflag [#allocation4], 1
    %11 = vsyncpa %s10, 0
    %12 = vsyncpa [#allocation6], 0
    loop: start=0, step=1, limit=6
    $region2: #{gnnstack_forward.2} parent=1 // loop_pre_header
      _
    $region3: #{gnnstack_forward.2} parent=1 // loop_header
      %s14 = sphi 0, %s18
      %p15 = scmp.ge.s32.totalorder %s14, 6
      %s21 = sphi 0, %s33
      %s22 = sphi 0, %s29
      %s23 = sphi 0, %s21
      %s24 = sphi 0, %s22
      %s25 = sphi 0, %s23
      %s26 = sphi 0, %s24
      %s38 = sphi 0, %s40
      %s41 = sphi 0, %s38
      %s42 = sphi 0, %s41
      %s58 = sphi 0, %s42
      %s64 = sphi 0, %s66
      %s67 = sphi 0, %s64
      %s68 = sphi 0, %s67
      %s84 = sphi 0, %s68
      %s88 = sphi 0, %s88
      %s90 = sphi 0, %s88
      %s91 = sphi 0, %s90
      %s105 = sphi 0, %s91
      %s109 = sphi 0, %s109
      %s111 = sphi 0, %s109
      %s112 = sphi 0, %s111
      %s126 = sphi 0, %s112
      %s132 = sphi 0, %s134
      %s135 = sphi 0, %s132
      %s136 = sphi 0, %s135
      %s152 = sphi 0, %s136
    $region4: #{gnnstack_forward.2} parent=1 // loop_header_branch
      %17 = sbr.rel (%p15) target = $region8
    $region5: #{gnnstack_forward.2} parent=1 // loop_body
      %s19 = ssub.s32 %s14, 1
      %s20 = ssub.s32 %s14, 2
      %s27 = sadd.s32 1, %s22
      %p28 = scmp.ge.s32.totalorder %s27, 2
      %s29 = scalar_select %p28, 0, %s27
      %s30 = sadd.s32 1, %s21
      %s31 = scalar_select %p28, %s30, %s21
      %p32 = scmp.ge.s32.totalorder %s31, 2
      %s33 = scalar_select %p32, 0, %s31
      %s34 = ssub.s32 %s21, %s33
      %s35 = ssub.s32 %s22, %s29
      %s36 = sor.u32 %s34, %s35
      %p37 = scmp.eq.s32.totalorder %s36, 0
      %s39 = sadd.s32 %s38, 1
      %s40 = scalar_select %p37, %s38, %s39
      %p43 = pneg %p37
      %p44 = scmp.eq.s32.totalorder %s14, 3
      %p45 = por %p43, %p44
      %p46 = scmp.ne.s32.totalorder %s38, %s41
      %p47 = scmp.eq.s32.totalorder %s14, 0
      %p48 = por %p46, %p47
      %p49 = scmp.ne.s32.totalorder %s38, %s41
      %p50 = scmp.eq.s32.totalorder %s19, 3
      %p51 = por %p49, %p50
      %p52 = scmp.ne.s32.totalorder %s41, %s42
      %p53 = scmp.eq.s32.totalorder %s19, 0
      %p54 = por %p52, %p53
      %p55 = scmp.ne.s32.totalorder %s41, %s42
      %p56 = scmp.eq.s32.totalorder %s20, 3
      %p57 = por %p55, %p56
      %p59 = scmp.ne.s32.totalorder %s42, %s58
      %p60 = scmp.eq.s32.totalorder %s20, 0
      %p61 = por %p59, %p60
      %s62 = ssub.s32 %s22, %s29
      %p63 = scmp.eq.s32.totalorder %s62, 0
      %s65 = sadd.s32 %s64, 1
      %s66 = scalar_select %p63, %s64, %s65
      %p69 = pneg %p63
      %p70 = scmp.eq.s32.totalorder %s14, 3
      %p71 = por %p69, %p70
      %p72 = scmp.ne.s32.totalorder %s64, %s67
      %p73 = scmp.eq.s32.totalorder %s14, 0
      %p74 = por %p72, %p73
      %p75 = scmp.ne.s32.totalorder %s64, %s67
      %p76 = scmp.eq.s32.totalorder %s19, 3
      %p77 = por %p75, %p76
      %p78 = scmp.ne.s32.totalorder %s67, %s68
      %p79 = scmp.eq.s32.totalorder %s19, 0
      %p80 = por %p78, %p79
      %p81 = scmp.ne.s32.totalorder %s67, %s68
      %p82 = scmp.eq.s32.totalorder %s20, 3
      %p83 = por %p81, %p82
      %p85 = scmp.ne.s32.totalorder %s68, %s84
      %p86 = scmp.eq.s32.totalorder %s20, 0
      %p87 = por %p85, %p86
      %s89 = sadd.s32 %s88, 1
      %p92 = scmp.eq.s32.totalorder %s14, 3
      %p93 = scmp.ne.s32.totalorder %s88, %s90
      %p94 = scmp.eq.s32.totalorder %s14, 0
      %p95 = por %p93, %p94
      %p96 = scmp.ne.s32.totalorder %s88, %s90
      %p97 = scmp.eq.s32.totalorder %s19, 3
      %p98 = por %p96, %p97
      %p99 = scmp.ne.s32.totalorder %s90, %s91
      %p100 = scmp.eq.s32.totalorder %s19, 0
      %p101 = por %p99, %p100
      %p102 = scmp.ne.s32.totalorder %s90, %s91
      %p103 = scmp.eq.s32.totalorder %s20, 3
      %p104 = por %p102, %p103
      %p106 = scmp.ne.s32.totalorder %s91, %s105
      %p107 = scmp.eq.s32.totalorder %s20, 0
      %p108 = por %p106, %p107
      %s110 = sadd.s32 %s109, 1
      %p113 = scmp.eq.s32.totalorder %s14, 3
      %p114 = scmp.ne.s32.totalorder %s109, %s111
      %p115 = scmp.eq.s32.totalorder %s14, 0
      %p116 = por %p114, %p115
      %p117 = scmp.ne.s32.totalorder %s109, %s111
      %p118 = scmp.eq.s32.totalorder %s19, 3
      %p119 = por %p117, %p118
      %p120 = scmp.ne.s32.totalorder %s111, %s112
      %p121 = scmp.eq.s32.totalorder %s19, 0
      %p122 = por %p120, %p121
      %p123 = scmp.ne.s32.totalorder %s111, %s112
      %p124 = scmp.eq.s32.totalorder %s20, 3
      %p125 = por %p123, %p124
      %p127 = scmp.ne.s32.totalorder %s112, %s126
      %p128 = scmp.eq.s32.totalorder %s20, 0
      %p129 = por %p127, %p128
      %s130 = ssub.s32 %s21, %s33
      %p131 = scmp.eq.s32.totalorder %s130, 0
      %s133 = sadd.s32 %s132, 1
      %s134 = scalar_select %p131, %s132, %s133
      %p137 = pneg %p131
      %p138 = scmp.eq.s32.totalorder %s14, 3
      %p139 = por %p137, %p138
      %p140 = scmp.ne.s32.totalorder %s132, %s135
      %p141 = scmp.eq.s32.totalorder %s14, 0
      %p142 = por %p140, %p141
      %p143 = scmp.ne.s32.totalorder %s132, %s135
      %p144 = scmp.eq.s32.totalorder %s19, 3
      %p145 = por %p143, %p144
      %p146 = scmp.ne.s32.totalorder %s135, %s136
      %p147 = scmp.eq.s32.totalorder %s19, 0
      %p148 = por %p146, %p147
      %p149 = scmp.ne.s32.totalorder %s135, %s136
      %p150 = scmp.eq.s32.totalorder %s20, 3
      %p151 = por %p149, %p150
      %p153 = scmp.ne.s32.totalorder %s136, %s152
      %p154 = scmp.eq.s32.totalorder %s20, 0
      %p155 = por %p153, %p154
      %p156 = scmp.le.s32.totalorder 1, %s14
      %p157 = scmp.lt.s32.totalorder %s14, 5
      %p158 = pnand %p156, %p157
      %p159 = pneg %p158
      // Predicated region
      $region9: #{gnnstack_forward.2} parent=5 // pred_check
        _
      $region10: #{gnnstack_forward.2} parent=5 // pred_check_branch
        %161 = sbr.rel (%p158) target = $region12
      $region11: #{gnnstack_forward.2} parent=5 // pred_region
        %s162 = ssub.s32 %s14, 1
        // Predicated region
        $region13: #{gnnstack_forward.2} parent=11 // pred_check
          %p163 = pneg %p101
        $region14: #{gnnstack_forward.2} parent=11 // pred_check_branch
          %165 = sbr.rel (%p163) target = $region16
        $region15: #{gnnstack_forward.2} parent=11 // pred_region
          %s167 = ssub.s32 1024, 1024
          %168 = vsyncadd [#allocation6], %s167
          %s169 = sshll.u32 [#allocation5], 4
          %s170 = int_to_ptr.vmem [resolvable:$true] %s169
          %175 = dma.hbm_to_vmem [thread:$0]  %s2, 1024, %s170, [#allocation6], 64, 64, 4
        $region16: #{gnnstack_forward.2} parent=11 // pred_fallthru
          _
        // Predicated region
        $region17: #{gnnstack_forward.2} parent=11 // pred_check
          %p176 = pneg %p122
        $region18: #{gnnstack_forward.2} parent=11 // pred_check_branch
          %178 = sbr.rel (%p176) target = $region20
        $region19: #{gnnstack_forward.2} parent=11 // pred_region
          %s180 = ssub.s32 16, 16
          %181 = vsyncadd [#allocation6], %s180
          %s183 = sshll.u32 [#allocation7], 4
          %s184 = int_to_ptr.vmem [resolvable:$true] %s183
          %186 = dma.hbm_to_vmem [thread:$0]  %s3, 16, %s184, [#allocation6]
        $region20: #{gnnstack_forward.2} parent=11 // pred_fallthru
          _
      $region12: #{gnnstack_forward.2} parent=5 // pred_fallthru
        _
      %p187 = scmp.lt.s32.totalorder %s14, 4
      // Predicated region
      $region21: #{gnnstack_forward.2} parent=5 // pred_check
        %p188 = pneg %p187
      $region22: #{gnnstack_forward.2} parent=5 // pred_check_branch
        %190 = sbr.rel (%p188) target = $region24
      $region23: #{gnnstack_forward.2} parent=5 // pred_region
        // Predicated region
        $region25: #{gnnstack_forward.2} parent=23 // pred_check
          %p191 = pneg %p48
        $region26: #{gnnstack_forward.2} parent=23 // pred_check_branch
          %193 = sbr.rel (%p191) target = $region28
        $region27: #{gnnstack_forward.2} parent=23 // pred_region
          %s194 = sand.u32 %s38, 1
          %s195 = scalar_lea.sflag [#allocation4], %s194
          %s196 = sand.u32 %s38, 1
          %s197 = smul.addr %s196, 256
          %s198 = scalar_lea.vmem [#allocation3], %s197
          %s199 = smul.u32 32, %s21
          %s200 = smul.u32 2, %s22
          %s202 = ssub.s32 4096, 4096
          %203 = vsyncadd %s195, %s202
          %s204 = smul.addr %s199, 4
          %s205 = sadd.s32 %s200, %s204
          %s206 = smul.addr %s205, 64
          %s207 = scalar_lea.hbm %s0, %s206
          %s208 = sshll.u32 %s198, 4
          %s209 = int_to_ptr.vmem [resolvable:$true] %s208
          %214 = dma.hbm_to_vmem [thread:$0]  %s207, 4096, %s209, %s195, 256, 128, 8
        $region28: #{gnnstack_forward.2} parent=23 // pred_fallthru
          _
        // Predicated region
        $region29: #{gnnstack_forward.2} parent=23 // pred_check
          %p215 = pneg %p74
        $region30: #{gnnstack_forward.2} parent=23 // pred_check_branch
          %217 = sbr.rel (%p215) target = $region32
        $region31: #{gnnstack_forward.2} parent=23 // pred_region
          %s218 = smul.u32 32, %s22
          %p219 = scmp.lt.s32.totalorder %s218, 63
          %s220 = scalar_select %p219, %s218, 63
          %s221 = smul.addr %s220, 4
          %s222 = scalar_lea.vmem %s1, %s221
          %s223 = smul.u32 32, %s22
        $region32: #{gnnstack_forward.2} parent=23 // pred_fallthru
          _
      $region24: #{gnnstack_forward.2} parent=5 // pred_fallthru
        _
      %p224 = scmp.le.s32.totalorder 1, %s14
      %p225 = scmp.lt.s32.totalorder %s14, 5
      %p226 = pnand %p224, %p225
      %p227 = pneg %p226
      // Predicated region
      $region33: #{gnnstack_forward.2} parent=5 // pred_check
        _
      $region34: #{gnnstack_forward.2} parent=5 // pred_check_branch
        %229 = sbr.rel (%p226) target = $region36
      $region35: #{gnnstack_forward.2} parent=5 // pred_region
        %s230 = ssub.s32 %s14, 1
        %s231 = sand.u32 %s41, 1
        %s232 = scalar_lea.sflag [#allocation4], %s231
        %s233 = sand.u32 %s41, 1
        %s234 = smul.addr %s233, 256
        %s235 = scalar_lea.vmem [#allocation3], %s234
        // Predicated region
        $region37: #{gnnstack_forward.2} parent=35 // pred_check
          %p236 = pneg %p54
        $region38: #{gnnstack_forward.2} parent=35 // pred_check_branch
          %238 = sbr.rel (%p236) target = $region40
        $region39: #{gnnstack_forward.2} parent=35 // pred_region
          %239 = dma.done %s232, 4096
        $region40: #{gnnstack_forward.2} parent=35 // pred_fallthru
          _
        // Predicated region
        $region41: #{gnnstack_forward.2} parent=35 // pred_check
          %p240 = pneg %p101
        $region42: #{gnnstack_forward.2} parent=35 // pred_check_branch
          %242 = sbr.rel (%p240) target = $region44
        $region43: #{gnnstack_forward.2} parent=35 // pred_region
          %243 = dma.done [#allocation6], 1024
        $region44: #{gnnstack_forward.2} parent=35 // pred_fallthru
          _
        // Predicated region
        $region45: #{gnnstack_forward.2} parent=35 // pred_check
          %p244 = pneg %p122
        $region46: #{gnnstack_forward.2} parent=35 // pred_check_branch
          %246 = sbr.rel (%p244) target = $region48
        $region47: #{gnnstack_forward.2} parent=35 // pred_region
          %247 = dma.done [#allocation6], 16
        $region48: #{gnnstack_forward.2} parent=35 // pred_fallthru
          _
        %s248 = sand.u32 %s41, 1
        %s249 = scalar_lea.sflag [#allocation4], %s248
        %s250 = sand.u32 %s41, 1
        %s251 = smul.addr %s250, 256
        %s252 = scalar_lea.vmem [#allocation3], %s251
        %p253 = pneg %p54
        %p254 = pneg %p51
        %s255 = smul.u32 32, %s24
        %p256 = scmp.lt.s32.totalorder %s255, 63
        %s257 = scalar_select %p256, %s255, 63
        %s258 = smul.addr %s257, 4
        %s259 = scalar_lea.vmem %s1, %s258
        %p260 = pneg %p80
        %p261 = pneg %p77
        %p262 = pneg %p101
        %p263 = pneg %p98
        %p264 = pneg %p122
        %p265 = pneg %p119
        %p266 = pneg %p148
        %p267 = pneg %p145
        %s268 = smul.u32 32, %s23
        %p269 = scmp.lt.s32.totalorder %s268, 63
        %s270 = scalar_select %p269, %s268, 63
        %s271 = smul.addr %s270, 4
        %s272 = scalar_lea.vmem %s4, %s271
        %s273 = smul.u32 32, %s23
        %s274 = smul.u32 2, %s24
        %s275 = smul.u32 32, %s24
        %p276 = scmp.lt.s32.totalorder %s275, 63
        %s277 = scalar_select %p276, %s275, 63
        %s278 = smul.addr %s277, 4
        %s279 = scalar_lea.vmem %s1, %s278
        %s280 = smul.u32 32, %s24
        %s281 = smul.u32 32, %s23
        %p282 = scmp.lt.s32.totalorder %s281, 63
        %s283 = scalar_select %p282, %s281, 63
        %s284 = smul.addr %s283, 4
        %s285 = scalar_lea.vmem %s4, %s284
        %s286 = smul.u32 32, %s23
        %p288 = scmp.eq.s32.totalorder %s24, 0
        // Predicated region
        $region49: #{gnnstack_forward.2} parent=35 // pred_check
          %p289 = pneg %p288
        $region50: #{gnnstack_forward.2} parent=35 // pred_check_branch
          %291 = sbr.rel (%p289) target = $region52
        $region51: #{gnnstack_forward.2} parent=35 // pred_region
          %292 = vst [vmem:[#allocation2] sm:$0xff] 0.0
          %293 = vst [vmem:[#allocation2 + $0x8] sm:$0xff] 0.0
          %294 = vst [vmem:[#allocation2 + $0x10] sm:$0xff] 0.0
          %295 = vst [vmem:[#allocation2 + $0x18] sm:$0xff] 0.0
          %296 = vst [vmem:[#allocation2 + $0x20] sm:$0xff] 0.0
          %297 = vst [vmem:[#allocation2 + $0x28] sm:$0xff] 0.0
          %298 = vst [vmem:[#allocation2 + $0x30] sm:$0xff] 0.0
          %299 = vst [vmem:[#allocation2 + $0x38] sm:$0xff] 0.0
          %300 = vst [vmem:[#allocation2 + $0x40] sm:$0xff] 0.0
          %301 = vst [vmem:[#allocation2 + $0x48] sm:$0xff] 0.0
          %302 = vst [vmem:[#allocation2 + $0x50] sm:$0xff] 0.0
          %303 = vst [vmem:[#allocation2 + $0x58] sm:$0xff] 0.0
          %304 = vst [vmem:[#allocation2 + $0x60] sm:$0xff] 0.0
          %305 = vst [vmem:[#allocation2 + $0x68] sm:$0xff] 0.0
          %306 = vst [vmem:[#allocation2 + $0x70] sm:$0xff] 0.0
          %307 = vst [vmem:[#allocation2 + $0x78] sm:$0xff] 0.0
          %308 = vst [vmem:[#allocation2 + $0x80] sm:$0xff] 0.0
          %309 = vst [vmem:[#allocation2 + $0x88] sm:$0xff] 0.0
          %310 = vst [vmem:[#allocation2 + $0x90] sm:$0xff] 0.0
          %311 = vst [vmem:[#allocation2 + $0x98] sm:$0xff] 0.0
          %312 = vst [vmem:[#allocation2 + $0xa0] sm:$0xff] 0.0
          %313 = vst [vmem:[#allocation2 + $0xa8] sm:$0xff] 0.0
          %314 = vst [vmem:[#allocation2 + $0xb0] sm:$0xff] 0.0
          %315 = vst [vmem:[#allocation2 + $0xb8] sm:$0xff] 0.0
          %316 = vst [vmem:[#allocation2 + $0xc0] sm:$0xff] 0.0
          %317 = vst [vmem:[#allocation2 + $0xc8] sm:$0xff] 0.0
          %318 = vst [vmem:[#allocation2 + $0xd0] sm:$0xff] 0.0
          %319 = vst [vmem:[#allocation2 + $0xd8] sm:$0xff] 0.0
          %320 = vst [vmem:[#allocation2 + $0xe0] sm:$0xff] 0.0
          %321 = vst [vmem:[#allocation2 + $0xe8] sm:$0xff] 0.0
          %322 = vst [vmem:[#allocation2 + $0xf0] sm:$0xff] 0.0
          %323 = vst [vmem:[#allocation2 + $0xf8] sm:$0xff] 0.0
        $region52: #{gnnstack_forward.2} parent=35 // pred_fallthru
          _
        %v324 = vld [vmem:[#allocation2] sm:$0xff]
        %v325 = vld [vmem:[#allocation2 + $0x8] sm:$0xff]
        %v326 = vld [vmem:[#allocation2 + $0x10] sm:$0xff]
        %v327 = vld [vmem:[#allocation2 + $0x18] sm:$0xff]
        %v328 = vld [vmem:[#allocation2 + $0x20] sm:$0xff]
        %v329 = vld [vmem:[#allocation2 + $0x28] sm:$0xff]
        %v330 = vld [vmem:[#allocation2 + $0x30] sm:$0xff]
        %v331 = vld [vmem:[#allocation2 + $0x38] sm:$0xff]
        %v332 = vld [vmem:[#allocation2 + $0x40] sm:$0xff]
        %v333 = vld [vmem:[#allocation2 + $0x48] sm:$0xff]
        %v334 = vld [vmem:[#allocation2 + $0x50] sm:$0xff]
        %v335 = vld [vmem:[#allocation2 + $0x58] sm:$0xff]
        %v336 = vld [vmem:[#allocation2 + $0x60] sm:$0xff]
        %v337 = vld [vmem:[#allocation2 + $0x68] sm:$0xff]
        %v338 = vld [vmem:[#allocation2 + $0x70] sm:$0xff]
        %v339 = vld [vmem:[#allocation2 + $0x78] sm:$0xff]
        %v340 = vld [vmem:[#allocation2 + $0x80] sm:$0xff]
        %v341 = vld [vmem:[#allocation2 + $0x88] sm:$0xff]
        %v342 = vld [vmem:[#allocation2 + $0x90] sm:$0xff]
        %v343 = vld [vmem:[#allocation2 + $0x98] sm:$0xff]
        %v344 = vld [vmem:[#allocation2 + $0xa0] sm:$0xff]
        %v345 = vld [vmem:[#allocation2 + $0xa8] sm:$0xff]
        %v346 = vld [vmem:[#allocation2 + $0xb0] sm:$0xff]
        %v347 = vld [vmem:[#allocation2 + $0xb8] sm:$0xff]
        %v348 = vld [vmem:[#allocation2 + $0xc0] sm:$0xff]
        %v349 = vld [vmem:[#allocation2 + $0xc8] sm:$0xff]
        %v350 = vld [vmem:[#allocation2 + $0xd0] sm:$0xff]
        %v351 = vld [vmem:[#allocation2 + $0xd8] sm:$0xff]
        %v352 = vld [vmem:[#allocation2 + $0xe0] sm:$0xff]
        %v353 = vld [vmem:[#allocation2 + $0xe8] sm:$0xff]
        %v354 = vld [vmem:[#allocation2 + $0xf0] sm:$0xff]
        %v355 = vld [vmem:[#allocation2 + $0xf8] sm:$0xff]
        %v356 = vld [vmem:[%s235] sm:$0xff]
        %v357 = vld [vmem:[%s235 + $0x8] sm:$0xff]
        %v358 = vld [vmem:[%s235 + $0x10] sm:$0xff]
        %v359 = vld [vmem:[%s235 + $0x18] sm:$0xff]
        %v360 = vld [vmem:[%s235 + $0x20] sm:$0xff]
        %v361 = vld [vmem:[%s235 + $0x28] sm:$0xff]
        %v362 = vld [vmem:[%s235 + $0x30] sm:$0xff]
        %v363 = vld [vmem:[%s235 + $0x38] sm:$0xff]
        %v364 = vld [vmem:[%s235 + $0x40] sm:$0xff]
        %v365 = vld [vmem:[%s235 + $0x48] sm:$0xff]
        %v366 = vld [vmem:[%s235 + $0x50] sm:$0xff]
        %v367 = vld [vmem:[%s235 + $0x58] sm:$0xff]
        %v368 = vld [vmem:[%s235 + $0x60] sm:$0xff]
        %v369 = vld [vmem:[%s235 + $0x68] sm:$0xff]
        %v370 = vld [vmem:[%s235 + $0x70] sm:$0xff]
        %v371 = vld [vmem:[%s235 + $0x78] sm:$0xff]
        %v372 = vld [vmem:[%s235 + $0x80] sm:$0xff]
        %v373 = vld [vmem:[%s235 + $0x88] sm:$0xff]
        %v374 = vld [vmem:[%s235 + $0x90] sm:$0xff]
        %v375 = vld [vmem:[%s235 + $0x98] sm:$0xff]
        %v376 = vld [vmem:[%s235 + $0xa0] sm:$0xff]
        %v377 = vld [vmem:[%s235 + $0xa8] sm:$0xff]
        %v378 = vld [vmem:[%s235 + $0xb0] sm:$0xff]
        %v379 = vld [vmem:[%s235 + $0xb8] sm:$0xff]
        %v380 = vld [vmem:[%s235 + $0xc0] sm:$0xff]
        %v381 = vld [vmem:[%s235 + $0xc8] sm:$0xff]
        %v382 = vld [vmem:[%s235 + $0xd0] sm:$0xff]
        %v383 = vld [vmem:[%s235 + $0xd8] sm:$0xff]
        %v384 = vld [vmem:[%s235 + $0xe0] sm:$0xff]
        %v385 = vld [vmem:[%s235 + $0xe8] sm:$0xff]
        %v386 = vld [vmem:[%s235 + $0xf0] sm:$0xff]
        %v387 = vld [vmem:[%s235 + $0xf8] sm:$0xff]
        %v388 = vld [vmem:[%s279] sm:$0xf]
        %v389 = vld [vmem:[%s279 + $0x4] sm:$0xf]
        %v390 = vld [vmem:[%s279 + $0x8] sm:$0xf]
        %v391 = vld [vmem:[%s279 + $0xc] sm:$0xf]
        %v392 = vld [vmem:[%s279 + $0x10] sm:$0xf]
        %v393 = vld [vmem:[%s279 + $0x14] sm:$0xf]
        %v394 = vld [vmem:[%s279 + $0x18] sm:$0xf]
        %v395 = vld [vmem:[%s279 + $0x1c] sm:$0xf]
        %v396 = vld [vmem:[%s279 + $0x20] sm:$0xf]
        %v397 = vld [vmem:[%s279 + $0x24] sm:$0xf]
        %v398 = vld [vmem:[%s279 + $0x28] sm:$0xf]
        %v399 = vld [vmem:[%s279 + $0x2c] sm:$0xf]
        %v400 = vld [vmem:[%s279 + $0x30] sm:$0xf]
        %v401 = vld [vmem:[%s279 + $0x34] sm:$0xf]
        %v402 = vld [vmem:[%s279 + $0x38] sm:$0xf]
        %v403 = vld [vmem:[%s279 + $0x3c] sm:$0xf]
        %v404 = vld [vmem:[%s279 + $0x40] sm:$0xf]
        %v405 = vld [vmem:[%s279 + $0x44] sm:$0xf]
        %v406 = vld [vmem:[%s279 + $0x48] sm:$0xf]
        %v407 = vld [vmem:[%s279 + $0x4c] sm:$0xf]
        %v408 = vld [vmem:[%s279 + $0x50] sm:$0xf]
        %v409 = vld [vmem:[%s279 + $0x54] sm:$0xf]
        %v410 = vld [vmem:[%s279 + $0x58] sm:$0xf]
        %v411 = vld [vmem:[%s279 + $0x5c] sm:$0xf]
        %v412 = vld [vmem:[%s279 + $0x60] sm:$0xf]
        %v413 = vld [vmem:[%s279 + $0x64] sm:$0xf]
        %v414 = vld [vmem:[%s279 + $0x68] sm:$0xf]
        %v415 = vld [vmem:[%s279 + $0x6c] sm:$0xf]
        %v416 = vld [vmem:[%s279 + $0x70] sm:$0xf]
        %v417 = vld [vmem:[%s279 + $0x74] sm:$0xf]
        %v418 = vld [vmem:[%s279 + $0x78] sm:$0xf]
        %v419 = vld [vmem:[%s279 + $0x7c] sm:$0xf]
        %v452 = vunpack.c.l.b16 %v356
        %v453 = vunpack.c.h.b16 %v356
        %v454 = vunpack.c.l.b16 %v357
        %v455 = vunpack.c.h.b16 %v357
        %v456 = vunpack.c.l.b16 %v358
        %v457 = vunpack.c.h.b16 %v358
        %v458 = vunpack.c.l.b16 %v359
        %v459 = vunpack.c.h.b16 %v359
        %v460 = vunpack.c.l.b16 %v360
        %v461 = vunpack.c.h.b16 %v360
        %v462 = vunpack.c.l.b16 %v361
        %v463 = vunpack.c.h.b16 %v361
        %v464 = vunpack.c.l.b16 %v362
        %v465 = vunpack.c.h.b16 %v362
        %v466 = vunpack.c.l.b16 %v363
        %v467 = vunpack.c.h.b16 %v363
        %v468 = vunpack.c.l.b16 %v364
        %v469 = vunpack.c.h.b16 %v364
        %v470 = vunpack.c.l.b16 %v365
        %v471 = vunpack.c.h.b16 %v365
        %v472 = vunpack.c.l.b16 %v366
        %v473 = vunpack.c.h.b16 %v366
        %v474 = vunpack.c.l.b16 %v367
        %v475 = vunpack.c.h.b16 %v367
        %v476 = vunpack.c.l.b16 %v368
        %v477 = vunpack.c.h.b16 %v368
        %v478 = vunpack.c.l.b16 %v369
        %v479 = vunpack.c.h.b16 %v369
        %v480 = vunpack.c.l.b16 %v370
        %v481 = vunpack.c.h.b16 %v370
        %v482 = vunpack.c.l.b16 %v371
        %v483 = vunpack.c.h.b16 %v371
        %v484 = vunpack.c.l.b16 %v372
        %v485 = vunpack.c.h.b16 %v372
        %v486 = vunpack.c.l.b16 %v373
        %v487 = vunpack.c.h.b16 %v373
        %v488 = vunpack.c.l.b16 %v374
        %v489 = vunpack.c.h.b16 %v374
        %v490 = vunpack.c.l.b16 %v375
        %v491 = vunpack.c.h.b16 %v375
        %v492 = vunpack.c.l.b16 %v376
        %v493 = vunpack.c.h.b16 %v376
        %v494 = vunpack.c.l.b16 %v377
        %v495 = vunpack.c.h.b16 %v377
        %v496 = vunpack.c.l.b16 %v378
        %v497 = vunpack.c.h.b16 %v378
        %v498 = vunpack.c.l.b16 %v379
        %v499 = vunpack.c.h.b16 %v379
        %v500 = vunpack.c.l.b16 %v380
        %v501 = vunpack.c.h.b16 %v380
        %v502 = vunpack.c.l.b16 %v381
        %v503 = vunpack.c.h.b16 %v381
        %v504 = vunpack.c.l.b16 %v382
        %v505 = vunpack.c.h.b16 %v382
        %v506 = vunpack.c.l.b16 %v383
        %v507 = vunpack.c.h.b16 %v383
        %v508 = vunpack.c.l.b16 %v384
        %v509 = vunpack.c.h.b16 %v384
        %v510 = vunpack.c.l.b16 %v385
        %v511 = vunpack.c.h.b16 %v385
        %v512 = vunpack.c.l.b16 %v386
        %v513 = vunpack.c.h.b16 %v386
        %v514 = vunpack.c.l.b16 %v387
        %v515 = vunpack.c.h.b16 %v387
        %v516 = vpack.c.b16 %v454, %v452
        %v517 = vpack.c.b16 %v455, %v453
        %v518 = vpack.c.b16 %v458, %v456
        %v519 = vpack.c.b16 %v459, %v457
        %v520 = vpack.c.b16 %v462, %v460
        %v521 = vpack.c.b16 %v463, %v461
        %v522 = vpack.c.b16 %v466, %v464
        %v523 = vpack.c.b16 %v467, %v465
        %v524 = vpack.c.b16 %v470, %v468
        %v525 = vpack.c.b16 %v471, %v469
        %v526 = vpack.c.b16 %v474, %v472
        %v527 = vpack.c.b16 %v475, %v473
        %v528 = vpack.c.b16 %v478, %v476
        %v529 = vpack.c.b16 %v479, %v477
        %v530 = vpack.c.b16 %v482, %v480
        %v531 = vpack.c.b16 %v483, %v481
        %v532 = vpack.c.b16 %v486, %v484
        %v533 = vpack.c.b16 %v487, %v485
        %v534 = vpack.c.b16 %v490, %v488
        %v535 = vpack.c.b16 %v491, %v489
        %v536 = vpack.c.b16 %v494, %v492
        %v537 = vpack.c.b16 %v495, %v493
        %v538 = vpack.c.b16 %v498, %v496
        %v539 = vpack.c.b16 %v499, %v497
        %v540 = vpack.c.b16 %v502, %v500
        %v541 = vpack.c.b16 %v503, %v501
        %v542 = vpack.c.b16 %v506, %v504
        %v543 = vpack.c.b16 %v507, %v505
        %v544 = vpack.c.b16 %v510, %v508
        %v545 = vpack.c.b16 %v511, %v509
        %v546 = vpack.c.b16 %v514, %v512
        %v547 = vpack.c.b16 %v515, %v513
        %v612 = vunpack.c.l.b16 %v388
        %v613 = vunpack.c.l.b16 %v389
        %v614 = vunpack.c.l.b16 %v390
        %v615 = vunpack.c.l.b16 %v391
        %v616 = vunpack.c.l.b16 %v392
        %v617 = vunpack.c.l.b16 %v393
        %v618 = vunpack.c.l.b16 %v394
        %v619 = vunpack.c.l.b16 %v395
        %v620 = vunpack.c.l.b16 %v396
        %v621 = vunpack.c.l.b16 %v397
        %v622 = vunpack.c.l.b16 %v398
        %v623 = vunpack.c.l.b16 %v399
        %v624 = vunpack.c.l.b16 %v400
        %v625 = vunpack.c.l.b16 %v401
        %v626 = vunpack.c.l.b16 %v402
        %v627 = vunpack.c.l.b16 %v403
        %v628 = vunpack.c.l.b16 %v404
        %v629 = vunpack.c.l.b16 %v405
        %v630 = vunpack.c.l.b16 %v406
        %v631 = vunpack.c.l.b16 %v407
        %v632 = vunpack.c.l.b16 %v408
        %v633 = vunpack.c.l.b16 %v409
        %v634 = vunpack.c.l.b16 %v410
        %v635 = vunpack.c.l.b16 %v411
        %v636 = vunpack.c.l.b16 %v412
        %v637 = vunpack.c.l.b16 %v413
        %v638 = vunpack.c.l.b16 %v414
        %v639 = vunpack.c.l.b16 %v415
        %v640 = vunpack.c.l.b16 %v416
        %v641 = vunpack.c.l.b16 %v417
        %v642 = vunpack.c.l.b16 %v418
        %v643 = vunpack.c.l.b16 %v419
        %v644 = vpack.c.b16 %v613, %v612
        %v645 = vpack.c.b16 %v615, %v614
        %v646 = vpack.c.b16 %v617, %v616
        %v647 = vpack.c.b16 %v619, %v618
        %v648 = vpack.c.b16 %v621, %v620
        %v649 = vpack.c.b16 %v623, %v622
        %v650 = vpack.c.b16 %v625, %v624
        %v651 = vpack.c.b16 %v627, %v626
        %v652 = vpack.c.b16 %v629, %v628
        %v653 = vpack.c.b16 %v631, %v630
        %v654 = vpack.c.b16 %v633, %v632
        %v655 = vpack.c.b16 %v635, %v634
        %v656 = vpack.c.b16 %v637, %v636
        %v657 = vpack.c.b16 %v639, %v638
        %v658 = vpack.c.b16 %v641, %v640
        %v659 = vpack.c.b16 %v643, %v642
        %676 = vmatprep.subr.bf16.mxu0 0
        %677 = vmatpush1.bf16.msra.mxu0 %v644
        %678 = vmatprep.subr.bf16.mxu0 0
        %679 = vmatpush1.bf16.msra.mxu0 %v645
        %680 = vmatprep.subr.bf16.mxu0 0
        %681 = vmatpush1.bf16.msra.mxu0 %v646
        %682 = vmatprep.subr.bf16.mxu0 0
        %683 = vmatpush1.bf16.msra.mxu0 %v647
        %684 = vmatprep.subr.bf16.mxu0 0
        %685 = vmatpush1.bf16.msra.mxu0 %v648
        %686 = vmatprep.subr.bf16.mxu0 0
        %687 = vmatpush1.bf16.msra.mxu0 %v649
        %688 = vmatprep.subr.bf16.mxu0 0
        %689 = vmatpush1.bf16.msra.mxu0 %v650
        %690 = vmatprep.subr.bf16.mxu0 0
        %691 = vmatpush1.bf16.msra.mxu0 %v651
        %692 = vmatprep.subr.bf16.mxu0 0
        %693 = vmatpush1.bf16.msra.mxu0 %v652
        %694 = vmatprep.subr.bf16.mxu0 0
        %695 = vmatpush1.bf16.msra.mxu0 %v653
        %696 = vmatprep.subr.bf16.mxu0 0
        %697 = vmatpush1.bf16.msra.mxu0 %v654
        %698 = vmatprep.subr.bf16.mxu0 0
        %699 = vmatpush1.bf16.msra.mxu0 %v655
        %700 = vmatprep.subr.bf16.mxu0 0
        %701 = vmatpush1.bf16.msra.mxu0 %v656
        %702 = vmatprep.subr.bf16.mxu0 0
        %703 = vmatpush1.bf16.msra.mxu0 %v657
        %704 = vmatprep.subr.bf16.mxu0 0
        %705 = vmatpush1.bf16.msra.mxu0 %v658
        %706 = vmatprep.subr.bf16.mxu0 0
        %707 = vmatpush1.bf16.msra.mxu0 %v659
        %708 = vmatprep.mubr.bf16.mxu0 %v517
        %709 = vmatmul.mubr.bf16.gmra.mrb[0].mxu0 %v516
        %v710 = vpop.f32.mrb[0].mxu0
        %v711 = vadd.f32 0.0, %v710
        %v712 = vpop.f32.mrb[0].mxu0
        %v713 = vpop.f32.mrb[0].mxu0
        %v714 = vadd.f32 0.0, %v713
        %v715 = vpop.f32.mrb[0].mxu0
        %716 = vmatprep.mubr.bf16.mxu0 %v519
        %717 = vmatmul.mubr.bf16.gmra.mrb[0].mxu0 %v518
        %v718 = vpop.f32.mrb[0].mxu0
        %v719 = vadd.f32 0.0, %v718
        %v720 = vpop.f32.mrb[0].mxu0
        %v721 = vpop.f32.mrb[0].mxu0
        %v722 = vadd.f32 0.0, %v721
        %v723 = vpop.f32.mrb[0].mxu0
        %724 = vmatprep.mubr.bf16.mxu0 %v521
        %725 = vmatmul.mubr.bf16.gmra.mrb[0].mxu0 %v520
        %v726 = vpop.f32.mrb[0].mxu0
        %v727 = vadd.f32 0.0, %v726
        %v728 = vpop.f32.mrb[0].mxu0
        %v729 = vpop.f32.mrb[0].mxu0
        %v730 = vadd.f32 0.0, %v729
        %v731 = vpop.f32.mrb[0].mxu0
        %732 = vmatprep.mubr.bf16.mxu0 %v523
        %733 = vmatmul.mubr.bf16.gmra.mrb[0].mxu0 %v522
        %v734 = vpop.f32.mrb[0].mxu0
        %v735 = vadd.f32 0.0, %v734
        %v736 = vpop.f32.mrb[0].mxu0
        %v737 = vpop.f32.mrb[0].mxu0
        %v738 = vadd.f32 0.0, %v737
        %v739 = vpop.f32.mrb[0].mxu0
        %740 = vmatprep.mubr.bf16.mxu0 %v525
        %741 = vmatmul.mubr.bf16.gmra.mrb[0].mxu0 %v524
        %v742 = vpop.f32.mrb[0].mxu0
        %v743 = vadd.f32 0.0, %v742
        %v744 = vpop.f32.mrb[0].mxu0
        %v745 = vpop.f32.mrb[0].mxu0
        %v746 = vadd.f32 0.0, %v745
        %v747 = vpop.f32.mrb[0].mxu0
        %748 = vmatprep.mubr.bf16.mxu0 %v527
        %749 = vmatmul.mubr.bf16.gmra.mrb[0].mxu0 %v526
        %v750 = vpop.f32.mrb[0].mxu0
        %v751 = vadd.f32 0.0, %v750
        %v752 = vpop.f32.mrb[0].mxu0
        %v753 = vpop.f32.mrb[0].mxu0
        %v754 = vadd.f32 0.0, %v753
        %v755 = vpop.f32.mrb[0].mxu0
        %756 = vmatprep.mubr.bf16.mxu0 %v529
        %757 = vmatmul.mubr.bf16.gmra.mrb[0].mxu0 %v528
        %v758 = vpop.f32.mrb[0].mxu0
        %v759 = vadd.f32 0.0, %v758
        %v760 = vpop.f32.mrb[0].mxu0
        %v761 = vpop.f32.mrb[0].mxu0
        %v762 = vadd.f32 0.0, %v761
        %v763 = vpop.f32.mrb[0].mxu0
        %764 = vmatprep.mubr.bf16.mxu0 %v531
        %765 = vmatmul.mubr.bf16.gmra.mrb[0].mxu0 %v530
        %v766 = vpop.f32.mrb[0].mxu0
        %v767 = vadd.f32 0.0, %v766
        %v768 = vpop.f32.mrb[0].mxu0
        %v769 = vpop.f32.mrb[0].mxu0
        %v770 = vadd.f32 0.0, %v769
        %v771 = vpop.f32.mrb[0].mxu0
        %772 = vmatprep.mubr.bf16.mxu0 %v533
        %773 = vmatmul.mubr.bf16.gmra.mrb[0].mxu0 %v532
        %v774 = vpop.f32.mrb[0].mxu0
        %v775 = vadd.f32 0.0, %v774
        %v776 = vpop.f32.mrb[0].mxu0
        %v777 = vpop.f32.mrb[0].mxu0
        %v778 = vadd.f32 0.0, %v777
        %v779 = vpop.f32.mrb[0].mxu0
        %780 = vmatprep.mubr.bf16.mxu0 %v535
        %781 = vmatmul.mubr.bf16.gmra.mrb[0].mxu0 %v534
        %v782 = vpop.f32.mrb[0].mxu0
        %v783 = vadd.f32 0.0, %v782
        %v784 = vpop.f32.mrb[0].mxu0
        %v785 = vpop.f32.mrb[0].mxu0
        %v786 = vadd.f32 0.0, %v785
        %v787 = vpop.f32.mrb[0].mxu0
        %788 = vmatprep.mubr.bf16.mxu0 %v537
        %789 = vmatmul.mubr.bf16.gmra.mrb[0].mxu0 %v536
        %v790 = vpop.f32.mrb[0].mxu0
        %v791 = vadd.f32 0.0, %v790
        %v792 = vpop.f32.mrb[0].mxu0
        %v793 = vpop.f32.mrb[0].mxu0
        %v794 = vadd.f32 0.0, %v793
        %v795 = vpop.f32.mrb[0].mxu0
        %796 = vmatprep.mubr.bf16.mxu0 %v539
        %797 = vmatmul.mubr.bf16.gmra.mrb[0].mxu0 %v538
        %v798 = vpop.f32.mrb[0].mxu0
        %v799 = vadd.f32 0.0, %v798
        %v800 = vpop.f32.mrb[0].mxu0
        %v801 = vpop.f32.mrb[0].mxu0
        %v802 = vadd.f32 0.0, %v801
        %v803 = vpop.f32.mrb[0].mxu0
        %804 = vmatprep.mubr.bf16.mxu0 %v541
        %805 = vmatmul.mubr.bf16.gmra.mrb[0].mxu0 %v540
        %v806 = vpop.f32.mrb[0].mxu0
        %v807 = vadd.f32 0.0, %v806
        %v808 = vpop.f32.mrb[0].mxu0
        %v809 = vpop.f32.mrb[0].mxu0
        %v810 = vadd.f32 0.0, %v809
        %v811 = vpop.f32.mrb[0].mxu0
        %812 = vmatprep.mubr.bf16.mxu0 %v543
        %813 = vmatmul.mubr.bf16.gmra.mrb[0].mxu0 %v542
        %v814 = vpop.f32.mrb[0].mxu0
        %v815 = vadd.f32 0.0, %v814
        %v816 = vpop.f32.mrb[0].mxu0
        %v817 = vpop.f32.mrb[0].mxu0
        %v818 = vadd.f32 0.0, %v817
        %v819 = vpop.f32.mrb[0].mxu0
        %820 = vmatprep.mubr.bf16.mxu0 %v545
        %821 = vmatmul.mubr.bf16.gmra.mrb[0].mxu0 %v544
        %v822 = vpop.f32.mrb[0].mxu0
        %v823 = vadd.f32 0.0, %v822
        %v824 = vpop.f32.mrb[0].mxu0
        %v825 = vpop.f32.mrb[0].mxu0
        %v826 = vadd.f32 0.0, %v825
        %v827 = vpop.f32.mrb[0].mxu0
        %828 = vmatprep.mubr.bf16.mxu0 %v547
        %829 = vmatmul.mubr.bf16.gmra.mrb[0].mxu0 %v546
        %v830 = vpop.f32.mrb[0].mxu0
        %v831 = vadd.f32 0.0, %v830
        %v832 = vpop.f32.mrb[0].mxu0
        %v833 = vpop.f32.mrb[0].mxu0
        %v834 = vadd.f32 0.0, %v833
        %v835 = vpop.f32.mrb[0].mxu0
        %836 = vdwg.mxu0
        %v837 = vadd.f32 %v324, %v711
        %v838 = vadd.f32 %v325, %v714
        %v839 = vadd.f32 %v326, %v719
        %v840 = vadd.f32 %v327, %v722
        %v841 = vadd.f32 %v328, %v727
        %v842 = vadd.f32 %v329, %v730
        %v843 = vadd.f32 %v330, %v735
        %v844 = vadd.f32 %v331, %v738
        %v845 = vadd.f32 %v332, %v743
        %v846 = vadd.f32 %v333, %v746
        %v847 = vadd.f32 %v334, %v751
        %v848 = vadd.f32 %v335, %v754
        %v849 = vadd.f32 %v336, %v759
        %v850 = vadd.f32 %v337, %v762
        %v851 = vadd.f32 %v338, %v767
        %v852 = vadd.f32 %v339, %v770
        %v853 = vadd.f32 %v340, %v775
        %v854 = vadd.f32 %v341, %v778
        %v855 = vadd.f32 %v342, %v783
        %v856 = vadd.f32 %v343, %v786
        %v857 = vadd.f32 %v344, %v791
        %v858 = vadd.f32 %v345, %v794
        %v859 = vadd.f32 %v346, %v799
        %v860 = vadd.f32 %v347, %v802
        %v861 = vadd.f32 %v348, %v807
        %v862 = vadd.f32 %v349, %v810
        %v863 = vadd.f32 %v350, %v815
        %v864 = vadd.f32 %v351, %v818
        %v865 = vadd.f32 %v352, %v823
        %v866 = vadd.f32 %v353, %v826
        %v867 = vadd.f32 %v354, %v831
        %v868 = vadd.f32 %v355, %v834
        %869 = vst [vmem:[#allocation2] sm:$0xff] %v837
        %870 = vst [vmem:[#allocation2 + $0x8] sm:$0xff] %v838
        %871 = vst [vmem:[#allocation2 + $0x10] sm:$0xff] %v839
        %872 = vst [vmem:[#allocation2 + $0x18] sm:$0xff] %v840
        %873 = vst [vmem:[#allocation2 + $0x20] sm:$0xff] %v841
        %874 = vst [vmem:[#allocation2 + $0x28] sm:$0xff] %v842
        %875 = vst [vmem:[#allocation2 + $0x30] sm:$0xff] %v843
        %876 = vst [vmem:[#allocation2 + $0x38] sm:$0xff] %v844
        %877 = vst [vmem:[#allocation2 + $0x40] sm:$0xff] %v845
        %878 = vst [vmem:[#allocation2 + $0x48] sm:$0xff] %v846
        %879 = vst [vmem:[#allocation2 + $0x50] sm:$0xff] %v847
        %880 = vst [vmem:[#allocation2 + $0x58] sm:$0xff] %v848
        %881 = vst [vmem:[#allocation2 + $0x60] sm:$0xff] %v849
        %882 = vst [vmem:[#allocation2 + $0x68] sm:$0xff] %v850
        %883 = vst [vmem:[#allocation2 + $0x70] sm:$0xff] %v851
        %884 = vst [vmem:[#allocation2 + $0x78] sm:$0xff] %v852
        %885 = vst [vmem:[#allocation2 + $0x80] sm:$0xff] %v853
        %886 = vst [vmem:[#allocation2 + $0x88] sm:$0xff] %v854
        %887 = vst [vmem:[#allocation2 + $0x90] sm:$0xff] %v855
        %888 = vst [vmem:[#allocation2 + $0x98] sm:$0xff] %v856
        %889 = vst [vmem:[#allocation2 + $0xa0] sm:$0xff] %v857
        %890 = vst [vmem:[#allocation2 + $0xa8] sm:$0xff] %v858
        %891 = vst [vmem:[#allocation2 + $0xb0] sm:$0xff] %v859
        %892 = vst [vmem:[#allocation2 + $0xb8] sm:$0xff] %v860
        %893 = vst [vmem:[#allocation2 + $0xc0] sm:$0xff] %v861
        %894 = vst [vmem:[#allocation2 + $0xc8] sm:$0xff] %v862
        %895 = vst [vmem:[#allocation2 + $0xd0] sm:$0xff] %v863
        %896 = vst [vmem:[#allocation2 + $0xd8] sm:$0xff] %v864
        %897 = vst [vmem:[#allocation2 + $0xe0] sm:$0xff] %v865
        %898 = vst [vmem:[#allocation2 + $0xe8] sm:$0xff] %v866
        %899 = vst [vmem:[#allocation2 + $0xf0] sm:$0xff] %v867
        %900 = vst [vmem:[#allocation2 + $0xf8] sm:$0xff] %v868
        %p901 = scmp.eq.s32.totalorder %s24, 1
        // Predicated region
        $region53: #{gnnstack_forward.2} parent=35 // pred_check
          %p902 = pneg %p901
        $region54: #{gnnstack_forward.2} parent=35 // pred_check_branch
          %904 = sbr.rel (%p902) target = $region56
        $region55: #{gnnstack_forward.2} parent=35 // pred_region
          %v905 = vld [vmem:[#allocation2] sm:$0xff]
          %v906 = vld [vmem:[#allocation2 + $0x8] sm:$0xff]
          %v907 = vld [vmem:[#allocation2 + $0x10] sm:$0xff]
          %v908 = vld [vmem:[#allocation2 + $0x18] sm:$0xff]
          %v909 = vld [vmem:[#allocation2 + $0x20] sm:$0xff]
          %v910 = vld [vmem:[#allocation2 + $0x28] sm:$0xff]
          %v911 = vld [vmem:[#allocation2 + $0x30] sm:$0xff]
          %v912 = vld [vmem:[#allocation2 + $0x38] sm:$0xff]
          %v913 = vld [vmem:[#allocation2 + $0x40] sm:$0xff]
          %v914 = vld [vmem:[#allocation2 + $0x48] sm:$0xff]
          %v915 = vld [vmem:[#allocation2 + $0x50] sm:$0xff]
          %v916 = vld [vmem:[#allocation2 + $0x58] sm:$0xff]
          %v917 = vld [vmem:[#allocation2 + $0x60] sm:$0xff]
          %v918 = vld [vmem:[#allocation2 + $0x68] sm:$0xff]
          %v919 = vld [vmem:[#allocation2 + $0x70] sm:$0xff]
          %v920 = vld [vmem:[#allocation2 + $0x78] sm:$0xff]
          %v921 = vld [vmem:[#allocation2 + $0x80] sm:$0xff]
          %v922 = vld [vmem:[#allocation2 + $0x88] sm:$0xff]
          %v923 = vld [vmem:[#allocation2 + $0x90] sm:$0xff]
          %v924 = vld [vmem:[#allocation2 + $0x98] sm:$0xff]
          %v925 = vld [vmem:[#allocation2 + $0xa0] sm:$0xff]
          %v926 = vld [vmem:[#allocation2 + $0xa8] sm:$0xff]
          %v927 = vld [vmem:[#allocation2 + $0xb0] sm:$0xff]
          %v928 = vld [vmem:[#allocation2 + $0xb8] sm:$0xff]
          %v929 = vld [vmem:[#allocation2 + $0xc0] sm:$0xff]
          %v930 = vld [vmem:[#allocation2 + $0xc8] sm:$0xff]
          %v931 = vld [vmem:[#allocation2 + $0xd0] sm:$0xff]
          %v932 = vld [vmem:[#allocation2 + $0xd8] sm:$0xff]
          %v933 = vld [vmem:[#allocation2 + $0xe0] sm:$0xff]
          %v934 = vld [vmem:[#allocation2 + $0xe8] sm:$0xff]
          %v935 = vld [vmem:[#allocation2 + $0xf0] sm:$0xff]
          %v936 = vld [vmem:[#allocation2 + $0xf8] sm:$0xff]
          %v937 = vpack.c.bf16 %v906, %v905
          %v938 = vpack.c.bf16 %v908, %v907
          %v939 = vpack.c.bf16 %v910, %v909
          %v940 = vpack.c.bf16 %v912, %v911
          %v941 = vpack.c.bf16 %v914, %v913
          %v942 = vpack.c.bf16 %v916, %v915
          %v943 = vpack.c.bf16 %v918, %v917
          %v944 = vpack.c.bf16 %v920, %v919
          %v945 = vpack.c.bf16 %v922, %v921
          %v946 = vpack.c.bf16 %v924, %v923
          %v947 = vpack.c.bf16 %v926, %v925
          %v948 = vpack.c.bf16 %v928, %v927
          %v949 = vpack.c.bf16 %v930, %v929
          %v950 = vpack.c.bf16 %v932, %v931
          %v951 = vpack.c.bf16 %v934, %v933
          %v952 = vpack.c.bf16 %v936, %v935
          %v953 = vld [vmem:[#allocation5] sm:$0xf]
          %v954 = vld [vmem:[#allocation5 + $0x4] sm:$0xf]
          %v955 = vld [vmem:[#allocation5 + $0x8] sm:$0xf]
          %v956 = vld [vmem:[#allocation5 + $0xc] sm:$0xf]
          %v957 = vld [vmem:[#allocation5 + $0x10] sm:$0xf]
          %v958 = vld [vmem:[#allocation5 + $0x14] sm:$0xf]
          %v959 = vld [vmem:[#allocation5 + $0x18] sm:$0xf]
          %v960 = vld [vmem:[#allocation5 + $0x1c] sm:$0xf]
          %v961 = vld [vmem:[#allocation5 + $0x20] sm:$0xf]
          %v962 = vld [vmem:[#allocation5 + $0x24] sm:$0xf]
          %v963 = vld [vmem:[#allocation5 + $0x28] sm:$0xf]
          %v964 = vld [vmem:[#allocation5 + $0x2c] sm:$0xf]
          %v965 = vld [vmem:[#allocation5 + $0x30] sm:$0xf]
          %v966 = vld [vmem:[#allocation5 + $0x34] sm:$0xf]
          %v967 = vld [vmem:[#allocation5 + $0x38] sm:$0xf]
          %v968 = vld [vmem:[#allocation5 + $0x3c] sm:$0xf]
          %v969 = vld [vmem:[#allocation7] sm:$0x1]
          %v971 = vlaneseq
          %v972 = vshrl.u32 %v971, 7
          %v973 = vsub.s32 0, %v972
          %v974 = vrot.slane %v969, %v973
          %v992 = vunpack.c.l.b16 %v953
          %v993 = vunpack.c.l.b16 %v954
          %v994 = vunpack.c.l.b16 %v955
          %v995 = vunpack.c.l.b16 %v956
          %v996 = vunpack.c.l.b16 %v957
          %v997 = vunpack.c.l.b16 %v958
          %v998 = vunpack.c.l.b16 %v959
          %v999 = vunpack.c.l.b16 %v960
          %v1000 = vunpack.c.l.b16 %v961
          %v1001 = vunpack.c.l.b16 %v962
          %v1002 = vunpack.c.l.b16 %v963
          %v1003 = vunpack.c.l.b16 %v964
          %v1004 = vunpack.c.l.b16 %v965
          %v1005 = vunpack.c.l.b16 %v966
          %v1006 = vunpack.c.l.b16 %v967
          %v1007 = vunpack.c.l.b16 %v968
          %v1008 = vpack.c.b16 %v993, %v992
          %v1009 = vpack.c.b16 %v995, %v994
          %v1010 = vpack.c.b16 %v997, %v996
          %v1011 = vpack.c.b16 %v999, %v998
          %v1012 = vpack.c.b16 %v1001, %v1000
          %v1013 = vpack.c.b16 %v1003, %v1002
          %v1014 = vpack.c.b16 %v1005, %v1004
          %v1015 = vpack.c.b16 %v1007, %v1006
          %1024 = vmatprep.subr.bf16.mxu0 0
          %1025 = vmatpush1.bf16.msra.mxu0 %v1008
          %1026 = vmatprep.subr.bf16.mxu0 0
          %1027 = vmatpush1.bf16.msra.mxu0 %v1009
          %1028 = vmatprep.subr.bf16.mxu0 0
          %1029 = vmatpush1.bf16.msra.mxu0 %v1010
          %1030 = vmatprep.subr.bf16.mxu0 0
          %1031 = vmatpush1.bf16.msra.mxu0 %v1011
          %1032 = vmatprep.subr.bf16.mxu0 0
          %1033 = vmatpush1.bf16.msra.mxu0 %v1012
          %1034 = vmatprep.subr.bf16.mxu0 0
          %1035 = vmatpush1.bf16.msra.mxu0 %v1013
          %1036 = vmatprep.subr.bf16.mxu0 0
          %1037 = vmatpush1.bf16.msra.mxu0 %v1014
          %1038 = vmatprep.subr.bf16.mxu0 0
          %1039 = vmatpush1.bf16.msra.mxu0 %v1015
          %1040 = vmatprep.subr.bf16.mxu0 0
          %1041 = vmatpush1.bf16.msra.mxu0 0
          %1042 = vmatprep.subr.bf16.mxu0 0
          %1043 = vmatpush1.bf16.msra.mxu0 0
          %1044 = vmatprep.subr.bf16.mxu0 0
          %1045 = vmatpush1.bf16.msra.mxu0 0
          %1046 = vmatprep.subr.bf16.mxu0 0
          %1047 = vmatpush1.bf16.msra.mxu0 0
          %1048 = vmatprep.subr.bf16.mxu0 0
          %1049 = vmatpush1.bf16.msra.mxu0 0
          %1050 = vmatprep.subr.bf16.mxu0 0
          %1051 = vmatpush1.bf16.msra.mxu0 0
          %1052 = vmatprep.subr.bf16.mxu0 0
          %1053 = vmatpush1.bf16.msra.mxu0 0
          %1054 = vmatprep.subr.bf16.mxu0 0
          %1055 = vmatpush1.bf16.msra.mxu0 0
          %1056 = vmatprep.mubr.bf16.mxu0 0
          %1057 = vmatmul.mubr.bf16.gmra.mrb[0].mxu0 %v937
          %v1058 = vpop.f32.mrb[0].mxu0
          %v1059 = vadd.f32 %v974, %v1058
          %v1060 = vpop.f32.mrb[0].mxu0
          %v1061 = vpop.f32.mrb[0].mxu0
          %v1062 = vadd.f32 %v974, %v1061
          %v1063 = vpop.f32.mrb[0].mxu0
          %1064 = vmatprep.mubr.bf16.mxu0 0
          %1065 = vmatmul.mubr.bf16.gmra.mrb[0].mxu0 %v938
          %v1066 = vpop.f32.mrb[0].mxu0
          %v1067 = vadd.f32 %v974, %v1066
          %v1068 = vpop.f32.mrb[0].mxu0
          %v1069 = vpop.f32.mrb[0].mxu0
          %v1070 = vadd.f32 %v974, %v1069
          %v1071 = vpop.f32.mrb[0].mxu0
          %1072 = vmatprep.mubr.bf16.mxu0 0
          %1073 = vmatmul.mubr.bf16.gmra.mrb[0].mxu0 %v939
          %v1074 = vpop.f32.mrb[0].mxu0
          %v1075 = vadd.f32 %v974, %v1074
          %v1076 = vpop.f32.mrb[0].mxu0
          %v1077 = vpop.f32.mrb[0].mxu0
          %v1078 = vadd.f32 %v974, %v1077
          %v1079 = vpop.f32.mrb[0].mxu0
          %1080 = vmatprep.mubr.bf16.mxu0 0
          %1081 = vmatmul.mubr.bf16.gmra.mrb[0].mxu0 %v940
          %v1082 = vpop.f32.mrb[0].mxu0
          %v1083 = vadd.f32 %v974, %v1082
          %v1084 = vpop.f32.mrb[0].mxu0
          %v1085 = vpop.f32.mrb[0].mxu0
          %v1086 = vadd.f32 %v974, %v1085
          %v1087 = vpop.f32.mrb[0].mxu0
          %1088 = vmatprep.mubr.bf16.mxu0 0
          %1089 = vmatmul.mubr.bf16.gmra.mrb[0].mxu0 %v941
          %v1090 = vpop.f32.mrb[0].mxu0
          %v1091 = vadd.f32 %v974, %v1090
          %v1092 = vpop.f32.mrb[0].mxu0
          %v1093 = vpop.f32.mrb[0].mxu0
          %v1094 = vadd.f32 %v974, %v1093
          %v1095 = vpop.f32.mrb[0].mxu0
          %1096 = vmatprep.mubr.bf16.mxu0 0
          %1097 = vmatmul.mubr.bf16.gmra.mrb[0].mxu0 %v942
          %v1098 = vpop.f32.mrb[0].mxu0
          %v1099 = vadd.f32 %v974, %v1098
          %v1100 = vpop.f32.mrb[0].mxu0
          %v1101 = vpop.f32.mrb[0].mxu0
          %v1102 = vadd.f32 %v974, %v1101
          %v1103 = vpop.f32.mrb[0].mxu0
          %1104 = vmatprep.mubr.bf16.mxu0 0
          %1105 = vmatmul.mubr.bf16.gmra.mrb[0].mxu0 %v943
          %v1106 = vpop.f32.mrb[0].mxu0
          %v1107 = vadd.f32 %v974, %v1106
          %v1108 = vpop.f32.mrb[0].mxu0
          %v1109 = vpop.f32.mrb[0].mxu0
          %v1110 = vadd.f32 %v974, %v1109
          %v1111 = vpop.f32.mrb[0].mxu0
          %1112 = vmatprep.mubr.bf16.mxu0 0
          %1113 = vmatmul.mubr.bf16.gmra.mrb[0].mxu0 %v944
          %v1114 = vpop.f32.mrb[0].mxu0
          %v1115 = vadd.f32 %v974, %v1114
          %v1116 = vpop.f32.mrb[0].mxu0
          %v1117 = vpop.f32.mrb[0].mxu0
          %v1118 = vadd.f32 %v974, %v1117
          %v1119 = vpop.f32.mrb[0].mxu0
          %1120 = vmatprep.mubr.bf16.mxu0 0
          %1121 = vmatmul.mubr.bf16.gmra.mrb[0].mxu0 %v945
          %v1122 = vpop.f32.mrb[0].mxu0
          %v1123 = vadd.f32 %v974, %v1122
          %v1124 = vpop.f32.mrb[0].mxu0
          %v1125 = vpop.f32.mrb[0].mxu0
          %v1126 = vadd.f32 %v974, %v1125
          %v1127 = vpop.f32.mrb[0].mxu0
          %1128 = vmatprep.mubr.bf16.mxu0 0
          %1129 = vmatmul.mubr.bf16.gmra.mrb[0].mxu0 %v946
          %v1130 = vpop.f32.mrb[0].mxu0
          %v1131 = vadd.f32 %v974, %v1130
          %v1132 = vpop.f32.mrb[0].mxu0
          %v1133 = vpop.f32.mrb[0].mxu0
          %v1134 = vadd.f32 %v974, %v1133
          %v1135 = vpop.f32.mrb[0].mxu0
          %1136 = vmatprep.mubr.bf16.mxu0 0
          %1137 = vmatmul.mubr.bf16.gmra.mrb[0].mxu0 %v947
          %v1138 = vpop.f32.mrb[0].mxu0
          %v1139 = vadd.f32 %v974, %v1138
          %v1140 = vpop.f32.mrb[0].mxu0
          %v1141 = vpop.f32.mrb[0].mxu0
          %v1142 = vadd.f32 %v974, %v1141
          %v1143 = vpop.f32.mrb[0].mxu0
          %1144 = vmatprep.mubr.bf16.mxu0 0
          %1145 = vmatmul.mubr.bf16.gmra.mrb[0].mxu0 %v948
          %v1146 = vpop.f32.mrb[0].mxu0
          %v1147 = vadd.f32 %v974, %v1146
          %v1148 = vpop.f32.mrb[0].mxu0
          %v1149 = vpop.f32.mrb[0].mxu0
          %v1150 = vadd.f32 %v974, %v1149
          %v1151 = vpop.f32.mrb[0].mxu0
          %1152 = vmatprep.mubr.bf16.mxu0 0
          %1153 = vmatmul.mubr.bf16.gmra.mrb[0].mxu0 %v949
          %v1154 = vpop.f32.mrb[0].mxu0
          %v1155 = vadd.f32 %v974, %v1154
          %v1156 = vpop.f32.mrb[0].mxu0
          %v1157 = vpop.f32.mrb[0].mxu0
          %v1158 = vadd.f32 %v974, %v1157
          %v1159 = vpop.f32.mrb[0].mxu0
          %1160 = vmatprep.mubr.bf16.mxu0 0
          %1161 = vmatmul.mubr.bf16.gmra.mrb[0].mxu0 %v950
          %v1162 = vpop.f32.mrb[0].mxu0
          %v1163 = vadd.f32 %v974, %v1162
          %v1164 = vpop.f32.mrb[0].mxu0
          %v1165 = vpop.f32.mrb[0].mxu0
          %v1166 = vadd.f32 %v974, %v1165
          %v1167 = vpop.f32.mrb[0].mxu0
          %1168 = vmatprep.mubr.bf16.mxu0 0
          %1169 = vmatmul.mubr.bf16.gmra.mrb[0].mxu0 %v951
          %v1170 = vpop.f32.mrb[0].mxu0
          %v1171 = vadd.f32 %v974, %v1170
          %v1172 = vpop.f32.mrb[0].mxu0
          %v1173 = vpop.f32.mrb[0].mxu0
          %v1174 = vadd.f32 %v974, %v1173
          %v1175 = vpop.f32.mrb[0].mxu0
          %1176 = vmatprep.mubr.bf16.mxu0 0
          %1177 = vmatmul.mubr.bf16.gmra.mrb[0].mxu0 %v952
          %v1178 = vpop.f32.mrb[0].mxu0
          %v1179 = vadd.f32 %v974, %v1178
          %v1180 = vpop.f32.mrb[0].mxu0
          %v1181 = vpop.f32.mrb[0].mxu0
          %v1182 = vadd.f32 %v974, %v1181
          %v1183 = vpop.f32.mrb[0].mxu0
          %1184 = vdwg.mxu0
          %v1185 = vmax.f32 %v1059, 0.0
          %v1186 = vmax.f32 %v1062, 0.0
          %v1187 = vmax.f32 %v1067, 0.0
          %v1188 = vmax.f32 %v1070, 0.0
          %v1189 = vmax.f32 %v1075, 0.0
          %v1190 = vmax.f32 %v1078, 0.0
          %v1191 = vmax.f32 %v1083, 0.0
          %v1192 = vmax.f32 %v1086, 0.0
          %v1193 = vmax.f32 %v1091, 0.0
          %v1194 = vmax.f32 %v1094, 0.0
          %v1195 = vmax.f32 %v1099, 0.0
          %v1196 = vmax.f32 %v1102, 0.0
          %v1197 = vmax.f32 %v1107, 0.0
          %v1198 = vmax.f32 %v1110, 0.0
          %v1199 = vmax.f32 %v1115, 0.0
          %v1200 = vmax.f32 %v1118, 0.0
          %v1201 = vmax.f32 %v1123, 0.0
          %v1202 = vmax.f32 %v1126, 0.0
          %v1203 = vmax.f32 %v1131, 0.0
          %v1204 = vmax.f32 %v1134, 0.0
          %v1205 = vmax.f32 %v1139, 0.0
          %v1206 = vmax.f32 %v1142, 0.0
          %v1207 = vmax.f32 %v1147, 0.0
          %v1208 = vmax.f32 %v1150, 0.0
          %v1209 = vmax.f32 %v1155, 0.0
          %v1210 = vmax.f32 %v1158, 0.0
          %v1211 = vmax.f32 %v1163, 0.0
          %v1212 = vmax.f32 %v1166, 0.0
          %v1213 = vmax.f32 %v1171, 0.0
          %v1214 = vmax.f32 %v1174, 0.0
          %v1215 = vmax.f32 %v1179, 0.0
          %v1216 = vmax.f32 %v1182, 0.0
          %v1217 = vpack.c.bf16 %v1186, %v1185
          %v1218 = vpack.c.bf16 %v1188, %v1187
          %v1219 = vpack.c.bf16 %v1190, %v1189
          %v1220 = vpack.c.bf16 %v1192, %v1191
          %v1221 = vpack.c.bf16 %v1194, %v1193
          %v1222 = vpack.c.bf16 %v1196, %v1195
          %v1223 = vpack.c.bf16 %v1198, %v1197
          %v1224 = vpack.c.bf16 %v1200, %v1199
          %v1225 = vpack.c.bf16 %v1202, %v1201
          %v1226 = vpack.c.bf16 %v1204, %v1203
          %v1227 = vpack.c.bf16 %v1206, %v1205
          %v1228 = vpack.c.bf16 %v1208, %v1207
          %v1229 = vpack.c.bf16 %v1210, %v1209
          %v1230 = vpack.c.bf16 %v1212, %v1211
          %v1231 = vpack.c.bf16 %v1214, %v1213
          %v1232 = vpack.c.bf16 %v1216, %v1215
          %v1249 = vunpack.c.l.b16 %v1217
          %v1250 = vunpack.c.h.b16 %v1217
          %v1251 = vunpack.c.l.b16 %v1218
          %v1252 = vunpack.c.h.b16 %v1218
          %v1253 = vunpack.c.l.b16 %v1219
          %v1254 = vunpack.c.h.b16 %v1219
          %v1255 = vunpack.c.l.b16 %v1220
          %v1256 = vunpack.c.h.b16 %v1220
          %v1257 = vunpack.c.l.b16 %v1221
          %v1258 = vunpack.c.h.b16 %v1221
          %v1259 = vunpack.c.l.b16 %v1222
          %v1260 = vunpack.c.h.b16 %v1222
          %v1261 = vunpack.c.l.b16 %v1223
          %v1262 = vunpack.c.h.b16 %v1223
          %v1263 = vunpack.c.l.b16 %v1224
          %v1264 = vunpack.c.h.b16 %v1224
          %v1265 = vunpack.c.l.b16 %v1225
          %v1266 = vunpack.c.h.b16 %v1225
          %v1267 = vunpack.c.l.b16 %v1226
          %v1268 = vunpack.c.h.b16 %v1226
          %v1269 = vunpack.c.l.b16 %v1227
          %v1270 = vunpack.c.h.b16 %v1227
          %v1271 = vunpack.c.l.b16 %v1228
          %v1272 = vunpack.c.h.b16 %v1228
          %v1273 = vunpack.c.l.b16 %v1229
          %v1274 = vunpack.c.h.b16 %v1229
          %v1275 = vunpack.c.l.b16 %v1230
          %v1276 = vunpack.c.h.b16 %v1230
          %v1277 = vunpack.c.l.b16 %v1231
          %v1278 = vunpack.c.h.b16 %v1231
          %v1279 = vunpack.c.l.b16 %v1232
          %v1280 = vunpack.c.h.b16 %v1232
          %v1281 = vpack.c.b16 %v1249, %v1249
          %v1282 = vpack.c.b16 %v1250, %v1250
          %v1283 = vpack.c.b16 %v1251, %v1251
          %v1284 = vpack.c.b16 %v1252, %v1252
          %v1285 = vpack.c.b16 %v1253, %v1253
          %v1286 = vpack.c.b16 %v1254, %v1254
          %v1287 = vpack.c.b16 %v1255, %v1255
          %v1288 = vpack.c.b16 %v1256, %v1256
          %v1289 = vpack.c.b16 %v1257, %v1257
          %v1290 = vpack.c.b16 %v1258, %v1258
          %v1291 = vpack.c.b16 %v1259, %v1259
          %v1292 = vpack.c.b16 %v1260, %v1260
          %v1293 = vpack.c.b16 %v1261, %v1261
          %v1294 = vpack.c.b16 %v1262, %v1262
          %v1295 = vpack.c.b16 %v1263, %v1263
          %v1296 = vpack.c.b16 %v1264, %v1264
          %v1297 = vpack.c.b16 %v1265, %v1265
          %v1298 = vpack.c.b16 %v1266, %v1266
          %v1299 = vpack.c.b16 %v1267, %v1267
          %v1300 = vpack.c.b16 %v1268, %v1268
          %v1301 = vpack.c.b16 %v1269, %v1269
          %v1302 = vpack.c.b16 %v1270, %v1270
          %v1303 = vpack.c.b16 %v1271, %v1271
          %v1304 = vpack.c.b16 %v1272, %v1272
          %v1305 = vpack.c.b16 %v1273, %v1273
          %v1306 = vpack.c.b16 %v1274, %v1274
          %v1307 = vpack.c.b16 %v1275, %v1275
          %v1308 = vpack.c.b16 %v1276, %v1276
          %v1309 = vpack.c.b16 %v1277, %v1277
          %v1310 = vpack.c.b16 %v1278, %v1278
          %v1311 = vpack.c.b16 %v1279, %v1279
          %v1312 = vpack.c.b16 %v1280, %v1280
          %1345 = vst [vmem:[%s285] sm:$0xf] %v1281
          %1346 = vst [vmem:[%s285 + $0x4] sm:$0xf] %v1282
          %1347 = vst [vmem:[%s285 + $0x8] sm:$0xf] %v1283
          %1348 = vst [vmem:[%s285 + $0xc] sm:$0xf] %v1284
          %1349 = vst [vmem:[%s285 + $0x10] sm:$0xf] %v1285
          %1350 = vst [vmem:[%s285 + $0x14] sm:$0xf] %v1286
          %1351 = vst [vmem:[%s285 + $0x18] sm:$0xf] %v1287
          %1352 = vst [vmem:[%s285 + $0x1c] sm:$0xf] %v1288
          %1353 = vst [vmem:[%s285 + $0x20] sm:$0xf] %v1289
          %1354 = vst [vmem:[%s285 + $0x24] sm:$0xf] %v1290
          %1355 = vst [vmem:[%s285 + $0x28] sm:$0xf] %v1291
          %1356 = vst [vmem:[%s285 + $0x2c] sm:$0xf] %v1292
          %1357 = vst [vmem:[%s285 + $0x30] sm:$0xf] %v1293
          %1358 = vst [vmem:[%s285 + $0x34] sm:$0xf] %v1294
          %1359 = vst [vmem:[%s285 + $0x38] sm:$0xf] %v1295
          %1360 = vst [vmem:[%s285 + $0x3c] sm:$0xf] %v1296
          %1361 = vst [vmem:[%s285 + $0x40] sm:$0xf] %v1297
          %1362 = vst [vmem:[%s285 + $0x44] sm:$0xf] %v1298
          %1363 = vst [vmem:[%s285 + $0x48] sm:$0xf] %v1299
          %1364 = vst [vmem:[%s285 + $0x4c] sm:$0xf] %v1300
          %1365 = vst [vmem:[%s285 + $0x50] sm:$0xf] %v1301
          %1366 = vst [vmem:[%s285 + $0x54] sm:$0xf] %v1302
          %1367 = vst [vmem:[%s285 + $0x58] sm:$0xf] %v1303
          %1368 = vst [vmem:[%s285 + $0x5c] sm:$0xf] %v1304
          %1369 = vst [vmem:[%s285 + $0x60] sm:$0xf] %v1305
          %1370 = vst [vmem:[%s285 + $0x64] sm:$0xf] %v1306
          %1371 = vst [vmem:[%s285 + $0x68] sm:$0xf] %v1307
          %1372 = vst [vmem:[%s285 + $0x6c] sm:$0xf] %v1308
          %1373 = vst [vmem:[%s285 + $0x70] sm:$0xf] %v1309
          %1374 = vst [vmem:[%s285 + $0x74] sm:$0xf] %v1310
          %1375 = vst [vmem:[%s285 + $0x78] sm:$0xf] %v1311
          %1376 = vst [vmem:[%s285 + $0x7c] sm:$0xf] %v1312
        $region56: #{gnnstack_forward.2} parent=35 // pred_fallthru
          _
        %s1377 = smul.u32 32, %s23
        %p1378 = scmp.lt.s32.totalorder %s1377, 63
        %s1379 = scalar_select %p1378, %s1377, 63
        %s1380 = smul.addr %s1379, 4
        %s1381 = scalar_lea.vmem %s4, %s1380
        // Predicated region
        $region57: #{gnnstack_forward.2} parent=35 // pred_check
          %p1382 = pneg %p145
        $region58: #{gnnstack_forward.2} parent=35 // pred_check_branch
          %1384 = sbr.rel (%p1382) target = $region60
        $region59: #{gnnstack_forward.2} parent=35 // pred_region
          %s1385 = smul.u32 32, %s23
        $region60: #{gnnstack_forward.2} parent=35 // pred_fallthru
          _
      $region36: #{gnnstack_forward.2} parent=5 // pred_fallthru
        _
      %p1386 = scmp.le.s32.totalorder 2, %s14
      // Predicated region
      $region61: #{gnnstack_forward.2} parent=5 // pred_check
        %p1387 = pneg %p1386
      $region62: #{gnnstack_forward.2} parent=5 // pred_check_branch
        %1389 = sbr.rel (%p1387) target = $region64
      $region63: #{gnnstack_forward.2} parent=5 // pred_region
        %s1390 = ssub.s32 %s14, 2
        // Predicated region
        $region65: #{gnnstack_forward.2} parent=63 // pred_check
          %p1391 = pneg %p151
        $region66: #{gnnstack_forward.2} parent=63 // pred_check_branch
          %1393 = sbr.rel (%p1391) target = $region68
        $region67: #{gnnstack_forward.2} parent=63 // pred_region
          %s1394 = smul.u32 32, %s25
          %p1395 = scmp.lt.s32.totalorder %s1394, 63
          %s1396 = scalar_select %p1395, %s1394, 63
          %s1397 = smul.addr %s1396, 4
          %s1398 = scalar_lea.vmem %s4, %s1397
        $region68: #{gnnstack_forward.2} parent=63 // pred_fallthru
          _
      $region64: #{gnnstack_forward.2} parent=5 // pred_fallthru
        _
    $region6: #{gnnstack_forward.2} parent=1 // loop_footer
      %s18 = sadd.s32 1, %s14
    $region7: #{gnnstack_forward.2} parent=1 // loop_footer_branch
      %13 = sbr.rel target = $region3
    $region8: #{gnnstack_forward.2} parent=1 // loop_exit
      _
    %1399 = vsyncpa [#allocation4], 1
    %s1400 = scalar_lea.sflag [#allocation4], 1
    %1401 = vsyncpa %s1400, 1
    %1402 = vsyncpa [#allocation6], 1

// kernel: gnnstack_forward.3
$region0: #{gnnstack_forward.3}
  #allocation0 [shape = 'u32[]', space=smem, size = 0x4, offset = 0x4, fixed_abs, tag = 'smem constant byte address 0x4 - core index']
  #allocation1 [shape = 'u32[144,128]{1,0:T(1,128)}', space=vmem, size = 0x12000, scoped, tag = 'internal scratch']
  #allocation2 [shape = 'f32[256,128]{1,0:T(8,128)}', space=vmem, size = 0x20000, scoped, tag = 'scratch operand']
  %s0 = inlined_call_operand.vmem [shape: bf16[512,512], index: 0, kind: input, shape index: {}]
  %s1 = inlined_call_operand.vmem [shape: bf16[512,128], index: 1, kind: input, shape index: {}]
  %s2 = inlined_call_operand.vmem [shape: bf16[128,128], index: 2, kind: input, shape index: {}]
  %s3 = inlined_call_operand.vmem [shape: f32[1,128], index: 3, kind: input, shape index: {}]
  %s4 = inlined_call_operand.vmem [shape: bf16[128,128], index: 4, kind: input, shape index: {}]
  %s5 = inlined_call_operand.vmem [shape: f32[1,128], index: 5, kind: input, shape index: {}]
  %s6 = inlined_call_operand.vmem [shape: bf16[128,128], index: 6, kind: input, shape index: {}]
  %s7 = inlined_call_operand.vmem [shape: f32[1,128], index: 7, kind: input, shape index: {}]
  %s8 = inlined_call_operand.vmem [shape: f32[512,128], index: 8, kind: output, shape index: {}]
  %s9 = sld [smem:[#allocation0]]
  $region111: #{gnnstack_forward.3} parent=0
    _
  %s11 = ssub.s32 1, %s9
  %s12 = scalar_select 0, %s11, %s9
  $region1: #{gnnstack_forward.3} parent=0
    #allocation3 [shape = 'u8[262144]{0}', space=vmem, size = 0x40000, scoped, tag = 'input window, operand 0']
    loop: start=0, step=1, limit=6
    $region2: #{gnnstack_forward.3} parent=1 // loop_pre_header
      _
    $region3: #{gnnstack_forward.3} parent=1 // loop_header
      %s14 = sphi 0, %s18
      %p15 = scmp.ge.s32.totalorder %s14, 6
      %s21 = sphi 0, %s33
      %s22 = sphi 0, %s29
      %s23 = sphi 0, %s21
      %s24 = sphi 0, %s22
      %s25 = sphi 0, %s23
      %s26 = sphi 0, %s24
      %s38 = sphi 0, %s40
      %s41 = sphi 0, %s38
      %s42 = sphi 0, %s41
      %s58 = sphi 0, %s42
      %s64 = sphi 0, %s66
      %s67 = sphi 0, %s64
      %s68 = sphi 0, %s67
      %s84 = sphi 0, %s68
      %s88 = sphi 0, %s88
      %s90 = sphi 0, %s88
      %s91 = sphi 0, %s90
      %s105 = sphi 0, %s91
      %s109 = sphi 0, %s109
      %s111 = sphi 0, %s109
      %s112 = sphi 0, %s111
      %s126 = sphi 0, %s112
      %s130 = sphi 0, %s130
      %s132 = sphi 0, %s130
      %s133 = sphi 0, %s132
      %s147 = sphi 0, %s133
      %s151 = sphi 0, %s151
      %s153 = sphi 0, %s151
      %s154 = sphi 0, %s153
      %s168 = sphi 0, %s154
      %s172 = sphi 0, %s172
      %s174 = sphi 0, %s172
      %s175 = sphi 0, %s174
      %s189 = sphi 0, %s175
      %s193 = sphi 0, %s193
      %s195 = sphi 0, %s193
      %s196 = sphi 0, %s195
      %s210 = sphi 0, %s196
      %s216 = sphi 0, %s218
      %s219 = sphi 0, %s216
      %s220 = sphi 0, %s219
      %s236 = sphi 0, %s220
    $region4: #{gnnstack_forward.3} parent=1 // loop_header_branch
      %17 = sbr.rel (%p15) target = $region8
    $region5: #{gnnstack_forward.3} parent=1 // loop_body
      %s19 = ssub.s32 %s14, 1
      %s20 = ssub.s32 %s14, 2
      %s27 = sadd.s32 1, %s22
      %p28 = scmp.ge.s32.totalorder %s27, 2
      %s29 = scalar_select %p28, 0, %s27
      %s30 = sadd.s32 1, %s21
      %s31 = scalar_select %p28, %s30, %s21
      %p32 = scmp.ge.s32.totalorder %s31, 2
      %s33 = scalar_select %p32, 0, %s31
      %s34 = ssub.s32 %s21, %s33
      %s35 = ssub.s32 %s22, %s29
      %s36 = sor.u32 %s34, %s35
      %p37 = scmp.eq.s32.totalorder %s36, 0
      %s39 = sadd.s32 %s38, 1
      %s40 = scalar_select %p37, %s38, %s39
      %p43 = pneg %p37
      %p44 = scmp.eq.s32.totalorder %s14, 3
      %p45 = por %p43, %p44
      %p46 = scmp.ne.s32.totalorder %s38, %s41
      %p47 = scmp.eq.s32.totalorder %s14, 0
      %p48 = por %p46, %p47
      %p49 = scmp.ne.s32.totalorder %s38, %s41
      %p50 = scmp.eq.s32.totalorder %s19, 3
      %p51 = por %p49, %p50
      %p52 = scmp.ne.s32.totalorder %s41, %s42
      %p53 = scmp.eq.s32.totalorder %s19, 0
      %p54 = por %p52, %p53
      %p55 = scmp.ne.s32.totalorder %s41, %s42
      %p56 = scmp.eq.s32.totalorder %s20, 3
      %p57 = por %p55, %p56
      %p59 = scmp.ne.s32.totalorder %s42, %s58
      %p60 = scmp.eq.s32.totalorder %s20, 0
      %p61 = por %p59, %p60
      %s62 = ssub.s32 %s22, %s29
      %p63 = scmp.eq.s32.totalorder %s62, 0
      %s65 = sadd.s32 %s64, 1
      %s66 = scalar_select %p63, %s64, %s65
      %p69 = pneg %p63
      %p70 = scmp.eq.s32.totalorder %s14, 3
      %p71 = por %p69, %p70
      %p72 = scmp.ne.s32.totalorder %s64, %s67
      %p73 = scmp.eq.s32.totalorder %s14, 0
      %p74 = por %p72, %p73
      %p75 = scmp.ne.s32.totalorder %s64, %s67
      %p76 = scmp.eq.s32.totalorder %s19, 3
      %p77 = por %p75, %p76
      %p78 = scmp.ne.s32.totalorder %s67, %s68
      %p79 = scmp.eq.s32.totalorder %s19, 0
      %p80 = por %p78, %p79
      %p81 = scmp.ne.s32.totalorder %s67, %s68
      %p82 = scmp.eq.s32.totalorder %s20, 3
      %p83 = por %p81, %p82
      %p85 = scmp.ne.s32.totalorder %s68, %s84
      %p86 = scmp.eq.s32.totalorder %s20, 0
      %p87 = por %p85, %p86
      %s89 = sadd.s32 %s88, 1
      %p92 = scmp.eq.s32.totalorder %s14, 3
      %p93 = scmp.ne.s32.totalorder %s88, %s90
      %p94 = scmp.eq.s32.totalorder %s14, 0
      %p95 = por %p93, %p94
      %p96 = scmp.ne.s32.totalorder %s88, %s90
      %p97 = scmp.eq.s32.totalorder %s19, 3
      %p98 = por %p96, %p97
      %p99 = scmp.ne.s32.totalorder %s90, %s91
      %p100 = scmp.eq.s32.totalorder %s19, 0
      %p101 = por %p99, %p100
      %p102 = scmp.ne.s32.totalorder %s90, %s91
      %p103 = scmp.eq.s32.totalorder %s20, 3
      %p104 = por %p102, %p103
      %p106 = scmp.ne.s32.totalorder %s91, %s105
      %p107 = scmp.eq.s32.totalorder %s20, 0
      %p108 = por %p106, %p107
      %s110 = sadd.s32 %s109, 1
      %p113 = scmp.eq.s32.totalorder %s14, 3
      %p114 = scmp.ne.s32.totalorder %s109, %s111
      %p115 = scmp.eq.s32.totalorder %s14, 0
      %p116 = por %p114, %p115
      %p117 = scmp.ne.s32.totalorder %s109, %s111
      %p118 = scmp.eq.s32.totalorder %s19, 3
      %p119 = por %p117, %p118
      %p120 = scmp.ne.s32.totalorder %s111, %s112
      %p121 = scmp.eq.s32.totalorder %s19, 0
      %p122 = por %p120, %p121
      %p123 = scmp.ne.s32.totalorder %s111, %s112
      %p124 = scmp.eq.s32.totalorder %s20, 3
      %p125 = por %p123, %p124
      %p127 = scmp.ne.s32.totalorder %s112, %s126
      %p128 = scmp.eq.s32.totalorder %s20, 0
      %p129 = por %p127, %p128
      %s131 = sadd.s32 %s130, 1
      %p134 = scmp.eq.s32.totalorder %s14, 3
      %p135 = scmp.ne.s32.totalorder %s130, %s132
      %p136 = scmp.eq.s32.totalorder %s14, 0
      %p137 = por %p135, %p136
      %p138 = scmp.ne.s32.totalorder %s130, %s132
      %p139 = scmp.eq.s32.totalorder %s19, 3
      %p140 = por %p138, %p139
      %p141 = scmp.ne.s32.totalorder %s132, %s133
      %p142 = scmp.eq.s32.totalorder %s19, 0
      %p143 = por %p141, %p142
      %p144 = scmp.ne.s32.totalorder %s132, %s133
      %p145 = scmp.eq.s32.totalorder %s20, 3
      %p146 = por %p144, %p145
      %p148 = scmp.ne.s32.totalorder %s133, %s147
      %p149 = scmp.eq.s32.totalorder %s20, 0
      %p150 = por %p148, %p149
      %s152 = sadd.s32 %s151, 1
      %p155 = scmp.eq.s32.totalorder %s14, 3
      %p156 = scmp.ne.s32.totalorder %s151, %s153
      %p157 = scmp.eq.s32.totalorder %s14, 0
      %p158 = por %p156, %p157
      %p159 = scmp.ne.s32.totalorder %s151, %s153
      %p160 = scmp.eq.s32.totalorder %s19, 3
      %p161 = por %p159, %p160
      %p162 = scmp.ne.s32.totalorder %s153, %s154
      %p163 = scmp.eq.s32.totalorder %s19, 0
      %p164 = por %p162, %p163
      %p165 = scmp.ne.s32.totalorder %s153, %s154
      %p166 = scmp.eq.s32.totalorder %s20, 3
      %p167 = por %p165, %p166
      %p169 = scmp.ne.s32.totalorder %s154, %s168
      %p170 = scmp.eq.s32.totalorder %s20, 0
      %p171 = por %p169, %p170
      %s173 = sadd.s32 %s172, 1
      %p176 = scmp.eq.s32.totalorder %s14, 3
      %p177 = scmp.ne.s32.totalorder %s172, %s174
      %p178 = scmp.eq.s32.totalorder %s14, 0
      %p179 = por %p177, %p178
      %p180 = scmp.ne.s32.totalorder %s172, %s174
      %p181 = scmp.eq.s32.totalorder %s19, 3
      %p182 = por %p180, %p181
      %p183 = scmp.ne.s32.totalorder %s174, %s175
      %p184 = scmp.eq.s32.totalorder %s19, 0
      %p185 = por %p183, %p184
      %p186 = scmp.ne.s32.totalorder %s174, %s175
      %p187 = scmp.eq.s32.totalorder %s20, 3
      %p188 = por %p186, %p187
      %p190 = scmp.ne.s32.totalorder %s175, %s189
      %p191 = scmp.eq.s32.totalorder %s20, 0
      %p192 = por %p190, %p191
      %s194 = sadd.s32 %s193, 1
      %p197 = scmp.eq.s32.totalorder %s14, 3
      %p198 = scmp.ne.s32.totalorder %s193, %s195
      %p199 = scmp.eq.s32.totalorder %s14, 0
      %p200 = por %p198, %p199
      %p201 = scmp.ne.s32.totalorder %s193, %s195
      %p202 = scmp.eq.s32.totalorder %s19, 3
      %p203 = por %p201, %p202
      %p204 = scmp.ne.s32.totalorder %s195, %s196
      %p205 = scmp.eq.s32.totalorder %s19, 0
      %p206 = por %p204, %p205
      %p207 = scmp.ne.s32.totalorder %s195, %s196
      %p208 = scmp.eq.s32.totalorder %s20, 3
      %p209 = por %p207, %p208
      %p211 = scmp.ne.s32.totalorder %s196, %s210
      %p212 = scmp.eq.s32.totalorder %s20, 0
      %p213 = por %p211, %p212
      %s214 = ssub.s32 %s21, %s33
      %p215 = scmp.eq.s32.totalorder %s214, 0
      %s217 = sadd.s32 %s216, 1
      %s218 = scalar_select %p215, %s216, %s217
      %p221 = pneg %p215
      %p222 = scmp.eq.s32.totalorder %s14, 3
      %p223 = por %p221, %p222
      %p224 = scmp.ne.s32.totalorder %s216, %s219
      %p225 = scmp.eq.s32.totalorder %s14, 0
      %p226 = por %p224, %p225
      %p227 = scmp.ne.s32.totalorder %s216, %s219
      %p228 = scmp.eq.s32.totalorder %s19, 3
      %p229 = por %p227, %p228
      %p230 = scmp.ne.s32.totalorder %s219, %s220
      %p231 = scmp.eq.s32.totalorder %s19, 0
      %p232 = por %p230, %p231
      %p233 = scmp.ne.s32.totalorder %s219, %s220
      %p234 = scmp.eq.s32.totalorder %s20, 3
      %p235 = por %p233, %p234
      %p237 = scmp.ne.s32.totalorder %s220, %s236
      %p238 = scmp.eq.s32.totalorder %s20, 0
      %p239 = por %p237, %p238
      %p240 = scmp.le.s32.totalorder 1, %s14
      %p241 = scmp.lt.s32.totalorder %s14, 5
      %p242 = pnand %p240, %p241
      %p243 = pneg %p242
      // Predicated region
      $region9: #{gnnstack_forward.3} parent=5 // pred_check
        _
      $region10: #{gnnstack_forward.3} parent=5 // pred_check_branch
        %245 = sbr.rel (%p242) target = $region12
      $region11: #{gnnstack_forward.3} parent=5 // pred_region
        %s246 = ssub.s32 %s14, 1
        // Predicated region
        $region13: #{gnnstack_forward.3} parent=11 // pred_check
          %p247 = pneg %p101
        $region14: #{gnnstack_forward.3} parent=11 // pred_check_branch
          %249 = sbr.rel (%p247) target = $region16
        $region15: #{gnnstack_forward.3} parent=11 // pred_region
          _
        $region16: #{gnnstack_forward.3} parent=11 // pred_fallthru
          _
        // Predicated region
        $region17: #{gnnstack_forward.3} parent=11 // pred_check
          %p250 = pneg %p122
        $region18: #{gnnstack_forward.3} parent=11 // pred_check_branch
          %252 = sbr.rel (%p250) target = $region20
        $region19: #{gnnstack_forward.3} parent=11 // pred_region
          _
        $region20: #{gnnstack_forward.3} parent=11 // pred_fallthru
          _
        // Predicated region
        $region21: #{gnnstack_forward.3} parent=11 // pred_check
          %p253 = pneg %p143
        $region22: #{gnnstack_forward.3} parent=11 // pred_check_branch
          %255 = sbr.rel (%p253) target = $region24
        $region23: #{gnnstack_forward.3} parent=11 // pred_region
          _
        $region24: #{gnnstack_forward.3} parent=11 // pred_fallthru
          _
        // Predicated region
        $region25: #{gnnstack_forward.3} parent=11 // pred_check
          %p256 = pneg %p164
        $region26: #{gnnstack_forward.3} parent=11 // pred_check_branch
          %258 = sbr.rel (%p256) target = $region28
        $region27: #{gnnstack_forward.3} parent=11 // pred_region
          _
        $region28: #{gnnstack_forward.3} parent=11 // pred_fallthru
          _
        // Predicated region
        $region29: #{gnnstack_forward.3} parent=11 // pred_check
          %p259 = pneg %p185
        $region30: #{gnnstack_forward.3} parent=11 // pred_check_branch
          %261 = sbr.rel (%p259) target = $region32
        $region31: #{gnnstack_forward.3} parent=11 // pred_region
          _
        $region32: #{gnnstack_forward.3} parent=11 // pred_fallthru
          _
        // Predicated region
        $region33: #{gnnstack_forward.3} parent=11 // pred_check
          %p262 = pneg %p206
        $region34: #{gnnstack_forward.3} parent=11 // pred_check_branch
          %264 = sbr.rel (%p262) target = $region36
        $region35: #{gnnstack_forward.3} parent=11 // pred_region
          _
        $region36: #{gnnstack_forward.3} parent=11 // pred_fallthru
          _
      $region12: #{gnnstack_forward.3} parent=5 // pred_fallthru
        _
      %p265 = scmp.lt.s32.totalorder %s14, 4
      // Predicated region
      $region37: #{gnnstack_forward.3} parent=5 // pred_check
        %p266 = pneg %p265
      $region38: #{gnnstack_forward.3} parent=5 // pred_check_branch
        %268 = sbr.rel (%p266) target = $region40
      $region39: #{gnnstack_forward.3} parent=5 // pred_region
        // Predicated region
        $region41: #{gnnstack_forward.3} parent=39 // pred_check
          %p269 = pneg %p48
        $region42: #{gnnstack_forward.3} parent=39 // pred_check_branch
          %271 = sbr.rel (%p269) target = $region44
        $region43: #{gnnstack_forward.3} parent=39 // pred_region
          %s272 = sand.u32 %s38, 1
          %s273 = sand.u32 %s38, 1
          %s274 = smul.addr %s273, 256
          %s275 = scalar_lea.vmem [#allocation3], %s274
          %s276 = smul.u32 32, %s21
          %s277 = smul.u32 2, %s22
          %s278 = smul.addr %s276, 4
          %s279 = sadd.s32 %s277, %s278
          %s280 = smul.addr %s279, 4
          %s281 = scalar_lea.vmem %s0, %s280
          // Predicated region
          $region45: #{gnnstack_forward.3} parent=43 // pred_check
            _
          $region46: #{gnnstack_forward.3} parent=43 // pred_check_branch
            %283 = sbr.rel (0) target = $region48
          $region47: #{gnnstack_forward.3} parent=43 // pred_region
            // Predicated region
            $region49: #{gnnstack_forward.3} parent=47 // pred_check
              _
            $region50: #{gnnstack_forward.3} parent=47 // pred_check_branch
              %285 = sbr.rel (0) target = $region52
            $region51: #{gnnstack_forward.3} parent=47 // pred_region
              // Predicated region
              $region64: #{gnnstack_forward.3} parent=51 // pred_check
                _
              $region65: #{gnnstack_forward.3} parent=51 // pred_check_branch
                %362 = sbr.rel (0) target = $region67
              $region66: #{gnnstack_forward.3} parent=51 // pred_region
                loop: start=0, step=1, limit=1
                $region68: #{gnnstack_forward.3} parent=66 // loop_pre_header
                  _
                $region69: #{gnnstack_forward.3} parent=66 // loop_header
                  %s364 = sphi 0, %s368
                  %p365 = scmp.ge.s32.totalorder %s364, 1
                  %s369 = sphi %s281, %s281
                  %s370 = sphi %s275, %s275
                $region70: #{gnnstack_forward.3} parent=66 // loop_header_branch
                  %367 = sbr.rel (%p365) target = $region74
                $region71: #{gnnstack_forward.3} parent=66 // loop_body
                  %v371 = vld [vmem:[%s369] sm:$0xff]
                  %372 = vst [vmem:[%s370] sm:$0xff] %v371
                  %v373 = vld [vmem:[%s369 + $0x10] sm:$0xff]
                  %374 = vst [vmem:[%s370 + $0x8] sm:$0xff] %v373
                  %v375 = vld [vmem:[%s369 + $0x20] sm:$0xff]
                  %376 = vst [vmem:[%s370 + $0x10] sm:$0xff] %v375
                  %v377 = vld [vmem:[%s369 + $0x30] sm:$0xff]
                  %378 = vst [vmem:[%s370 + $0x18] sm:$0xff] %v377
                  %v379 = vld [vmem:[%s369 + $0x40] sm:$0xff]
                  %380 = vst [vmem:[%s370 + $0x20] sm:$0xff] %v379
                  %v381 = vld [vmem:[%s369 + $0x50] sm:$0xff]
                  %382 = vst [vmem:[%s370 + $0x28] sm:$0xff] %v381
                  %v383 = vld [vmem:[%s369 + $0x60] sm:$0xff]
                  %384 = vst [vmem:[%s370 + $0x30] sm:$0xff] %v383
                  %v385 = vld [vmem:[%s369 + $0x70] sm:$0xff]
                  %386 = vst [vmem:[%s370 + $0x38] sm:$0xff] %v385
                  %v387 = vld [vmem:[%s369 + $0x80] sm:$0xff]
                  %388 = vst [vmem:[%s370 + $0x40] sm:$0xff] %v387
                  %v389 = vld [vmem:[%s369 + $0x90] sm:$0xff]
                  %390 = vst [vmem:[%s370 + $0x48] sm:$0xff] %v389
                  %v391 = vld [vmem:[%s369 + $0xa0] sm:$0xff]
                  %392 = vst [vmem:[%s370 + $0x50] sm:$0xff] %v391
                  %v393 = vld [vmem:[%s369 + $0xb0] sm:$0xff]
                  %394 = vst [vmem:[%s370 + $0x58] sm:$0xff] %v393
                  %v395 = vld [vmem:[%s369 + $0xc0] sm:$0xff]
                  %396 = vst [vmem:[%s370 + $0x60] sm:$0xff] %v395
                  %v397 = vld [vmem:[%s369 + $0xd0] sm:$0xff]
                  %398 = vst [vmem:[%s370 + $0x68] sm:$0xff] %v397
                  %v399 = vld [vmem:[%s369 + $0xe0] sm:$0xff]
                  %400 = vst [vmem:[%s370 + $0x70] sm:$0xff] %v399
                  %v401 = vld [vmem:[%s369 + $0xf0] sm:$0xff]
                  %402 = vst [vmem:[%s370 + $0x78] sm:$0xff] %v401
                  %v403 = vld [vmem:[%s369 + $0x100] sm:$0xff]
                  %404 = vst [vmem:[%s370 + $0x80] sm:$0xff] %v403
                  %v405 = vld [vmem:[%s369 + $0x110] sm:$0xff]
                  %406 = vst [vmem:[%s370 + $0x88] sm:$0xff] %v405
                  %v407 = vld [vmem:[%s369 + $0x120] sm:$0xff]
                  %408 = vst [vmem:[%s370 + $0x90] sm:$0xff] %v407
                  %v409 = vld [vmem:[%s369 + $0x130] sm:$0xff]
                  %410 = vst [vmem:[%s370 + $0x98] sm:$0xff] %v409
                  %v411 = vld [vmem:[%s369 + $0x140] sm:$0xff]
                  %412 = vst [vmem:[%s370 + $0xa0] sm:$0xff] %v411
                  %v413 = vld [vmem:[%s369 + $0x150] sm:$0xff]
                  %414 = vst [vmem:[%s370 + $0xa8] sm:$0xff] %v413
                  %v415 = vld [vmem:[%s369 + $0x160] sm:$0xff]
                  %416 = vst [vmem:[%s370 + $0xb0] sm:$0xff] %v415
                  %v417 = vld [vmem:[%s369 + $0x170] sm:$0xff]
                  %418 = vst [vmem:[%s370 + $0xb8] sm:$0xff] %v417
                  %v419 = vld [vmem:[%s369 + $0x180] sm:$0xff]
                  %420 = vst [vmem:[%s370 + $0xc0] sm:$0xff] %v419
                  %v421 = vld [vmem:[%s369 + $0x190] sm:$0xff]
                  %422 = vst [vmem:[%s370 + $0xc8] sm:$0xff] %v421
                  %v423 = vld [vmem:[%s369 + $0x1a0] sm:$0xff]
                  %424 = vst [vmem:[%s370 + $0xd0] sm:$0xff] %v423
                  %v425 = vld [vmem:[%s369 + $0x1b0] sm:$0xff]
                  %426 = vst [vmem:[%s370 + $0xd8] sm:$0xff] %v425
                  %v427 = vld [vmem:[%s369 + $0x1c0] sm:$0xff]
                  %428 = vst [vmem:[%s370 + $0xe0] sm:$0xff] %v427
                  %v429 = vld [vmem:[%s369 + $0x1d0] sm:$0xff]
                  %430 = vst [vmem:[%s370 + $0xe8] sm:$0xff] %v429
                  %v431 = vld [vmem:[%s369 + $0x1e0] sm:$0xff]
                  %432 = vst [vmem:[%s370 + $0xf0] sm:$0xff] %v431
                  %v433 = vld [vmem:[%s369 + $0x1f0] sm:$0xff]
                  %434 = vst [vmem:[%s370 + $0xf8] sm:$0xff] %v433
                $region72: #{gnnstack_forward.3} parent=66 // loop_footer
                  %s368 = sadd.s32 1, %s364
                $region73: #{gnnstack_forward.3} parent=66 // loop_footer_branch
                  %363 = sbr.rel target = $region69
                $region74: #{gnnstack_forward.3} parent=66 // loop_exit
                  _
              $region67: #{gnnstack_forward.3} parent=51 // pred_fallthru
                _
              // Predicated region
              $region75: #{gnnstack_forward.3} parent=51 // pred_check
                _
              $region76: #{gnnstack_forward.3} parent=51 // pred_check_branch
                %436 = sbr.rel target = $region78
              $region77: #{gnnstack_forward.3} parent=51 // pred_region
                _
              $region78: #{gnnstack_forward.3} parent=51 // pred_fallthru
                _
            $region52: #{gnnstack_forward.3} parent=47 // pred_fallthru
              _
            // Predicated region
            $region53: #{gnnstack_forward.3} parent=47 // pred_check
              _
            $region54: #{gnnstack_forward.3} parent=47 // pred_check_branch
              %287 = sbr.rel target = $region56
            $region55: #{gnnstack_forward.3} parent=47 // pred_region
              loop: start=0, step=1, limit=1
              $region57: #{gnnstack_forward.3} parent=55 // loop_pre_header
                _
              $region58: #{gnnstack_forward.3} parent=55 // loop_header
                %s290 = sphi 0, %s294
                %p291 = scmp.ge.s32.totalorder %s290, 1
                %s295 = sphi %s281, %s281
                %s296 = sphi %s275, %s275
              $region59: #{gnnstack_forward.3} parent=55 // loop_header_branch
                %293 = sbr.rel (%p291) target = $region63
              $region60: #{gnnstack_forward.3} parent=55 // loop_body
                %v297 = vld [vmem:[%s295] sm:$0xff]
                %298 = vst [vmem:[%s296] sm:$0xff] %v297
                %v299 = vld [vmem:[%s295 + $0x10] sm:$0xff]
                %300 = vst [vmem:[%s296 + $0x8] sm:$0xff] %v299
                %v301 = vld [vmem:[%s295 + $0x20] sm:$0xff]
                %302 = vst [vmem:[%s296 + $0x10] sm:$0xff] %v301
                %v303 = vld [vmem:[%s295 + $0x30] sm:$0xff]
                %304 = vst [vmem:[%s296 + $0x18] sm:$0xff] %v303
                %v305 = vld [vmem:[%s295 + $0x40] sm:$0xff]
                %306 = vst [vmem:[%s296 + $0x20] sm:$0xff] %v305
                %v307 = vld [vmem:[%s295 + $0x50] sm:$0xff]
                %308 = vst [vmem:[%s296 + $0x28] sm:$0xff] %v307
                %v309 = vld [vmem:[%s295 + $0x60] sm:$0xff]
                %310 = vst [vmem:[%s296 + $0x30] sm:$0xff] %v309
                %v311 = vld [vmem:[%s295 + $0x70] sm:$0xff]
                %312 = vst [vmem:[%s296 + $0x38] sm:$0xff] %v311
                %v313 = vld [vmem:[%s295 + $0x80] sm:$0xff]
                %314 = vst [vmem:[%s296 + $0x40] sm:$0xff] %v313
                %v315 = vld [vmem:[%s295 + $0x90] sm:$0xff]
                %316 = vst [vmem:[%s296 + $0x48] sm:$0xff] %v315
                %v317 = vld [vmem:[%s295 + $0xa0] sm:$0xff]
                %318 = vst [vmem:[%s296 + $0x50] sm:$0xff] %v317
                %v319 = vld [vmem:[%s295 + $0xb0] sm:$0xff]
                %320 = vst [vmem:[%s296 + $0x58] sm:$0xff] %v319
                %v321 = vld [vmem:[%s295 + $0xc0] sm:$0xff]
                %322 = vst [vmem:[%s296 + $0x60] sm:$0xff] %v321
                %v323 = vld [vmem:[%s295 + $0xd0] sm:$0xff]
                %324 = vst [vmem:[%s296 + $0x68] sm:$0xff] %v323
                %v325 = vld [vmem:[%s295 + $0xe0] sm:$0xff]
                %326 = vst [vmem:[%s296 + $0x70] sm:$0xff] %v325
                %v327 = vld [vmem:[%s295 + $0xf0] sm:$0xff]
                %328 = vst [vmem:[%s296 + $0x78] sm:$0xff] %v327
                %v329 = vld [vmem:[%s295 + $0x100] sm:$0xff]
                %330 = vst [vmem:[%s296 + $0x80] sm:$0xff] %v329
                %v331 = vld [vmem:[%s295 + $0x110] sm:$0xff]
                %332 = vst [vmem:[%s296 + $0x88] sm:$0xff] %v331
                %v333 = vld [vmem:[%s295 + $0x120] sm:$0xff]
                %334 = vst [vmem:[%s296 + $0x90] sm:$0xff] %v333
                %v335 = vld [vmem:[%s295 + $0x130] sm:$0xff]
                %336 = vst [vmem:[%s296 + $0x98] sm:$0xff] %v335
                %v337 = vld [vmem:[%s295 + $0x140] sm:$0xff]
                %338 = vst [vmem:[%s296 + $0xa0] sm:$0xff] %v337
                %v339 = vld [vmem:[%s295 + $0x150] sm:$0xff]
                %340 = vst [vmem:[%s296 + $0xa8] sm:$0xff] %v339
                %v341 = vld [vmem:[%s295 + $0x160] sm:$0xff]
                %342 = vst [vmem:[%s296 + $0xb0] sm:$0xff] %v341
                %v343 = vld [vmem:[%s295 + $0x170] sm:$0xff]
                %344 = vst [vmem:[%s296 + $0xb8] sm:$0xff] %v343
                %v345 = vld [vmem:[%s295 + $0x180] sm:$0xff]
                %346 = vst [vmem:[%s296 + $0xc0] sm:$0xff] %v345
                %v347 = vld [vmem:[%s295 + $0x190] sm:$0xff]
                %348 = vst [vmem:[%s296 + $0xc8] sm:$0xff] %v347
                %v349 = vld [vmem:[%s295 + $0x1a0] sm:$0xff]
                %350 = vst [vmem:[%s296 + $0xd0] sm:$0xff] %v349
                %v351 = vld [vmem:[%s295 + $0x1b0] sm:$0xff]
                %352 = vst [vmem:[%s296 + $0xd8] sm:$0xff] %v351
                %v353 = vld [vmem:[%s295 + $0x1c0] sm:$0xff]
                %354 = vst [vmem:[%s296 + $0xe0] sm:$0xff] %v353
                %v355 = vld [vmem:[%s295 + $0x1d0] sm:$0xff]
                %356 = vst [vmem:[%s296 + $0xe8] sm:$0xff] %v355
                %v357 = vld [vmem:[%s295 + $0x1e0] sm:$0xff]
                %358 = vst [vmem:[%s296 + $0xf0] sm:$0xff] %v357
                %v359 = vld [vmem:[%s295 + $0x1f0] sm:$0xff]
                %360 = vst [vmem:[%s296 + $0xf8] sm:$0xff] %v359
              $region61: #{gnnstack_forward.3} parent=55 // loop_footer
                %s294 = sadd.s32 1, %s290
              $region62: #{gnnstack_forward.3} parent=55 // loop_footer_branch
                %289 = sbr.rel target = $region58
              $region63: #{gnnstack_forward.3} parent=55 // loop_exit
                _
            $region56: #{gnnstack_forward.3} parent=47 // pred_fallthru
              _
          $region48: #{gnnstack_forward.3} parent=43 // pred_fallthru
            _
          %437 = vnop
        $region44: #{gnnstack_forward.3} parent=39 // pred_fallthru
          _
        // Predicated region
        $region79: #{gnnstack_forward.3} parent=39 // pred_check
          %p438 = pneg %p74
        $region80: #{gnnstack_forward.3} parent=39 // pred_check_branch
          %440 = sbr.rel (%p438) target = $region82
        $region81: #{gnnstack_forward.3} parent=39 // pred_region
          %s441 = smul.u32 32, %s22
          %p442 = scmp.lt.s32.totalorder %s441, 63
          %s443 = scalar_select %p442, %s441, 63
          %s444 = smul.addr %s443, 4
          %s445 = scalar_lea.vmem %s1, %s444
          %s446 = smul.u32 32, %s22
        $region82: #{gnnstack_forward.3} parent=39 // pred_fallthru
          _
      $region40: #{gnnstack_forward.3} parent=5 // pred_fallthru
        _
      %p447 = scmp.le.s32.totalorder 1, %s14
      %p448 = scmp.lt.s32.totalorder %s14, 5
      %p449 = pnand %p447, %p448
      %p450 = pneg %p449
      // Predicated region
      $region83: #{gnnstack_forward.3} parent=5 // pred_check
        _
      $region84: #{gnnstack_forward.3} parent=5 // pred_check_branch
        %452 = sbr.rel (%p449) target = $region86
      $region85: #{gnnstack_forward.3} parent=5 // pred_region
        %s453 = ssub.s32 %s14, 1
        %s454 = sand.u32 %s41, 1
        %s455 = sand.u32 %s41, 1
        %s456 = smul.addr %s455, 256
        %s457 = scalar_lea.vmem [#allocation3], %s456
        // Predicated region
        $region87: #{gnnstack_forward.3} parent=85 // pred_check
          %p458 = pneg %p54
        $region88: #{gnnstack_forward.3} parent=85 // pred_check_branch
          %460 = sbr.rel (%p458) target = $region90
        $region89: #{gnnstack_forward.3} parent=85 // pred_region
          _
        $region90: #{gnnstack_forward.3} parent=85 // pred_fallthru
          _
        %s461 = sand.u32 %s41, 1
        %s462 = sand.u32 %s41, 1
        %s463 = smul.addr %s462, 256
        %s464 = scalar_lea.vmem [#allocation3], %s463
        %p465 = pneg %p54
        %p466 = pneg %p51
        %s467 = smul.u32 32, %s24
        %p468 = scmp.lt.s32.totalorder %s467, 63
        %s469 = scalar_select %p468, %s467, 63
        %s470 = smul.addr %s469, 4
        %s471 = scalar_lea.vmem %s1, %s470
        %p472 = pneg %p80
        %p473 = pneg %p77
        %p474 = pneg %p101
        %p475 = pneg %p98
        %p476 = pneg %p122
        %p477 = pneg %p119
        %p478 = pneg %p143
        %p479 = pneg %p140
        %p480 = pneg %p164
        %p481 = pneg %p161
        %p482 = pneg %p185
        %p483 = pneg %p182
        %p484 = pneg %p206
        %p485 = pneg %p203
        %p486 = pneg %p232
        %p487 = pneg %p229
        %s488 = smul.u32 32, %s23
        %p489 = scmp.lt.s32.totalorder %s488, 63
        %s490 = scalar_select %p489, %s488, 63
        %s491 = smul.addr %s490, 8
        %s492 = scalar_lea.vmem %s8, %s491
        %s493 = smul.u32 32, %s23
        %s494 = smul.u32 2, %s24
        %s495 = smul.u32 32, %s24
        %p496 = scmp.lt.s32.totalorder %s495, 63
        %s497 = scalar_select %p496, %s495, 63
        %s498 = smul.addr %s497, 4
        %s499 = scalar_lea.vmem %s1, %s498
        %s500 = smul.u32 32, %s24
        %s501 = smul.u32 32, %s23
        %p502 = scmp.lt.s32.totalorder %s501, 63
        %s503 = scalar_select %p502, %s501, 63
        %s504 = smul.addr %s503, 8
        %s505 = scalar_lea.vmem %s8, %s504
        %s506 = smul.u32 32, %s23
        %p508 = scmp.eq.s32.totalorder %s24, 0
        // Predicated region
        $region91: #{gnnstack_forward.3} parent=85 // pred_check
          %p509 = pneg %p508
        $region92: #{gnnstack_forward.3} parent=85 // pred_check_branch
          %511 = sbr.rel (%p509) target = $region94
        $region93: #{gnnstack_forward.3} parent=85 // pred_region
          %512 = vst [vmem:[#allocation2] sm:$0xff] 0.0
          %513 = vst [vmem:[#allocation2 + $0x8] sm:$0xff] 0.0
          %514 = vst [vmem:[#allocation2 + $0x10] sm:$0xff] 0.0
          %515 = vst [vmem:[#allocation2 + $0x18] sm:$0xff] 0.0
          %516 = vst [vmem:[#allocation2 + $0x20] sm:$0xff] 0.0
          %517 = vst [vmem:[#allocation2 + $0x28] sm:$0xff] 0.0
          %518 = vst [vmem:[#allocation2 + $0x30] sm:$0xff] 0.0
          %519 = vst [vmem:[#allocation2 + $0x38] sm:$0xff] 0.0
          %520 = vst [vmem:[#allocation2 + $0x40] sm:$0xff] 0.0
          %521 = vst [vmem:[#allocation2 + $0x48] sm:$0xff] 0.0
          %522 = vst [vmem:[#allocation2 + $0x50] sm:$0xff] 0.0
          %523 = vst [vmem:[#allocation2 + $0x58] sm:$0xff] 0.0
          %524 = vst [vmem:[#allocation2 + $0x60] sm:$0xff] 0.0
          %525 = vst [vmem:[#allocation2 + $0x68] sm:$0xff] 0.0
          %526 = vst [vmem:[#allocation2 + $0x70] sm:$0xff] 0.0
          %527 = vst [vmem:[#allocation2 + $0x78] sm:$0xff] 0.0
          %528 = vst [vmem:[#allocation2 + $0x80] sm:$0xff] 0.0
          %529 = vst [vmem:[#allocation2 + $0x88] sm:$0xff] 0.0
          %530 = vst [vmem:[#allocation2 + $0x90] sm:$0xff] 0.0
          %531 = vst [vmem:[#allocation2 + $0x98] sm:$0xff] 0.0
          %532 = vst [vmem:[#allocation2 + $0xa0] sm:$0xff] 0.0
          %533 = vst [vmem:[#allocation2 + $0xa8] sm:$0xff] 0.0
          %534 = vst [vmem:[#allocation2 + $0xb0] sm:$0xff] 0.0
          %535 = vst [vmem:[#allocation2 + $0xb8] sm:$0xff] 0.0
          %536 = vst [vmem:[#allocation2 + $0xc0] sm:$0xff] 0.0
          %537 = vst [vmem:[#allocation2 + $0xc8] sm:$0xff] 0.0
          %538 = vst [vmem:[#allocation2 + $0xd0] sm:$0xff] 0.0
          %539 = vst [vmem:[#allocation2 + $0xd8] sm:$0xff] 0.0
          %540 = vst [vmem:[#allocation2 + $0xe0] sm:$0xff] 0.0
          %541 = vst [vmem:[#allocation2 + $0xe8] sm:$0xff] 0.0
          %542 = vst [vmem:[#allocation2 + $0xf0] sm:$0xff] 0.0
          %543 = vst [vmem:[#allocation2 + $0xf8] sm:$0xff] 0.0
        $region94: #{gnnstack_forward.3} parent=85 // pred_fallthru
          _
        %v544 = vld [vmem:[#allocation2] sm:$0xff]
        %v545 = vld [vmem:[#allocation2 + $0x8] sm:$0xff]
        %v546 = vld [vmem:[#allocation2 + $0x10] sm:$0xff]
        %v547 = vld [vmem:[#allocation2 + $0x18] sm:$0xff]
        %v548 = vld [vmem:[#allocation2 + $0x20] sm:$0xff]
        %v549 = vld [vmem:[#allocation2 + $0x28] sm:$0xff]
        %v550 = vld [vmem:[#allocation2 + $0x30] sm:$0xff]
        %v551 = vld [vmem:[#allocation2 + $0x38] sm:$0xff]
        %v552 = vld [vmem:[#allocation2 + $0x40] sm:$0xff]
        %v553 = vld [vmem:[#allocation2 + $0x48] sm:$0xff]
        %v554 = vld [vmem:[#allocation2 + $0x50] sm:$0xff]
        %v555 = vld [vmem:[#allocation2 + $0x58] sm:$0xff]
        %v556 = vld [vmem:[#allocation2 + $0x60] sm:$0xff]
        %v557 = vld [vmem:[#allocation2 + $0x68] sm:$0xff]
        %v558 = vld [vmem:[#allocation2 + $0x70] sm:$0xff]
        %v559 = vld [vmem:[#allocation2 + $0x78] sm:$0xff]
        %v560 = vld [vmem:[#allocation2 + $0x80] sm:$0xff]
        %v561 = vld [vmem:[#allocation2 + $0x88] sm:$0xff]
        %v562 = vld [vmem:[#allocation2 + $0x90] sm:$0xff]
        %v563 = vld [vmem:[#allocation2 + $0x98] sm:$0xff]
        %v564 = vld [vmem:[#allocation2 + $0xa0] sm:$0xff]
        %v565 = vld [vmem:[#allocation2 + $0xa8] sm:$0xff]
        %v566 = vld [vmem:[#allocation2 + $0xb0] sm:$0xff]
        %v567 = vld [vmem:[#allocation2 + $0xb8] sm:$0xff]
        %v568 = vld [vmem:[#allocation2 + $0xc0] sm:$0xff]
        %v569 = vld [vmem:[#allocation2 + $0xc8] sm:$0xff]
        %v570 = vld [vmem:[#allocation2 + $0xd0] sm:$0xff]
        %v571 = vld [vmem:[#allocation2 + $0xd8] sm:$0xff]
        %v572 = vld [vmem:[#allocation2 + $0xe0] sm:$0xff]
        %v573 = vld [vmem:[#allocation2 + $0xe8] sm:$0xff]
        %v574 = vld [vmem:[#allocation2 + $0xf0] sm:$0xff]
        %v575 = vld [vmem:[#allocation2 + $0xf8] sm:$0xff]
        %v576 = vld [vmem:[%s457] sm:$0xff]
        %v577 = vld [vmem:[%s457 + $0x8] sm:$0xff]
        %v578 = vld [vmem:[%s457 + $0x10] sm:$0xff]
        %v579 = vld [vmem:[%s457 + $0x18] sm:$0xff]
        %v580 = vld [vmem:[%s457 + $0x20] sm:$0xff]
        %v581 = vld [vmem:[%s457 + $0x28] sm:$0xff]
        %v582 = vld [vmem:[%s457 + $0x30] sm:$0xff]
        %v583 = vld [vmem:[%s457 + $0x38] sm:$0xff]
        %v584 = vld [vmem:[%s457 + $0x40] sm:$0xff]
        %v585 = vld [vmem:[%s457 + $0x48] sm:$0xff]
        %v586 = vld [vmem:[%s457 + $0x50] sm:$0xff]
        %v587 = vld [vmem:[%s457 + $0x58] sm:$0xff]
        %v588 = vld [vmem:[%s457 + $0x60] sm:$0xff]
        %v589 = vld [vmem:[%s457 + $0x68] sm:$0xff]
        %v590 = vld [vmem:[%s457 + $0x70] sm:$0xff]
        %v591 = vld [vmem:[%s457 + $0x78] sm:$0xff]
        %v592 = vld [vmem:[%s457 + $0x80] sm:$0xff]
        %v593 = vld [vmem:[%s457 + $0x88] sm:$0xff]
        %v594 = vld [vmem:[%s457 + $0x90] sm:$0xff]
        %v595 = vld [vmem:[%s457 + $0x98] sm:$0xff]
        %v596 = vld [vmem:[%s457 + $0xa0] sm:$0xff]
        %v597 = vld [vmem:[%s457 + $0xa8] sm:$0xff]
        %v598 = vld [vmem:[%s457 + $0xb0] sm:$0xff]
        %v599 = vld [vmem:[%s457 + $0xb8] sm:$0xff]
        %v600 = vld [vmem:[%s457 + $0xc0] sm:$0xff]
        %v601 = vld [vmem:[%s457 + $0xc8] sm:$0xff]
        %v602 = vld [vmem:[%s457 + $0xd0] sm:$0xff]
        %v603 = vld [vmem:[%s457 + $0xd8] sm:$0xff]
        %v604 = vld [vmem:[%s457 + $0xe0] sm:$0xff]
        %v605 = vld [vmem:[%s457 + $0xe8] sm:$0xff]
        %v606 = vld [vmem:[%s457 + $0xf0] sm:$0xff]
        %v607 = vld [vmem:[%s457 + $0xf8] sm:$0xff]
        %v608 = vld [vmem:[%s499] sm:$0xf]
        %v609 = vld [vmem:[%s499 + $0x4] sm:$0xf]
        %v610 = vld [vmem:[%s499 + $0x8] sm:$0xf]
        %v611 = vld [vmem:[%s499 + $0xc] sm:$0xf]
        %v612 = vld [vmem:[%s499 + $0x10] sm:$0xf]
        %v613 = vld [vmem:[%s499 + $0x14] sm:$0xf]
        %v614 = vld [vmem:[%s499 + $0x18] sm:$0xf]
        %v615 = vld [vmem:[%s499 + $0x1c] sm:$0xf]
        %v616 = vld [vmem:[%s499 + $0x20] sm:$0xf]
        %v617 = vld [vmem:[%s499 + $0x24] sm:$0xf]
        %v618 = vld [vmem:[%s499 + $0x28] sm:$0xf]
        %v619 = vld [vmem:[%s499 + $0x2c] sm:$0xf]
        %v620 = vld [vmem:[%s499 + $0x30] sm:$0xf]
        %v621 = vld [vmem:[%s499 + $0x34] sm:$0xf]
        %v622 = vld [vmem:[%s499 + $0x38] sm:$0xf]
        %v623 = vld [vmem:[%s499 + $0x3c] sm:$0xf]
        %v624 = vld [vmem:[%s499 + $0x40] sm:$0xf]
        %v625 = vld [vmem:[%s499 + $0x44] sm:$0xf]
        %v626 = vld [vmem:[%s499 + $0x48] sm:$0xf]
        %v627 = vld [vmem:[%s499 + $0x4c] sm:$0xf]
        %v628 = vld [vmem:[%s499 + $0x50] sm:$0xf]
        %v629 = vld [vmem:[%s499 + $0x54] sm:$0xf]
        %v630 = vld [vmem:[%s499 + $0x58] sm:$0xf]
        %v631 = vld [vmem:[%s499 + $0x5c] sm:$0xf]
        %v632 = vld [vmem:[%s499 + $0x60] sm:$0xf]
        %v633 = vld [vmem:[%s499 + $0x64] sm:$0xf]
        %v634 = vld [vmem:[%s499 + $0x68] sm:$0xf]
        %v635 = vld [vmem:[%s499 + $0x6c] sm:$0xf]
        %v636 = vld [vmem:[%s499 + $0x70] sm:$0xf]
        %v637 = vld [vmem:[%s499 + $0x74] sm:$0xf]
        %v638 = vld [vmem:[%s499 + $0x78] sm:$0xf]
        %v639 = vld [vmem:[%s499 + $0x7c] sm:$0xf]
        %v672 = vunpack.c.l.b16 %v576
        %v673 = vunpack.c.h.b16 %v576
        %v674 = vunpack.c.l.b16 %v577
        %v675 = vunpack.c.h.b16 %v577
        %v676 = vunpack.c.l.b16 %v578
        %v677 = vunpack.c.h.b16 %v578
        %v678 = vunpack.c.l.b16 %v579
        %v679 = vunpack.c.h.b16 %v579
        %v680 = vunpack.c.l.b16 %v580
        %v681 = vunpack.c.h.b16 %v580
        %v682 = vunpack.c.l.b16 %v581
        %v683 = vunpack.c.h.b16 %v581
        %v684 = vunpack.c.l.b16 %v582
        %v685 = vunpack.c.h.b16 %v582
        %v686 = vunpack.c.l.b16 %v583
        %v687 = vunpack.c.h.b16 %v583
        %v688 = vunpack.c.l.b16 %v584
        %v689 = vunpack.c.h.b16 %v584
        %v690 = vunpack.c.l.b16 %v585
        %v691 = vunpack.c.h.b16 %v585
        %v692 = vunpack.c.l.b16 %v586
        %v693 = vunpack.c.h.b16 %v586
        %v694 = vunpack.c.l.b16 %v587
        %v695 = vunpack.c.h.b16 %v587
        %v696 = vunpack.c.l.b16 %v588
        %v697 = vunpack.c.h.b16 %v588
        %v698 = vunpack.c.l.b16 %v589
        %v699 = vunpack.c.h.b16 %v589
        %v700 = vunpack.c.l.b16 %v590
        %v701 = vunpack.c.h.b16 %v590
        %v702 = vunpack.c.l.b16 %v591
        %v703 = vunpack.c.h.b16 %v591
        %v704 = vunpack.c.l.b16 %v592
        %v705 = vunpack.c.h.b16 %v592
        %v706 = vunpack.c.l.b16 %v593
        %v707 = vunpack.c.h.b16 %v593
        %v708 = vunpack.c.l.b16 %v594
        %v709 = vunpack.c.h.b16 %v594
        %v710 = vunpack.c.l.b16 %v595
        %v711 = vunpack.c.h.b16 %v595
        %v712 = vunpack.c.l.b16 %v596
        %v713 = vunpack.c.h.b16 %v596
        %v714 = vunpack.c.l.b16 %v597
        %v715 = vunpack.c.h.b16 %v597
        %v716 = vunpack.c.l.b16 %v598
        %v717 = vunpack.c.h.b16 %v598
        %v718 = vunpack.c.l.b16 %v599
        %v719 = vunpack.c.h.b16 %v599
        %v720 = vunpack.c.l.b16 %v600
        %v721 = vunpack.c.h.b16 %v600
        %v722 = vunpack.c.l.b16 %v601
        %v723 = vunpack.c.h.b16 %v601
        %v724 = vunpack.c.l.b16 %v602
        %v725 = vunpack.c.h.b16 %v602
        %v726 = vunpack.c.l.b16 %v603
        %v727 = vunpack.c.h.b16 %v603
        %v728 = vunpack.c.l.b16 %v604
        %v729 = vunpack.c.h.b16 %v604
        %v730 = vunpack.c.l.b16 %v605
        %v731 = vunpack.c.h.b16 %v605
        %v732 = vunpack.c.l.b16 %v606
        %v733 = vunpack.c.h.b16 %v606
        %v734 = vunpack.c.l.b16 %v607
        %v735 = vunpack.c.h.b16 %v607
        %v736 = vpack.c.b16 %v674, %v672
        %v737 = vpack.c.b16 %v675, %v673
        %v738 = vpack.c.b16 %v678, %v676
        %v739 = vpack.c.b16 %v679, %v677
        %v740 = vpack.c.b16 %v682, %v680
        %v741 = vpack.c.b16 %v683, %v681
        %v742 = vpack.c.b16 %v686, %v684
        %v743 = vpack.c.b16 %v687, %v685
        %v744 = vpack.c.b16 %v690, %v688
        %v745 = vpack.c.b16 %v691, %v689
        %v746 = vpack.c.b16 %v694, %v692
        %v747 = vpack.c.b16 %v695, %v693
        %v748 = vpack.c.b16 %v698, %v696
        %v749 = vpack.c.b16 %v699, %v697
        %v750 = vpack.c.b16 %v702, %v700
        %v751 = vpack.c.b16 %v703, %v701
        %v752 = vpack.c.b16 %v706, %v704
        %v753 = vpack.c.b16 %v707, %v705
        %v754 = vpack.c.b16 %v710, %v708
        %v755 = vpack.c.b16 %v711, %v709
        %v756 = vpack.c.b16 %v714, %v712
        %v757 = vpack.c.b16 %v715, %v713
        %v758 = vpack.c.b16 %v718, %v716
        %v759 = vpack.c.b16 %v719, %v717
        %v760 = vpack.c.b16 %v722, %v720
        %v761 = vpack.c.b16 %v723, %v721
        %v762 = vpack.c.b16 %v726, %v724
        %v763 = vpack.c.b16 %v727, %v725
        %v764 = vpack.c.b16 %v730, %v728
        %v765 = vpack.c.b16 %v731, %v729
        %v766 = vpack.c.b16 %v734, %v732
        %v767 = vpack.c.b16 %v735, %v733
        %v832 = vunpack.c.l.b16 %v608
        %v833 = vunpack.c.l.b16 %v609
        %v834 = vunpack.c.l.b16 %v610
        %v835 = vunpack.c.l.b16 %v611
        %v836 = vunpack.c.l.b16 %v612
        %v837 = vunpack.c.l.b16 %v613
        %v838 = vunpack.c.l.b16 %v614
        %v839 = vunpack.c.l.b16 %v615
        %v840 = vunpack.c.l.b16 %v616
        %v841 = vunpack.c.l.b16 %v617
        %v842 = vunpack.c.l.b16 %v618
        %v843 = vunpack.c.l.b16 %v619
        %v844 = vunpack.c.l.b16 %v620
        %v845 = vunpack.c.l.b16 %v621
        %v846 = vunpack.c.l.b16 %v622
        %v847 = vunpack.c.l.b16 %v623
        %v848 = vunpack.c.l.b16 %v624
        %v849 = vunpack.c.l.b16 %v625
        %v850 = vunpack.c.l.b16 %v626
        %v851 = vunpack.c.l.b16 %v627
        %v852 = vunpack.c.l.b16 %v628
        %v853 = vunpack.c.l.b16 %v629
        %v854 = vunpack.c.l.b16 %v630
        %v855 = vunpack.c.l.b16 %v631
        %v856 = vunpack.c.l.b16 %v632
        %v857 = vunpack.c.l.b16 %v633
        %v858 = vunpack.c.l.b16 %v634
        %v859 = vunpack.c.l.b16 %v635
        %v860 = vunpack.c.l.b16 %v636
        %v861 = vunpack.c.l.b16 %v637
        %v862 = vunpack.c.l.b16 %v638
        %v863 = vunpack.c.l.b16 %v639
        %v864 = vpack.c.b16 %v833, %v832
        %v865 = vpack.c.b16 %v835, %v834
        %v866 = vpack.c.b16 %v837, %v836
        %v867 = vpack.c.b16 %v839, %v838
        %v868 = vpack.c.b16 %v841, %v840
        %v869 = vpack.c.b16 %v843, %v842
        %v870 = vpack.c.b16 %v845, %v844
        %v871 = vpack.c.b16 %v847, %v846
        %v872 = vpack.c.b16 %v849, %v848
        %v873 = vpack.c.b16 %v851, %v850
        %v874 = vpack.c.b16 %v853, %v852
        %v875 = vpack.c.b16 %v855, %v854
        %v876 = vpack.c.b16 %v857, %v856
        %v877 = vpack.c.b16 %v859, %v858
        %v878 = vpack.c.b16 %v861, %v860
        %v879 = vpack.c.b16 %v863, %v862
        %896 = vmatprep.subr.bf16.mxu0 0
        %897 = vmatpush1.bf16.msra.mxu0 %v864
        %898 = vmatprep.subr.bf16.mxu0 0
        %899 = vmatpush1.bf16.msra.mxu0 %v865
        %900 = vmatprep.subr.bf16.mxu0 0
        %901 = vmatpush1.bf16.msra.mxu0 %v866
        %902 = vmatprep.subr.bf16.mxu0 0
        %903 = vmatpush1.bf16.msra.mxu0 %v867
        %904 = vmatprep.subr.bf16.mxu0 0
        %905 = vmatpush1.bf16.msra.mxu0 %v868
        %906 = vmatprep.subr.bf16.mxu0 0
        %907 = vmatpush1.bf16.msra.mxu0 %v869
        %908 = vmatprep.subr.bf16.mxu0 0
        %909 = vmatpush1.bf16.msra.mxu0 %v870
        %910 = vmatprep.subr.bf16.mxu0 0
        %911 = vmatpush1.bf16.msra.mxu0 %v871
        %912 = vmatprep.subr.bf16.mxu0 0
        %913 = vmatpush1.bf16.msra.mxu0 %v872
        %914 = vmatprep.subr.bf16.mxu0 0
        %915 = vmatpush1.bf16.msra.mxu0 %v873
        %916 = vmatprep.subr.bf16.mxu0 0
        %917 = vmatpush1.bf16.msra.mxu0 %v874
        %918 = vmatprep.subr.bf16.mxu0 0
        %919 = vmatpush1.bf16.msra.mxu0 %v875
        %920 = vmatprep.subr.bf16.mxu0 0
        %921 = vmatpush1.bf16.msra.mxu0 %v876
        %922 = vmatprep.subr.bf16.mxu0 0
        %923 = vmatpush1.bf16.msra.mxu0 %v877
        %924 = vmatprep.subr.bf16.mxu0 0
        %925 = vmatpush1.bf16.msra.mxu0 %v878
        %926 = vmatprep.subr.bf16.mxu0 0
        %927 = vmatpush1.bf16.msra.mxu0 %v879
        %928 = vmatprep.mubr.bf16.mxu0 %v737
        %929 = vmatmul.mubr.bf16.gmra.mrb[0].mxu0 %v736
        %v930 = vpop.f32.mrb[0].mxu0
        %v931 = vadd.f32 0.0, %v930
        %v932 = vpop.f32.mrb[0].mxu0
        %v933 = vpop.f32.mrb[0].mxu0
        %v934 = vadd.f32 0.0, %v933
        %v935 = vpop.f32.mrb[0].mxu0
        %936 = vmatprep.mubr.bf16.mxu0 %v739
        %937 = vmatmul.mubr.bf16.gmra.mrb[0].mxu0 %v738
        %v938 = vpop.f32.mrb[0].mxu0
        %v939 = vadd.f32 0.0, %v938
        %v940 = vpop.f32.mrb[0].mxu0
        %v941 = vpop.f32.mrb[0].mxu0
        %v942 = vadd.f32 0.0, %v941
        %v943 = vpop.f32.mrb[0].mxu0
        %944 = vmatprep.mubr.bf16.mxu0 %v741
        %945 = vmatmul.mubr.bf16.gmra.mrb[0].mxu0 %v740
        %v946 = vpop.f32.mrb[0].mxu0
        %v947 = vadd.f32 0.0, %v946
        %v948 = vpop.f32.mrb[0].mxu0
        %v949 = vpop.f32.mrb[0].mxu0
        %v950 = vadd.f32 0.0, %v949
        %v951 = vpop.f32.mrb[0].mxu0
        %952 = vmatprep.mubr.bf16.mxu0 %v743
        %953 = vmatmul.mubr.bf16.gmra.mrb[0].mxu0 %v742
        %v954 = vpop.f32.mrb[0].mxu0
        %v955 = vadd.f32 0.0, %v954
        %v956 = vpop.f32.mrb[0].mxu0
        %v957 = vpop.f32.mrb[0].mxu0
        %v958 = vadd.f32 0.0, %v957
        %v959 = vpop.f32.mrb[0].mxu0
        %960 = vmatprep.mubr.bf16.mxu0 %v745
        %961 = vmatmul.mubr.bf16.gmra.mrb[0].mxu0 %v744
        %v962 = vpop.f32.mrb[0].mxu0
        %v963 = vadd.f32 0.0, %v962
        %v964 = vpop.f32.mrb[0].mxu0
        %v965 = vpop.f32.mrb[0].mxu0
        %v966 = vadd.f32 0.0, %v965
        %v967 = vpop.f32.mrb[0].mxu0
        %968 = vmatprep.mubr.bf16.mxu0 %v747
        %969 = vmatmul.mubr.bf16.gmra.mrb[0].mxu0 %v746
        %v970 = vpop.f32.mrb[0].mxu0
        %v971 = vadd.f32 0.0, %v970
        %v972 = vpop.f32.mrb[0].mxu0
        %v973 = vpop.f32.mrb[0].mxu0
        %v974 = vadd.f32 0.0, %v973
        %v975 = vpop.f32.mrb[0].mxu0
        %976 = vmatprep.mubr.bf16.mxu0 %v749
        %977 = vmatmul.mubr.bf16.gmra.mrb[0].mxu0 %v748
        %v978 = vpop.f32.mrb[0].mxu0
        %v979 = vadd.f32 0.0, %v978
        %v980 = vpop.f32.mrb[0].mxu0
        %v981 = vpop.f32.mrb[0].mxu0
        %v982 = vadd.f32 0.0, %v981
        %v983 = vpop.f32.mrb[0].mxu0
        %984 = vmatprep.mubr.bf16.mxu0 %v751
        %985 = vmatmul.mubr.bf16.gmra.mrb[0].mxu0 %v750
        %v986 = vpop.f32.mrb[0].mxu0
        %v987 = vadd.f32 0.0, %v986
        %v988 = vpop.f32.mrb[0].mxu0
        %v989 = vpop.f32.mrb[0].mxu0
        %v990 = vadd.f32 0.0, %v989
        %v991 = vpop.f32.mrb[0].mxu0
        %992 = vmatprep.mubr.bf16.mxu0 %v753
        %993 = vmatmul.mubr.bf16.gmra.mrb[0].mxu0 %v752
        %v994 = vpop.f32.mrb[0].mxu0
        %v995 = vadd.f32 0.0, %v994
        %v996 = vpop.f32.mrb[0].mxu0
        %v997 = vpop.f32.mrb[0].mxu0
        %v998 = vadd.f32 0.0, %v997
        %v999 = vpop.f32.mrb[0].mxu0
        %1000 = vmatprep.mubr.bf16.mxu0 %v755
        %1001 = vmatmul.mubr.bf16.gmra.mrb[0].mxu0 %v754
        %v1002 = vpop.f32.mrb[0].mxu0
        %v1003 = vadd.f32 0.0, %v1002
        %v1004 = vpop.f32.mrb[0].mxu0
        %v1005 = vpop.f32.mrb[0].mxu0
        %v1006 = vadd.f32 0.0, %v1005
        %v1007 = vpop.f32.mrb[0].mxu0
        %1008 = vmatprep.mubr.bf16.mxu0 %v757
        %1009 = vmatmul.mubr.bf16.gmra.mrb[0].mxu0 %v756
        %v1010 = vpop.f32.mrb[0].mxu0
        %v1011 = vadd.f32 0.0, %v1010
        %v1012 = vpop.f32.mrb[0].mxu0
        %v1013 = vpop.f32.mrb[0].mxu0
        %v1014 = vadd.f32 0.0, %v1013
        %v1015 = vpop.f32.mrb[0].mxu0
        %1016 = vmatprep.mubr.bf16.mxu0 %v759
        %1017 = vmatmul.mubr.bf16.gmra.mrb[0].mxu0 %v758
        %v1018 = vpop.f32.mrb[0].mxu0
        %v1019 = vadd.f32 0.0, %v1018
        %v1020 = vpop.f32.mrb[0].mxu0
        %v1021 = vpop.f32.mrb[0].mxu0
        %v1022 = vadd.f32 0.0, %v1021
        %v1023 = vpop.f32.mrb[0].mxu0
        %1024 = vmatprep.mubr.bf16.mxu0 %v761
        %1025 = vmatmul.mubr.bf16.gmra.mrb[0].mxu0 %v760
        %v1026 = vpop.f32.mrb[0].mxu0
        %v1027 = vadd.f32 0.0, %v1026
        %v1028 = vpop.f32.mrb[0].mxu0
        %v1029 = vpop.f32.mrb[0].mxu0
        %v1030 = vadd.f32 0.0, %v1029
        %v1031 = vpop.f32.mrb[0].mxu0
        %1032 = vmatprep.mubr.bf16.mxu0 %v763
        %1033 = vmatmul.mubr.bf16.gmra.mrb[0].mxu0 %v762
        %v1034 = vpop.f32.mrb[0].mxu0
        %v1035 = vadd.f32 0.0, %v1034
        %v1036 = vpop.f32.mrb[0].mxu0
        %v1037 = vpop.f32.mrb[0].mxu0
        %v1038 = vadd.f32 0.0, %v1037
        %v1039 = vpop.f32.mrb[0].mxu0
        %1040 = vmatprep.mubr.bf16.mxu0 %v765
        %1041 = vmatmul.mubr.bf16.gmra.mrb[0].mxu0 %v764
        %v1042 = vpop.f32.mrb[0].mxu0
        %v1043 = vadd.f32 0.0, %v1042
        %v1044 = vpop.f32.mrb[0].mxu0
        %v1045 = vpop.f32.mrb[0].mxu0
        %v1046 = vadd.f32 0.0, %v1045
        %v1047 = vpop.f32.mrb[0].mxu0
        %1048 = vmatprep.mubr.bf16.mxu0 %v767
        %1049 = vmatmul.mubr.bf16.gmra.mrb[0].mxu0 %v766
        %v1050 = vpop.f32.mrb[0].mxu0
        %v1051 = vadd.f32 0.0, %v1050
        %v1052 = vpop.f32.mrb[0].mxu0
        %v1053 = vpop.f32.mrb[0].mxu0
        %v1054 = vadd.f32 0.0, %v1053
        %v1055 = vpop.f32.mrb[0].mxu0
        %1056 = vdwg.mxu0
        %v1057 = vadd.f32 %v544, %v931
        %v1058 = vadd.f32 %v545, %v934
        %v1059 = vadd.f32 %v546, %v939
        %v1060 = vadd.f32 %v547, %v942
        %v1061 = vadd.f32 %v548, %v947
        %v1062 = vadd.f32 %v549, %v950
        %v1063 = vadd.f32 %v550, %v955
        %v1064 = vadd.f32 %v551, %v958
        %v1065 = vadd.f32 %v552, %v963
        %v1066 = vadd.f32 %v553, %v966
        %v1067 = vadd.f32 %v554, %v971
        %v1068 = vadd.f32 %v555, %v974
        %v1069 = vadd.f32 %v556, %v979
        %v1070 = vadd.f32 %v557, %v982
        %v1071 = vadd.f32 %v558, %v987
        %v1072 = vadd.f32 %v559, %v990
        %v1073 = vadd.f32 %v560, %v995
        %v1074 = vadd.f32 %v561, %v998
        %v1075 = vadd.f32 %v562, %v1003
        %v1076 = vadd.f32 %v563, %v1006
        %v1077 = vadd.f32 %v564, %v1011
        %v1078 = vadd.f32 %v565, %v1014
        %v1079 = vadd.f32 %v566, %v1019
        %v1080 = vadd.f32 %v567, %v1022
        %v1081 = vadd.f32 %v568, %v1027
        %v1082 = vadd.f32 %v569, %v1030
        %v1083 = vadd.f32 %v570, %v1035
        %v1084 = vadd.f32 %v571, %v1038
        %v1085 = vadd.f32 %v572, %v1043
        %v1086 = vadd.f32 %v573, %v1046
        %v1087 = vadd.f32 %v574, %v1051
        %v1088 = vadd.f32 %v575, %v1054
        %1089 = vst [vmem:[#allocation2] sm:$0xff] %v1057
        %1090 = vst [vmem:[#allocation2 + $0x8] sm:$0xff] %v1058
        %1091 = vst [vmem:[#allocation2 + $0x10] sm:$0xff] %v1059
        %1092 = vst [vmem:[#allocation2 + $0x18] sm:$0xff] %v1060
        %1093 = vst [vmem:[#allocation2 + $0x20] sm:$0xff] %v1061
        %1094 = vst [vmem:[#allocation2 + $0x28] sm:$0xff] %v1062
        %1095 = vst [vmem:[#allocation2 + $0x30] sm:$0xff] %v1063
        %1096 = vst [vmem:[#allocation2 + $0x38] sm:$0xff] %v1064
        %1097 = vst [vmem:[#allocation2 + $0x40] sm:$0xff] %v1065
        %1098 = vst [vmem:[#allocation2 + $0x48] sm:$0xff] %v1066
        %1099 = vst [vmem:[#allocation2 + $0x50] sm:$0xff] %v1067
        %1100 = vst [vmem:[#allocation2 + $0x58] sm:$0xff] %v1068
        %1101 = vst [vmem:[#allocation2 + $0x60] sm:$0xff] %v1069
        %1102 = vst [vmem:[#allocation2 + $0x68] sm:$0xff] %v1070
        %1103 = vst [vmem:[#allocation2 + $0x70] sm:$0xff] %v1071
        %1104 = vst [vmem:[#allocation2 + $0x78] sm:$0xff] %v1072
        %1105 = vst [vmem:[#allocation2 + $0x80] sm:$0xff] %v1073
        %1106 = vst [vmem:[#allocation2 + $0x88] sm:$0xff] %v1074
        %1107 = vst [vmem:[#allocation2 + $0x90] sm:$0xff] %v1075
        %1108 = vst [vmem:[#allocation2 + $0x98] sm:$0xff] %v1076
        %1109 = vst [vmem:[#allocation2 + $0xa0] sm:$0xff] %v1077
        %1110 = vst [vmem:[#allocation2 + $0xa8] sm:$0xff] %v1078
        %1111 = vst [vmem:[#allocation2 + $0xb0] sm:$0xff] %v1079
        %1112 = vst [vmem:[#allocation2 + $0xb8] sm:$0xff] %v1080
        %1113 = vst [vmem:[#allocation2 + $0xc0] sm:$0xff] %v1081
        %1114 = vst [vmem:[#allocation2 + $0xc8] sm:$0xff] %v1082
        %1115 = vst [vmem:[#allocation2 + $0xd0] sm:$0xff] %v1083
        %1116 = vst [vmem:[#allocation2 + $0xd8] sm:$0xff] %v1084
        %1117 = vst [vmem:[#allocation2 + $0xe0] sm:$0xff] %v1085
        %1118 = vst [vmem:[#allocation2 + $0xe8] sm:$0xff] %v1086
        %1119 = vst [vmem:[#allocation2 + $0xf0] sm:$0xff] %v1087
        %1120 = vst [vmem:[#allocation2 + $0xf8] sm:$0xff] %v1088
        %p1121 = scmp.eq.s32.totalorder %s24, 1
        // Predicated region
        $region95: #{gnnstack_forward.3} parent=85 // pred_check
          %p1122 = pneg %p1121
        $region96: #{gnnstack_forward.3} parent=85 // pred_check_branch
          %1124 = sbr.rel (%p1122) target = $region98
        $region97: #{gnnstack_forward.3} parent=85 // pred_region
          %v1125 = vld [vmem:[#allocation2] sm:$0xff]
          %v1126 = vld [vmem:[#allocation2 + $0x8] sm:$0xff]
          %v1127 = vld [vmem:[#allocation2 + $0x10] sm:$0xff]
          %v1128 = vld [vmem:[#allocation2 + $0x18] sm:$0xff]
          %v1129 = vld [vmem:[#allocation2 + $0x20] sm:$0xff]
          %v1130 = vld [vmem:[#allocation2 + $0x28] sm:$0xff]
          %v1131 = vld [vmem:[#allocation2 + $0x30] sm:$0xff]
          %v1132 = vld [vmem:[#allocation2 + $0x38] sm:$0xff]
          %v1133 = vld [vmem:[#allocation2 + $0x40] sm:$0xff]
          %v1134 = vld [vmem:[#allocation2 + $0x48] sm:$0xff]
          %v1135 = vld [vmem:[#allocation2 + $0x50] sm:$0xff]
          %v1136 = vld [vmem:[#allocation2 + $0x58] sm:$0xff]
          %v1137 = vld [vmem:[#allocation2 + $0x60] sm:$0xff]
          %v1138 = vld [vmem:[#allocation2 + $0x68] sm:$0xff]
          %v1139 = vld [vmem:[#allocation2 + $0x70] sm:$0xff]
          %v1140 = vld [vmem:[#allocation2 + $0x78] sm:$0xff]
          %v1141 = vld [vmem:[#allocation2 + $0x80] sm:$0xff]
          %v1142 = vld [vmem:[#allocation2 + $0x88] sm:$0xff]
          %v1143 = vld [vmem:[#allocation2 + $0x90] sm:$0xff]
          %v1144 = vld [vmem:[#allocation2 + $0x98] sm:$0xff]
          %v1145 = vld [vmem:[#allocation2 + $0xa0] sm:$0xff]
          %v1146 = vld [vmem:[#allocation2 + $0xa8] sm:$0xff]
          %v1147 = vld [vmem:[#allocation2 + $0xb0] sm:$0xff]
          %v1148 = vld [vmem:[#allocation2 + $0xb8] sm:$0xff]
          %v1149 = vld [vmem:[#allocation2 + $0xc0] sm:$0xff]
          %v1150 = vld [vmem:[#allocation2 + $0xc8] sm:$0xff]
          %v1151 = vld [vmem:[#allocation2 + $0xd0] sm:$0xff]
          %v1152 = vld [vmem:[#allocation2 + $0xd8] sm:$0xff]
          %v1153 = vld [vmem:[#allocation2 + $0xe0] sm:$0xff]
          %v1154 = vld [vmem:[#allocation2 + $0xe8] sm:$0xff]
          %v1155 = vld [vmem:[#allocation2 + $0xf0] sm:$0xff]
          %v1156 = vld [vmem:[#allocation2 + $0xf8] sm:$0xff]
          %v1157 = vpack.c.bf16 %v1126, %v1125
          %v1158 = vpack.c.bf16 %v1128, %v1127
          %v1159 = vpack.c.bf16 %v1130, %v1129
          %v1160 = vpack.c.bf16 %v1132, %v1131
          %v1161 = vpack.c.bf16 %v1134, %v1133
          %v1162 = vpack.c.bf16 %v1136, %v1135
          %v1163 = vpack.c.bf16 %v1138, %v1137
          %v1164 = vpack.c.bf16 %v1140, %v1139
          %v1165 = vpack.c.bf16 %v1142, %v1141
          %v1166 = vpack.c.bf16 %v1144, %v1143
          %v1167 = vpack.c.bf16 %v1146, %v1145
          %v1168 = vpack.c.bf16 %v1148, %v1147
          %v1169 = vpack.c.bf16 %v1150, %v1149
          %v1170 = vpack.c.bf16 %v1152, %v1151
          %v1171 = vpack.c.bf16 %v1154, %v1153
          %v1172 = vpack.c.bf16 %v1156, %v1155
          %v1173 = vld [vmem:[%s2] sm:$0xf]
          %v1174 = vld [vmem:[%s2 + $0x4] sm:$0xf]
          %v1175 = vld [vmem:[%s2 + $0x8] sm:$0xf]
          %v1176 = vld [vmem:[%s2 + $0xc] sm:$0xf]
          %v1177 = vld [vmem:[%s2 + $0x10] sm:$0xf]
          %v1178 = vld [vmem:[%s2 + $0x14] sm:$0xf]
          %v1179 = vld [vmem:[%s2 + $0x18] sm:$0xf]
          %v1180 = vld [vmem:[%s2 + $0x1c] sm:$0xf]
          %v1181 = vld [vmem:[%s2 + $0x20] sm:$0xf]
          %v1182 = vld [vmem:[%s2 + $0x24] sm:$0xf]
          %v1183 = vld [vmem:[%s2 + $0x28] sm:$0xf]
          %v1184 = vld [vmem:[%s2 + $0x2c] sm:$0xf]
          %v1185 = vld [vmem:[%s2 + $0x30] sm:$0xf]
          %v1186 = vld [vmem:[%s2 + $0x34] sm:$0xf]
          %v1187 = vld [vmem:[%s2 + $0x38] sm:$0xf]
          %v1188 = vld [vmem:[%s2 + $0x3c] sm:$0xf]
          %v1189 = vld [vmem:[%s3] sm:$0x1]
          %v1191 = vlaneseq
          %v1192 = vshrl.u32 %v1191, 7
          %v1193 = vsub.s32 0, %v1192
          %v1194 = vrot.slane %v1189, %v1193
          %v1212 = vunpack.c.l.b16 %v1173
          %v1213 = vunpack.c.l.b16 %v1174
          %v1214 = vunpack.c.l.b16 %v1175
          %v1215 = vunpack.c.l.b16 %v1176
          %v1216 = vunpack.c.l.b16 %v1177
          %v1217 = vunpack.c.l.b16 %v1178
          %v1218 = vunpack.c.l.b16 %v1179
          %v1219 = vunpack.c.l.b16 %v1180
          %v1220 = vunpack.c.l.b16 %v1181
          %v1221 = vunpack.c.l.b16 %v1182
          %v1222 = vunpack.c.l.b16 %v1183
          %v1223 = vunpack.c.l.b16 %v1184
          %v1224 = vunpack.c.l.b16 %v1185
          %v1225 = vunpack.c.l.b16 %v1186
          %v1226 = vunpack.c.l.b16 %v1187
          %v1227 = vunpack.c.l.b16 %v1188
          %v1228 = vpack.c.b16 %v1213, %v1212
          %v1229 = vpack.c.b16 %v1215, %v1214
          %v1230 = vpack.c.b16 %v1217, %v1216
          %v1231 = vpack.c.b16 %v1219, %v1218
          %v1232 = vpack.c.b16 %v1221, %v1220
          %v1233 = vpack.c.b16 %v1223, %v1222
          %v1234 = vpack.c.b16 %v1225, %v1224
          %v1235 = vpack.c.b16 %v1227, %v1226
          %1244 = vmatprep.subr.bf16.mxu0 0
          %1245 = vmatpush1.bf16.msra.mxu0 %v1228
          %1246 = vmatprep.subr.bf16.mxu0 0
          %1247 = vmatpush1.bf16.msra.mxu0 %v1229
          %1248 = vmatprep.subr.bf16.mxu0 0
          %1249 = vmatpush1.bf16.msra.mxu0 %v1230
          %1250 = vmatprep.subr.bf16.mxu0 0
          %1251 = vmatpush1.bf16.msra.mxu0 %v1231
          %1252 = vmatprep.subr.bf16.mxu0 0
          %1253 = vmatpush1.bf16.msra.mxu0 %v1232
          %1254 = vmatprep.subr.bf16.mxu0 0
          %1255 = vmatpush1.bf16.msra.mxu0 %v1233
          %1256 = vmatprep.subr.bf16.mxu0 0
          %1257 = vmatpush1.bf16.msra.mxu0 %v1234
          %1258 = vmatprep.subr.bf16.mxu0 0
          %1259 = vmatpush1.bf16.msra.mxu0 %v1235
          %1260 = vmatprep.subr.bf16.mxu0 0
          %1261 = vmatpush1.bf16.msra.mxu0 0
          %1262 = vmatprep.subr.bf16.mxu0 0
          %1263 = vmatpush1.bf16.msra.mxu0 0
          %1264 = vmatprep.subr.bf16.mxu0 0
          %1265 = vmatpush1.bf16.msra.mxu0 0
          %1266 = vmatprep.subr.bf16.mxu0 0
          %1267 = vmatpush1.bf16.msra.mxu0 0
          %1268 = vmatprep.subr.bf16.mxu0 0
          %1269 = vmatpush1.bf16.msra.mxu0 0
          %1270 = vmatprep.subr.bf16.mxu0 0
          %1271 = vmatpush1.bf16.msra.mxu0 0
          %1272 = vmatprep.subr.bf16.mxu0 0
          %1273 = vmatpush1.bf16.msra.mxu0 0
          %1274 = vmatprep.subr.bf16.mxu0 0
          %1275 = vmatpush1.bf16.msra.mxu0 0
          %1276 = vmatprep.mubr.bf16.mxu0 0
          %1277 = vmatmul.mubr.bf16.gmra.mrb[0].mxu0 %v1157
          %v1278 = vpop.f32.mrb[0].mxu0
          %v1279 = vadd.f32 %v1194, %v1278
          %v1280 = vpop.f32.mrb[0].mxu0
          %v1281 = vpop.f32.mrb[0].mxu0
          %v1282 = vadd.f32 %v1194, %v1281
          %v1283 = vpop.f32.mrb[0].mxu0
          %1284 = vmatprep.mubr.bf16.mxu0 0
          %1285 = vmatmul.mubr.bf16.gmra.mrb[0].mxu0 %v1158
          %v1286 = vpop.f32.mrb[0].mxu0
          %v1287 = vadd.f32 %v1194, %v1286
          %v1288 = vpop.f32.mrb[0].mxu0
          %v1289 = vpop.f32.mrb[0].mxu0
          %v1290 = vadd.f32 %v1194, %v1289
          %v1291 = vpop.f32.mrb[0].mxu0
          %1292 = vmatprep.mubr.bf16.mxu0 0
          %1293 = vmatmul.mubr.bf16.gmra.mrb[0].mxu0 %v1159
          %v1294 = vpop.f32.mrb[0].mxu0
          %v1295 = vadd.f32 %v1194, %v1294
          %v1296 = vpop.f32.mrb[0].mxu0
          %v1297 = vpop.f32.mrb[0].mxu0
          %v1298 = vadd.f32 %v1194, %v1297
          %v1299 = vpop.f32.mrb[0].mxu0
          %1300 = vmatprep.mubr.bf16.mxu0 0
          %1301 = vmatmul.mubr.bf16.gmra.mrb[0].mxu0 %v1160
          %v1302 = vpop.f32.mrb[0].mxu0
          %v1303 = vadd.f32 %v1194, %v1302
          %v1304 = vpop.f32.mrb[0].mxu0
          %v1305 = vpop.f32.mrb[0].mxu0
          %v1306 = vadd.f32 %v1194, %v1305
          %v1307 = vpop.f32.mrb[0].mxu0
          %1308 = vmatprep.mubr.bf16.mxu0 0
          %1309 = vmatmul.mubr.bf16.gmra.mrb[0].mxu0 %v1161
          %v1310 = vpop.f32.mrb[0].mxu0
          %v1311 = vadd.f32 %v1194, %v1310
          %v1312 = vpop.f32.mrb[0].mxu0
          %v1313 = vpop.f32.mrb[0].mxu0
          %v1314 = vadd.f32 %v1194, %v1313
          %v1315 = vpop.f32.mrb[0].mxu0
          %1316 = vmatprep.mubr.bf16.mxu0 0
          %1317 = vmatmul.mubr.bf16.gmra.mrb[0].mxu0 %v1162
          %v1318 = vpop.f32.mrb[0].mxu0
          %v1319 = vadd.f32 %v1194, %v1318
          %v1320 = vpop.f32.mrb[0].mxu0
          %v1321 = vpop.f32.mrb[0].mxu0
          %v1322 = vadd.f32 %v1194, %v1321
          %v1323 = vpop.f32.mrb[0].mxu0
          %1324 = vmatprep.mubr.bf16.mxu0 0
          %1325 = vmatmul.mubr.bf16.gmra.mrb[0].mxu0 %v1163
          %v1326 = vpop.f32.mrb[0].mxu0
          %v1327 = vadd.f32 %v1194, %v1326
          %v1328 = vpop.f32.mrb[0].mxu0
          %v1329 = vpop.f32.mrb[0].mxu0
          %v1330 = vadd.f32 %v1194, %v1329
          %v1331 = vpop.f32.mrb[0].mxu0
          %1332 = vmatprep.mubr.bf16.mxu0 0
          %1333 = vmatmul.mubr.bf16.gmra.mrb[0].mxu0 %v1164
          %v1334 = vpop.f32.mrb[0].mxu0
          %v1335 = vadd.f32 %v1194, %v1334
          %v1336 = vpop.f32.mrb[0].mxu0
          %v1337 = vpop.f32.mrb[0].mxu0
          %v1338 = vadd.f32 %v1194, %v1337
          %v1339 = vpop.f32.mrb[0].mxu0
          %1340 = vmatprep.mubr.bf16.mxu0 0
          %1341 = vmatmul.mubr.bf16.gmra.mrb[0].mxu0 %v1165
          %v1342 = vpop.f32.mrb[0].mxu0
          %v1343 = vadd.f32 %v1194, %v1342
          %v1344 = vpop.f32.mrb[0].mxu0
          %v1345 = vpop.f32.mrb[0].mxu0
          %v1346 = vadd.f32 %v1194, %v1345
          %v1347 = vpop.f32.mrb[0].mxu0
          %1348 = vmatprep.mubr.bf16.mxu0 0
          %1349 = vmatmul.mubr.bf16.gmra.mrb[0].mxu0 %v1166
          %v1350 = vpop.f32.mrb[0].mxu0
          %v1351 = vadd.f32 %v1194, %v1350
          %v1352 = vpop.f32.mrb[0].mxu0
          %v1353 = vpop.f32.mrb[0].mxu0
          %v1354 = vadd.f32 %v1194, %v1353
          %v1355 = vpop.f32.mrb[0].mxu0
          %1356 = vmatprep.mubr.bf16.mxu0 0
          %1357 = vmatmul.mubr.bf16.gmra.mrb[0].mxu0 %v1167
          %v1358 = vpop.f32.mrb[0].mxu0
          %v1359 = vadd.f32 %v1194, %v1358
          %v1360 = vpop.f32.mrb[0].mxu0
          %v1361 = vpop.f32.mrb[0].mxu0
          %v1362 = vadd.f32 %v1194, %v1361
          %v1363 = vpop.f32.mrb[0].mxu0
          %1364 = vmatprep.mubr.bf16.mxu0 0
          %1365 = vmatmul.mubr.bf16.gmra.mrb[0].mxu0 %v1168
          %v1366 = vpop.f32.mrb[0].mxu0
          %v1367 = vadd.f32 %v1194, %v1366
          %v1368 = vpop.f32.mrb[0].mxu0
          %v1369 = vpop.f32.mrb[0].mxu0
          %v1370 = vadd.f32 %v1194, %v1369
          %v1371 = vpop.f32.mrb[0].mxu0
          %1372 = vmatprep.mubr.bf16.mxu0 0
          %1373 = vmatmul.mubr.bf16.gmra.mrb[0].mxu0 %v1169
          %v1374 = vpop.f32.mrb[0].mxu0
          %v1375 = vadd.f32 %v1194, %v1374
          %v1376 = vpop.f32.mrb[0].mxu0
          %v1377 = vpop.f32.mrb[0].mxu0
          %v1378 = vadd.f32 %v1194, %v1377
          %v1379 = vpop.f32.mrb[0].mxu0
          %1380 = vmatprep.mubr.bf16.mxu0 0
          %1381 = vmatmul.mubr.bf16.gmra.mrb[0].mxu0 %v1170
          %v1382 = vpop.f32.mrb[0].mxu0
          %v1383 = vadd.f32 %v1194, %v1382
          %v1384 = vpop.f32.mrb[0].mxu0
          %v1385 = vpop.f32.mrb[0].mxu0
          %v1386 = vadd.f32 %v1194, %v1385
          %v1387 = vpop.f32.mrb[0].mxu0
          %1388 = vmatprep.mubr.bf16.mxu0 0
          %1389 = vmatmul.mubr.bf16.gmra.mrb[0].mxu0 %v1171
          %v1390 = vpop.f32.mrb[0].mxu0
          %v1391 = vadd.f32 %v1194, %v1390
          %v1392 = vpop.f32.mrb[0].mxu0
          %v1393 = vpop.f32.mrb[0].mxu0
          %v1394 = vadd.f32 %v1194, %v1393
          %v1395 = vpop.f32.mrb[0].mxu0
          %1396 = vmatprep.mubr.bf16.mxu0 0
          %1397 = vmatmul.mubr.bf16.gmra.mrb[0].mxu0 %v1172
          %v1398 = vpop.f32.mrb[0].mxu0
          %v1399 = vadd.f32 %v1194, %v1398
          %v1400 = vpop.f32.mrb[0].mxu0
          %v1401 = vpop.f32.mrb[0].mxu0
          %v1402 = vadd.f32 %v1194, %v1401
          %v1403 = vpop.f32.mrb[0].mxu0
          %1404 = vdwg.mxu0
          %v1405 = vmax.f32 %v1279, 0.0
          %v1406 = vmax.f32 %v1282, 0.0
          %v1407 = vmax.f32 %v1287, 0.0
          %v1408 = vmax.f32 %v1290, 0.0
          %v1409 = vmax.f32 %v1295, 0.0
          %v1410 = vmax.f32 %v1298, 0.0
          %v1411 = vmax.f32 %v1303, 0.0
          %v1412 = vmax.f32 %v1306, 0.0
          %v1413 = vmax.f32 %v1311, 0.0
          %v1414 = vmax.f32 %v1314, 0.0
          %v1415 = vmax.f32 %v1319, 0.0
          %v1416 = vmax.f32 %v1322, 0.0
          %v1417 = vmax.f32 %v1327, 0.0
          %v1418 = vmax.f32 %v1330, 0.0
          %v1419 = vmax.f32 %v1335, 0.0
          %v1420 = vmax.f32 %v1338, 0.0
          %v1421 = vmax.f32 %v1343, 0.0
          %v1422 = vmax.f32 %v1346, 0.0
          %v1423 = vmax.f32 %v1351, 0.0
          %v1424 = vmax.f32 %v1354, 0.0
          %v1425 = vmax.f32 %v1359, 0.0
          %v1426 = vmax.f32 %v1362, 0.0
          %v1427 = vmax.f32 %v1367, 0.0
          %v1428 = vmax.f32 %v1370, 0.0
          %v1429 = vmax.f32 %v1375, 0.0
          %v1430 = vmax.f32 %v1378, 0.0
          %v1431 = vmax.f32 %v1383, 0.0
          %v1432 = vmax.f32 %v1386, 0.0
          %v1433 = vmax.f32 %v1391, 0.0
          %v1434 = vmax.f32 %v1394, 0.0
          %v1435 = vmax.f32 %v1399, 0.0
          %v1436 = vmax.f32 %v1402, 0.0
          %v1437 = vpack.c.bf16 %v1406, %v1405
          %v1438 = vpack.c.bf16 %v1408, %v1407
          %v1439 = vpack.c.bf16 %v1410, %v1409
          %v1440 = vpack.c.bf16 %v1412, %v1411
          %v1441 = vpack.c.bf16 %v1414, %v1413
          %v1442 = vpack.c.bf16 %v1416, %v1415
          %v1443 = vpack.c.bf16 %v1418, %v1417
          %v1444 = vpack.c.bf16 %v1420, %v1419
          %v1445 = vpack.c.bf16 %v1422, %v1421
          %v1446 = vpack.c.bf16 %v1424, %v1423
          %v1447 = vpack.c.bf16 %v1426, %v1425
          %v1448 = vpack.c.bf16 %v1428, %v1427
          %v1449 = vpack.c.bf16 %v1430, %v1429
          %v1450 = vpack.c.bf16 %v1432, %v1431
          %v1451 = vpack.c.bf16 %v1434, %v1433
          %v1452 = vpack.c.bf16 %v1436, %v1435
          %v1453 = vld [vmem:[%s4] sm:$0xf]
          %v1454 = vld [vmem:[%s4 + $0x4] sm:$0xf]
          %v1455 = vld [vmem:[%s4 + $0x8] sm:$0xf]
          %v1456 = vld [vmem:[%s4 + $0xc] sm:$0xf]
          %v1457 = vld [vmem:[%s4 + $0x10] sm:$0xf]
          %v1458 = vld [vmem:[%s4 + $0x14] sm:$0xf]
          %v1459 = vld [vmem:[%s4 + $0x18] sm:$0xf]
          %v1460 = vld [vmem:[%s4 + $0x1c] sm:$0xf]
          %v1461 = vld [vmem:[%s4 + $0x20] sm:$0xf]
          %v1462 = vld [vmem:[%s4 + $0x24] sm:$0xf]
          %v1463 = vld [vmem:[%s4 + $0x28] sm:$0xf]
          %v1464 = vld [vmem:[%s4 + $0x2c] sm:$0xf]
          %v1465 = vld [vmem:[%s4 + $0x30] sm:$0xf]
          %v1466 = vld [vmem:[%s4 + $0x34] sm:$0xf]
          %v1467 = vld [vmem:[%s4 + $0x38] sm:$0xf]
          %v1468 = vld [vmem:[%s4 + $0x3c] sm:$0xf]
          %v1469 = vld [vmem:[%s5] sm:$0x1]
          %v1471 = vlaneseq
          %v1472 = vshrl.u32 %v1471, 7
          %v1473 = vsub.s32 0, %v1472
          %v1474 = vrot.slane %v1469, %v1473
          %v1492 = vunpack.c.l.b16 %v1453
          %v1493 = vunpack.c.l.b16 %v1454
          %v1494 = vunpack.c.l.b16 %v1455
          %v1495 = vunpack.c.l.b16 %v1456
          %v1496 = vunpack.c.l.b16 %v1457
          %v1497 = vunpack.c.l.b16 %v1458
          %v1498 = vunpack.c.l.b16 %v1459
          %v1499 = vunpack.c.l.b16 %v1460
          %v1500 = vunpack.c.l.b16 %v1461
          %v1501 = vunpack.c.l.b16 %v1462
          %v1502 = vunpack.c.l.b16 %v1463
          %v1503 = vunpack.c.l.b16 %v1464
          %v1504 = vunpack.c.l.b16 %v1465
          %v1505 = vunpack.c.l.b16 %v1466
          %v1506 = vunpack.c.l.b16 %v1467
          %v1507 = vunpack.c.l.b16 %v1468
          %v1508 = vpack.c.b16 %v1493, %v1492
          %v1509 = vpack.c.b16 %v1495, %v1494
          %v1510 = vpack.c.b16 %v1497, %v1496
          %v1511 = vpack.c.b16 %v1499, %v1498
          %v1512 = vpack.c.b16 %v1501, %v1500
          %v1513 = vpack.c.b16 %v1503, %v1502
          %v1514 = vpack.c.b16 %v1505, %v1504
          %v1515 = vpack.c.b16 %v1507, %v1506
          %1524 = vmatprep.subr.bf16.mxu0 0
          %1525 = vmatpush1.bf16.msra.mxu0 %v1508
          %1526 = vmatprep.subr.bf16.mxu0 0
          %1527 = vmatpush1.bf16.msra.mxu0 %v1509
          %1528 = vmatprep.subr.bf16.mxu0 0
          %1529 = vmatpush1.bf16.msra.mxu0 %v1510
          %1530 = vmatprep.subr.bf16.mxu0 0
          %1531 = vmatpush1.bf16.msra.mxu0 %v1511
          %1532 = vmatprep.subr.bf16.mxu0 0
          %1533 = vmatpush1.bf16.msra.mxu0 %v1512
          %1534 = vmatprep.subr.bf16.mxu0 0
          %1535 = vmatpush1.bf16.msra.mxu0 %v1513
          %1536 = vmatprep.subr.bf16.mxu0 0
          %1537 = vmatpush1.bf16.msra.mxu0 %v1514
          %1538 = vmatprep.subr.bf16.mxu0 0
          %1539 = vmatpush1.bf16.msra.mxu0 %v1515
          %1540 = vmatprep.subr.bf16.mxu0 0
          %1541 = vmatpush1.bf16.msra.mxu0 0
          %1542 = vmatprep.subr.bf16.mxu0 0
          %1543 = vmatpush1.bf16.msra.mxu0 0
          %1544 = vmatprep.subr.bf16.mxu0 0
          %1545 = vmatpush1.bf16.msra.mxu0 0
          %1546 = vmatprep.subr.bf16.mxu0 0
          %1547 = vmatpush1.bf16.msra.mxu0 0
          %1548 = vmatprep.subr.bf16.mxu0 0
          %1549 = vmatpush1.bf16.msra.mxu0 0
          %1550 = vmatprep.subr.bf16.mxu0 0
          %1551 = vmatpush1.bf16.msra.mxu0 0
          %1552 = vmatprep.subr.bf16.mxu0 0
          %1553 = vmatpush1.bf16.msra.mxu0 0
          %1554 = vmatprep.subr.bf16.mxu0 0
          %1555 = vmatpush1.bf16.msra.mxu0 0
          %1556 = vmatprep.mubr.bf16.mxu0 0
          %1557 = vmatmul.mubr.bf16.gmra.mrb[0].mxu0 %v1437
          %v1558 = vpop.f32.mrb[0].mxu0
          %v1559 = vadd.f32 %v1474, %v1558
          %v1560 = vpop.f32.mrb[0].mxu0
          %v1561 = vpop.f32.mrb[0].mxu0
          %v1562 = vadd.f32 %v1474, %v1561
          %v1563 = vpop.f32.mrb[0].mxu0
          %1564 = vmatprep.mubr.bf16.mxu0 0
          %1565 = vmatmul.mubr.bf16.gmra.mrb[0].mxu0 %v1438
          %v1566 = vpop.f32.mrb[0].mxu0
          %v1567 = vadd.f32 %v1474, %v1566
          %v1568 = vpop.f32.mrb[0].mxu0
          %v1569 = vpop.f32.mrb[0].mxu0
          %v1570 = vadd.f32 %v1474, %v1569
          %v1571 = vpop.f32.mrb[0].mxu0
          %1572 = vmatprep.mubr.bf16.mxu0 0
          %1573 = vmatmul.mubr.bf16.gmra.mrb[0].mxu0 %v1439
          %v1574 = vpop.f32.mrb[0].mxu0
          %v1575 = vadd.f32 %v1474, %v1574
          %v1576 = vpop.f32.mrb[0].mxu0
          %v1577 = vpop.f32.mrb[0].mxu0
          %v1578 = vadd.f32 %v1474, %v1577
          %v1579 = vpop.f32.mrb[0].mxu0
          %1580 = vmatprep.mubr.bf16.mxu0 0
          %1581 = vmatmul.mubr.bf16.gmra.mrb[0].mxu0 %v1440
          %v1582 = vpop.f32.mrb[0].mxu0
          %v1583 = vadd.f32 %v1474, %v1582
          %v1584 = vpop.f32.mrb[0].mxu0
          %v1585 = vpop.f32.mrb[0].mxu0
          %v1586 = vadd.f32 %v1474, %v1585
          %v1587 = vpop.f32.mrb[0].mxu0
          %1588 = vmatprep.mubr.bf16.mxu0 0
          %1589 = vmatmul.mubr.bf16.gmra.mrb[0].mxu0 %v1441
          %v1590 = vpop.f32.mrb[0].mxu0
          %v1591 = vadd.f32 %v1474, %v1590
          %v1592 = vpop.f32.mrb[0].mxu0
          %v1593 = vpop.f32.mrb[0].mxu0
          %v1594 = vadd.f32 %v1474, %v1593
          %v1595 = vpop.f32.mrb[0].mxu0
          %1596 = vmatprep.mubr.bf16.mxu0 0
          %1597 = vmatmul.mubr.bf16.gmra.mrb[0].mxu0 %v1442
          %v1598 = vpop.f32.mrb[0].mxu0
          %v1599 = vadd.f32 %v1474, %v1598
          %v1600 = vpop.f32.mrb[0].mxu0
          %v1601 = vpop.f32.mrb[0].mxu0
          %v1602 = vadd.f32 %v1474, %v1601
          %v1603 = vpop.f32.mrb[0].mxu0
          %1604 = vmatprep.mubr.bf16.mxu0 0
          %1605 = vmatmul.mubr.bf16.gmra.mrb[0].mxu0 %v1443
          %v1606 = vpop.f32.mrb[0].mxu0
          %v1607 = vadd.f32 %v1474, %v1606
          %v1608 = vpop.f32.mrb[0].mxu0
          %v1609 = vpop.f32.mrb[0].mxu0
          %v1610 = vadd.f32 %v1474, %v1609
          %v1611 = vpop.f32.mrb[0].mxu0
          %1612 = vmatprep.mubr.bf16.mxu0 0
          %1613 = vmatmul.mubr.bf16.gmra.mrb[0].mxu0 %v1444
          %v1614 = vpop.f32.mrb[0].mxu0
          %v1615 = vadd.f32 %v1474, %v1614
          %v1616 = vpop.f32.mrb[0].mxu0
          %v1617 = vpop.f32.mrb[0].mxu0
          %v1618 = vadd.f32 %v1474, %v1617
          %v1619 = vpop.f32.mrb[0].mxu0
          %1620 = vmatprep.mubr.bf16.mxu0 0
          %1621 = vmatmul.mubr.bf16.gmra.mrb[0].mxu0 %v1445
          %v1622 = vpop.f32.mrb[0].mxu0
          %v1623 = vadd.f32 %v1474, %v1622
          %v1624 = vpop.f32.mrb[0].mxu0
          %v1625 = vpop.f32.mrb[0].mxu0
          %v1626 = vadd.f32 %v1474, %v1625
          %v1627 = vpop.f32.mrb[0].mxu0
          %1628 = vmatprep.mubr.bf16.mxu0 0
          %1629 = vmatmul.mubr.bf16.gmra.mrb[0].mxu0 %v1446
          %v1630 = vpop.f32.mrb[0].mxu0
          %v1631 = vadd.f32 %v1474, %v1630
          %v1632 = vpop.f32.mrb[0].mxu0
          %v1633 = vpop.f32.mrb[0].mxu0
          %v1634 = vadd.f32 %v1474, %v1633
          %v1635 = vpop.f32.mrb[0].mxu0
          %1636 = vmatprep.mubr.bf16.mxu0 0
          %1637 = vmatmul.mubr.bf16.gmra.mrb[0].mxu0 %v1447
          %v1638 = vpop.f32.mrb[0].mxu0
          %v1639 = vadd.f32 %v1474, %v1638
          %v1640 = vpop.f32.mrb[0].mxu0
          %v1641 = vpop.f32.mrb[0].mxu0
          %v1642 = vadd.f32 %v1474, %v1641
          %v1643 = vpop.f32.mrb[0].mxu0
          %1644 = vmatprep.mubr.bf16.mxu0 0
          %1645 = vmatmul.mubr.bf16.gmra.mrb[0].mxu0 %v1448
          %v1646 = vpop.f32.mrb[0].mxu0
          %v1647 = vadd.f32 %v1474, %v1646
          %v1648 = vpop.f32.mrb[0].mxu0
          %v1649 = vpop.f32.mrb[0].mxu0
          %v1650 = vadd.f32 %v1474, %v1649
          %v1651 = vpop.f32.mrb[0].mxu0
          %1652 = vmatprep.mubr.bf16.mxu0 0
          %1653 = vmatmul.mubr.bf16.gmra.mrb[0].mxu0 %v1449
          %v1654 = vpop.f32.mrb[0].mxu0
          %v1655 = vadd.f32 %v1474, %v1654
          %v1656 = vpop.f32.mrb[0].mxu0
          %v1657 = vpop.f32.mrb[0].mxu0
          %v1658 = vadd.f32 %v1474, %v1657
          %v1659 = vpop.f32.mrb[0].mxu0
          %1660 = vmatprep.mubr.bf16.mxu0 0
          %1661 = vmatmul.mubr.bf16.gmra.mrb[0].mxu0 %v1450
          %v1662 = vpop.f32.mrb[0].mxu0
          %v1663 = vadd.f32 %v1474, %v1662
          %v1664 = vpop.f32.mrb[0].mxu0
          %v1665 = vpop.f32.mrb[0].mxu0
          %v1666 = vadd.f32 %v1474, %v1665
          %v1667 = vpop.f32.mrb[0].mxu0
          %1668 = vmatprep.mubr.bf16.mxu0 0
          %1669 = vmatmul.mubr.bf16.gmra.mrb[0].mxu0 %v1451
          %v1670 = vpop.f32.mrb[0].mxu0
          %v1671 = vadd.f32 %v1474, %v1670
          %v1672 = vpop.f32.mrb[0].mxu0
          %v1673 = vpop.f32.mrb[0].mxu0
          %v1674 = vadd.f32 %v1474, %v1673
          %v1675 = vpop.f32.mrb[0].mxu0
          %1676 = vmatprep.mubr.bf16.mxu0 0
          %1677 = vmatmul.mubr.bf16.gmra.mrb[0].mxu0 %v1452
          %v1678 = vpop.f32.mrb[0].mxu0
          %v1679 = vadd.f32 %v1474, %v1678
          %v1680 = vpop.f32.mrb[0].mxu0
          %v1681 = vpop.f32.mrb[0].mxu0
          %v1682 = vadd.f32 %v1474, %v1681
          %v1683 = vpop.f32.mrb[0].mxu0
          %1684 = vdwg.mxu0
          %v1685 = vmax.f32 %v1559, 0.0
          %v1686 = vmax.f32 %v1562, 0.0
          %v1687 = vmax.f32 %v1567, 0.0
          %v1688 = vmax.f32 %v1570, 0.0
          %v1689 = vmax.f32 %v1575, 0.0
          %v1690 = vmax.f32 %v1578, 0.0
          %v1691 = vmax.f32 %v1583, 0.0
          %v1692 = vmax.f32 %v1586, 0.0
          %v1693 = vmax.f32 %v1591, 0.0
          %v1694 = vmax.f32 %v1594, 0.0
          %v1695 = vmax.f32 %v1599, 0.0
          %v1696 = vmax.f32 %v1602, 0.0
          %v1697 = vmax.f32 %v1607, 0.0
          %v1698 = vmax.f32 %v1610, 0.0
          %v1699 = vmax.f32 %v1615, 0.0
          %v1700 = vmax.f32 %v1618, 0.0
          %v1701 = vmax.f32 %v1623, 0.0
          %v1702 = vmax.f32 %v1626, 0.0
          %v1703 = vmax.f32 %v1631, 0.0
          %v1704 = vmax.f32 %v1634, 0.0
          %v1705 = vmax.f32 %v1639, 0.0
          %v1706 = vmax.f32 %v1642, 0.0
          %v1707 = vmax.f32 %v1647, 0.0
          %v1708 = vmax.f32 %v1650, 0.0
          %v1709 = vmax.f32 %v1655, 0.0
          %v1710 = vmax.f32 %v1658, 0.0
          %v1711 = vmax.f32 %v1663, 0.0
          %v1712 = vmax.f32 %v1666, 0.0
          %v1713 = vmax.f32 %v1671, 0.0
          %v1714 = vmax.f32 %v1674, 0.0
          %v1715 = vmax.f32 %v1679, 0.0
          %v1716 = vmax.f32 %v1682, 0.0
          %v1717 = vpack.c.bf16 %v1686, %v1685
          %v1718 = vpack.c.bf16 %v1688, %v1687
          %v1719 = vpack.c.bf16 %v1690, %v1689
          %v1720 = vpack.c.bf16 %v1692, %v1691
          %v1721 = vpack.c.bf16 %v1694, %v1693
          %v1722 = vpack.c.bf16 %v1696, %v1695
          %v1723 = vpack.c.bf16 %v1698, %v1697
          %v1724 = vpack.c.bf16 %v1700, %v1699
          %v1725 = vpack.c.bf16 %v1702, %v1701
          %v1726 = vpack.c.bf16 %v1704, %v1703
          %v1727 = vpack.c.bf16 %v1706, %v1705
          %v1728 = vpack.c.bf16 %v1708, %v1707
          %v1729 = vpack.c.bf16 %v1710, %v1709
          %v1730 = vpack.c.bf16 %v1712, %v1711
          %v1731 = vpack.c.bf16 %v1714, %v1713
          %v1732 = vpack.c.bf16 %v1716, %v1715
          %v1733 = vld [vmem:[%s6] sm:$0xf]
          %v1734 = vld [vmem:[%s6 + $0x4] sm:$0xf]
          %v1735 = vld [vmem:[%s6 + $0x8] sm:$0xf]
          %v1736 = vld [vmem:[%s6 + $0xc] sm:$0xf]
          %v1737 = vld [vmem:[%s6 + $0x10] sm:$0xf]
          %v1738 = vld [vmem:[%s6 + $0x14] sm:$0xf]
          %v1739 = vld [vmem:[%s6 + $0x18] sm:$0xf]
          %v1740 = vld [vmem:[%s6 + $0x1c] sm:$0xf]
          %v1741 = vld [vmem:[%s6 + $0x20] sm:$0xf]
          %v1742 = vld [vmem:[%s6 + $0x24] sm:$0xf]
          %v1743 = vld [vmem:[%s6 + $0x28] sm:$0xf]
          %v1744 = vld [vmem:[%s6 + $0x2c] sm:$0xf]
          %v1745 = vld [vmem:[%s6 + $0x30] sm:$0xf]
          %v1746 = vld [vmem:[%s6 + $0x34] sm:$0xf]
          %v1747 = vld [vmem:[%s6 + $0x38] sm:$0xf]
          %v1748 = vld [vmem:[%s6 + $0x3c] sm:$0xf]
          %v1749 = vld [vmem:[%s7] sm:$0x1]
          %v1751 = vlaneseq
          %v1752 = vshrl.u32 %v1751, 7
          %v1753 = vsub.s32 0, %v1752
          %v1754 = vrot.slane %v1749, %v1753
          %v1772 = vunpack.c.l.b16 %v1733
          %v1773 = vunpack.c.l.b16 %v1734
          %v1774 = vunpack.c.l.b16 %v1735
          %v1775 = vunpack.c.l.b16 %v1736
          %v1776 = vunpack.c.l.b16 %v1737
          %v1777 = vunpack.c.l.b16 %v1738
          %v1778 = vunpack.c.l.b16 %v1739
          %v1779 = vunpack.c.l.b16 %v1740
          %v1780 = vunpack.c.l.b16 %v1741
          %v1781 = vunpack.c.l.b16 %v1742
          %v1782 = vunpack.c.l.b16 %v1743
          %v1783 = vunpack.c.l.b16 %v1744
          %v1784 = vunpack.c.l.b16 %v1745
          %v1785 = vunpack.c.l.b16 %v1746
          %v1786 = vunpack.c.l.b16 %v1747
          %v1787 = vunpack.c.l.b16 %v1748
          %v1788 = vpack.c.b16 %v1773, %v1772
          %v1789 = vpack.c.b16 %v1775, %v1774
          %v1790 = vpack.c.b16 %v1777, %v1776
          %v1791 = vpack.c.b16 %v1779, %v1778
          %v1792 = vpack.c.b16 %v1781, %v1780
          %v1793 = vpack.c.b16 %v1783, %v1782
          %v1794 = vpack.c.b16 %v1785, %v1784
          %v1795 = vpack.c.b16 %v1787, %v1786
          %1804 = vmatprep.subr.bf16.mxu0 0
          %1805 = vmatpush1.bf16.msra.mxu0 %v1788
          %1806 = vmatprep.subr.bf16.mxu0 0
          %1807 = vmatpush1.bf16.msra.mxu0 %v1789
          %1808 = vmatprep.subr.bf16.mxu0 0
          %1809 = vmatpush1.bf16.msra.mxu0 %v1790
          %1810 = vmatprep.subr.bf16.mxu0 0
          %1811 = vmatpush1.bf16.msra.mxu0 %v1791
          %1812 = vmatprep.subr.bf16.mxu0 0
          %1813 = vmatpush1.bf16.msra.mxu0 %v1792
          %1814 = vmatprep.subr.bf16.mxu0 0
          %1815 = vmatpush1.bf16.msra.mxu0 %v1793
          %1816 = vmatprep.subr.bf16.mxu0 0
          %1817 = vmatpush1.bf16.msra.mxu0 %v1794
          %1818 = vmatprep.subr.bf16.mxu0 0
          %1819 = vmatpush1.bf16.msra.mxu0 %v1795
          %1820 = vmatprep.subr.bf16.mxu0 0
          %1821 = vmatpush1.bf16.msra.mxu0 0
          %1822 = vmatprep.subr.bf16.mxu0 0
          %1823 = vmatpush1.bf16.msra.mxu0 0
          %1824 = vmatprep.subr.bf16.mxu0 0
          %1825 = vmatpush1.bf16.msra.mxu0 0
          %1826 = vmatprep.subr.bf16.mxu0 0
          %1827 = vmatpush1.bf16.msra.mxu0 0
          %1828 = vmatprep.subr.bf16.mxu0 0
          %1829 = vmatpush1.bf16.msra.mxu0 0
          %1830 = vmatprep.subr.bf16.mxu0 0
          %1831 = vmatpush1.bf16.msra.mxu0 0
          %1832 = vmatprep.subr.bf16.mxu0 0
          %1833 = vmatpush1.bf16.msra.mxu0 0
          %1834 = vmatprep.subr.bf16.mxu0 0
          %1835 = vmatpush1.bf16.msra.mxu0 0
          %1836 = vmatprep.mubr.bf16.mxu0 0
          %1837 = vmatmul.mubr.bf16.gmra.mrb[0].mxu0 %v1717
          %v1838 = vpop.f32.mrb[0].mxu0
          %v1839 = vadd.f32 %v1754, %v1838
          %v1840 = vpop.f32.mrb[0].mxu0
          %v1841 = vpop.f32.mrb[0].mxu0
          %v1842 = vadd.f32 %v1754, %v1841
          %v1843 = vpop.f32.mrb[0].mxu0
          %1844 = vmatprep.mubr.bf16.mxu0 0
          %1845 = vmatmul.mubr.bf16.gmra.mrb[0].mxu0 %v1718
          %v1846 = vpop.f32.mrb[0].mxu0
          %v1847 = vadd.f32 %v1754, %v1846
          %v1848 = vpop.f32.mrb[0].mxu0
          %v1849 = vpop.f32.mrb[0].mxu0
          %v1850 = vadd.f32 %v1754, %v1849
          %v1851 = vpop.f32.mrb[0].mxu0
          %1852 = vmatprep.mubr.bf16.mxu0 0
          %1853 = vmatmul.mubr.bf16.gmra.mrb[0].mxu0 %v1719
          %v1854 = vpop.f32.mrb[0].mxu0
          %v1855 = vadd.f32 %v1754, %v1854
          %v1856 = vpop.f32.mrb[0].mxu0
          %v1857 = vpop.f32.mrb[0].mxu0
          %v1858 = vadd.f32 %v1754, %v1857
          %v1859 = vpop.f32.mrb[0].mxu0
          %1860 = vmatprep.mubr.bf16.mxu0 0
          %1861 = vmatmul.mubr.bf16.gmra.mrb[0].mxu0 %v1720
          %v1862 = vpop.f32.mrb[0].mxu0
          %v1863 = vadd.f32 %v1754, %v1862
          %v1864 = vpop.f32.mrb[0].mxu0
          %v1865 = vpop.f32.mrb[0].mxu0
          %v1866 = vadd.f32 %v1754, %v1865
          %v1867 = vpop.f32.mrb[0].mxu0
          %1868 = vmatprep.mubr.bf16.mxu0 0
          %1869 = vmatmul.mubr.bf16.gmra.mrb[0].mxu0 %v1721
          %v1870 = vpop.f32.mrb[0].mxu0
          %v1871 = vadd.f32 %v1754, %v1870
          %v1872 = vpop.f32.mrb[0].mxu0
          %v1873 = vpop.f32.mrb[0].mxu0
          %v1874 = vadd.f32 %v1754, %v1873
          %v1875 = vpop.f32.mrb[0].mxu0
          %1876 = vmatprep.mubr.bf16.mxu0 0
          %1877 = vmatmul.mubr.bf16.gmra.mrb[0].mxu0 %v1722
          %v1878 = vpop.f32.mrb[0].mxu0
          %v1879 = vadd.f32 %v1754, %v1878
          %v1880 = vpop.f32.mrb[0].mxu0
          %v1881 = vpop.f32.mrb[0].mxu0
          %v1882 = vadd.f32 %v1754, %v1881
          %v1883 = vpop.f32.mrb[0].mxu0
          %1884 = vmatprep.mubr.bf16.mxu0 0
          %1885 = vmatmul.mubr.bf16.gmra.mrb[0].mxu0 %v1723
          %v1886 = vpop.f32.mrb[0].mxu0
          %v1887 = vadd.f32 %v1754, %v1886
          %v1888 = vpop.f32.mrb[0].mxu0
          %v1889 = vpop.f32.mrb[0].mxu0
          %v1890 = vadd.f32 %v1754, %v1889
          %v1891 = vpop.f32.mrb[0].mxu0
          %1892 = vmatprep.mubr.bf16.mxu0 0
          %1893 = vmatmul.mubr.bf16.gmra.mrb[0].mxu0 %v1724
          %v1894 = vpop.f32.mrb[0].mxu0
          %v1895 = vadd.f32 %v1754, %v1894
          %v1896 = vpop.f32.mrb[0].mxu0
          %v1897 = vpop.f32.mrb[0].mxu0
          %v1898 = vadd.f32 %v1754, %v1897
          %v1899 = vpop.f32.mrb[0].mxu0
          %1900 = vmatprep.mubr.bf16.mxu0 0
          %1901 = vmatmul.mubr.bf16.gmra.mrb[0].mxu0 %v1725
          %v1902 = vpop.f32.mrb[0].mxu0
          %v1903 = vadd.f32 %v1754, %v1902
          %v1904 = vpop.f32.mrb[0].mxu0
          %v1905 = vpop.f32.mrb[0].mxu0
          %v1906 = vadd.f32 %v1754, %v1905
          %v1907 = vpop.f32.mrb[0].mxu0
          %1908 = vmatprep.mubr.bf16.mxu0 0
          %1909 = vmatmul.mubr.bf16.gmra.mrb[0].mxu0 %v1726
          %v1910 = vpop.f32.mrb[0].mxu0
          %v1911 = vadd.f32 %v1754, %v1910
          %v1912 = vpop.f32.mrb[0].mxu0
          %v1913 = vpop.f32.mrb[0].mxu0
          %v1914 = vadd.f32 %v1754, %v1913
          %v1915 = vpop.f32.mrb[0].mxu0
          %1916 = vmatprep.mubr.bf16.mxu0 0
          %1917 = vmatmul.mubr.bf16.gmra.mrb[0].mxu0 %v1727
          %v1918 = vpop.f32.mrb[0].mxu0
          %v1919 = vadd.f32 %v1754, %v1918
          %v1920 = vpop.f32.mrb[0].mxu0
          %v1921 = vpop.f32.mrb[0].mxu0
          %v1922 = vadd.f32 %v1754, %v1921
          %v1923 = vpop.f32.mrb[0].mxu0
          %1924 = vmatprep.mubr.bf16.mxu0 0
          %1925 = vmatmul.mubr.bf16.gmra.mrb[0].mxu0 %v1728
          %v1926 = vpop.f32.mrb[0].mxu0
          %v1927 = vadd.f32 %v1754, %v1926
          %v1928 = vpop.f32.mrb[0].mxu0
          %v1929 = vpop.f32.mrb[0].mxu0
          %v1930 = vadd.f32 %v1754, %v1929
          %v1931 = vpop.f32.mrb[0].mxu0
          %1932 = vmatprep.mubr.bf16.mxu0 0
          %1933 = vmatmul.mubr.bf16.gmra.mrb[0].mxu0 %v1729
          %v1934 = vpop.f32.mrb[0].mxu0
          %v1935 = vadd.f32 %v1754, %v1934
          %v1936 = vpop.f32.mrb[0].mxu0
          %v1937 = vpop.f32.mrb[0].mxu0
          %v1938 = vadd.f32 %v1754, %v1937
          %v1939 = vpop.f32.mrb[0].mxu0
          %1940 = vmatprep.mubr.bf16.mxu0 0
          %1941 = vmatmul.mubr.bf16.gmra.mrb[0].mxu0 %v1730
          %v1942 = vpop.f32.mrb[0].mxu0
          %v1943 = vadd.f32 %v1754, %v1942
          %v1944 = vpop.f32.mrb[0].mxu0
          %v1945 = vpop.f32.mrb[0].mxu0
          %v1946 = vadd.f32 %v1754, %v1945
          %v1947 = vpop.f32.mrb[0].mxu0
          %1948 = vmatprep.mubr.bf16.mxu0 0
          %1949 = vmatmul.mubr.bf16.gmra.mrb[0].mxu0 %v1731
          %v1950 = vpop.f32.mrb[0].mxu0
          %v1951 = vadd.f32 %v1754, %v1950
          %v1952 = vpop.f32.mrb[0].mxu0
          %v1953 = vpop.f32.mrb[0].mxu0
          %v1954 = vadd.f32 %v1754, %v1953
          %v1955 = vpop.f32.mrb[0].mxu0
          %1956 = vmatprep.mubr.bf16.mxu0 0
          %1957 = vmatmul.mubr.bf16.gmra.mrb[0].mxu0 %v1732
          %v1958 = vpop.f32.mrb[0].mxu0
          %v1959 = vadd.f32 %v1754, %v1958
          %v1960 = vpop.f32.mrb[0].mxu0
          %v1961 = vpop.f32.mrb[0].mxu0
          %v1962 = vadd.f32 %v1754, %v1961
          %v1963 = vpop.f32.mrb[0].mxu0
          %1964 = vdwg.mxu0
          %v1965 = vmax.f32 %v1839, 0.0
          %v1966 = vmax.f32 %v1842, 0.0
          %v1967 = vmax.f32 %v1847, 0.0
          %v1968 = vmax.f32 %v1850, 0.0
          %v1969 = vmax.f32 %v1855, 0.0
          %v1970 = vmax.f32 %v1858, 0.0
          %v1971 = vmax.f32 %v1863, 0.0
          %v1972 = vmax.f32 %v1866, 0.0
          %v1973 = vmax.f32 %v1871, 0.0
          %v1974 = vmax.f32 %v1874, 0.0
          %v1975 = vmax.f32 %v1879, 0.0
          %v1976 = vmax.f32 %v1882, 0.0
          %v1977 = vmax.f32 %v1887, 0.0
          %v1978 = vmax.f32 %v1890, 0.0
          %v1979 = vmax.f32 %v1895, 0.0
          %v1980 = vmax.f32 %v1898, 0.0
          %v1981 = vmax.f32 %v1903, 0.0
          %v1982 = vmax.f32 %v1906, 0.0
          %v1983 = vmax.f32 %v1911, 0.0
          %v1984 = vmax.f32 %v1914, 0.0
          %v1985 = vmax.f32 %v1919, 0.0
          %v1986 = vmax.f32 %v1922, 0.0
          %v1987 = vmax.f32 %v1927, 0.0
          %v1988 = vmax.f32 %v1930, 0.0
          %v1989 = vmax.f32 %v1935, 0.0
          %v1990 = vmax.f32 %v1938, 0.0
          %v1991 = vmax.f32 %v1943, 0.0
          %v1992 = vmax.f32 %v1946, 0.0
          %v1993 = vmax.f32 %v1951, 0.0
          %v1994 = vmax.f32 %v1954, 0.0
          %v1995 = vmax.f32 %v1959, 0.0
          %v1996 = vmax.f32 %v1962, 0.0
          %1997 = vst [vmem:[%s505] sm:$0xff] %v1965
          %1998 = vst [vmem:[%s505 + $0x8] sm:$0xff] %v1966
          %1999 = vst [vmem:[%s505 + $0x10] sm:$0xff] %v1967
          %2000 = vst [vmem:[%s505 + $0x18] sm:$0xff] %v1968
          %2001 = vst [vmem:[%s505 + $0x20] sm:$0xff] %v1969
          %2002 = vst [vmem:[%s505 + $0x28] sm:$0xff] %v1970
          %2003 = vst [vmem:[%s505 + $0x30] sm:$0xff] %v1971
          %2004 = vst [vmem:[%s505 + $0x38] sm:$0xff] %v1972
          %2005 = vst [vmem:[%s505 + $0x40] sm:$0xff] %v1973
          %2006 = vst [vmem:[%s505 + $0x48] sm:$0xff] %v1974
          %2007 = vst [vmem:[%s505 + $0x50] sm:$0xff] %v1975
          %2008 = vst [vmem:[%s505 + $0x58] sm:$0xff] %v1976
          %2009 = vst [vmem:[%s505 + $0x60] sm:$0xff] %v1977
          %2010 = vst [vmem:[%s505 + $0x68] sm:$0xff] %v1978
          %2011 = vst [vmem:[%s505 + $0x70] sm:$0xff] %v1979
          %2012 = vst [vmem:[%s505 + $0x78] sm:$0xff] %v1980
          %2013 = vst [vmem:[%s505 + $0x80] sm:$0xff] %v1981
          %2014 = vst [vmem:[%s505 + $0x88] sm:$0xff] %v1982
          %2015 = vst [vmem:[%s505 + $0x90] sm:$0xff] %v1983
          %2016 = vst [vmem:[%s505 + $0x98] sm:$0xff] %v1984
          %2017 = vst [vmem:[%s505 + $0xa0] sm:$0xff] %v1985
          %2018 = vst [vmem:[%s505 + $0xa8] sm:$0xff] %v1986
          %2019 = vst [vmem:[%s505 + $0xb0] sm:$0xff] %v1987
          %2020 = vst [vmem:[%s505 + $0xb8] sm:$0xff] %v1988
          %2021 = vst [vmem:[%s505 + $0xc0] sm:$0xff] %v1989
          %2022 = vst [vmem:[%s505 + $0xc8] sm:$0xff] %v1990
          %2023 = vst [vmem:[%s505 + $0xd0] sm:$0xff] %v1991
          %2024 = vst [vmem:[%s505 + $0xd8] sm:$0xff] %v1992
          %2025 = vst [vmem:[%s505 + $0xe0] sm:$0xff] %v1993
          %2026 = vst [vmem:[%s505 + $0xe8] sm:$0xff] %v1994
          %2027 = vst [vmem:[%s505 + $0xf0] sm:$0xff] %v1995
          %2028 = vst [vmem:[%s505 + $0xf8] sm:$0xff] %v1996
        $region98: #{gnnstack_forward.3} parent=85 // pred_fallthru
          _
        %s2029 = smul.u32 32, %s23
        %p2030 = scmp.lt.s32.totalorder %s2029, 63
        %s2031 = scalar_select %p2030, %s2029, 63
        %s2032 = smul.addr %s2031, 8
        %s2033 = scalar_lea.vmem %s8, %s2032
        // Predicated region
        $region99: #{gnnstack_forward.3} parent=85 // pred_check
          %p2034 = pneg %p229
        $region100: #{gnnstack_forward.3} parent=85 // pred_check_branch
          %2036 = sbr.rel (%p2034) target = $region102
        $region101: #{gnnstack_forward.3} parent=85 // pred_region
          %s2037 = smul.u32 32, %s23
        $region102: #{gnnstack_forward.3} parent=85 // pred_fallthru
          _
      $region86: #{gnnstack_forward.3} parent=5 // pred_fallthru
        _
      %p2038 = scmp.le.s32.totalorder 2, %s14
      // Predicated region
      $region103: #{gnnstack_forward.3} parent=5 // pred_check
        %p2039 = pneg %p2038
      $region104: #{gnnstack_forward.3} parent=5 // pred_check_branch
        %2041 = sbr.rel (%p2039) target = $region106
      $region105: #{gnnstack_forward.3} parent=5 // pred_region
        %s2042 = ssub.s32 %s14, 2
        // Predicated region
        $region107: #{gnnstack_forward.3} parent=105 // pred_check
          %p2043 = pneg %p235
        $region108: #{gnnstack_forward.3} parent=105 // pred_check_branch
          %2045 = sbr.rel (%p2043) target = $region110
        $region109: #{gnnstack_forward.3} parent=105 // pred_region
          %s2046 = smul.u32 32, %s25
          %p2047 = scmp.lt.s32.totalorder %s2046, 63
          %s2048 = scalar_select %p2047, %s2046, 63
          %s2049 = smul.addr %s2048, 8
          %s2050 = scalar_lea.vmem %s8, %s2049
        $region110: #{gnnstack_forward.3} parent=105 // pred_fallthru
          _
      $region106: #{gnnstack_forward.3} parent=5 // pred_fallthru
        _
    $region6: #{gnnstack_forward.3} parent=1 // loop_footer
      %s18 = sadd.s32 1, %s14
    $region7: #{gnnstack_forward.3} parent=1 // loop_footer_branch
      %13 = sbr.rel target = $region3
    $region8: #{gnnstack_forward.3} parent=1 // loop_exit
      _

</llo_original>
